<compile_context>
chip_gen: v6e
topology: v6e:2x2x1
jax: 0.10.0
libtpu: 0.0.40
codegen_flags: <defaults>
</compile_context>

<pallas_src>
import math
import functools

import numpy as np
import jax
import jax.numpy as jnp
from jax import lax
from jax.experimental import pallas as pl
from jax.experimental.pallas import tpu as pltpu

PRELU_A = 0.25   # default nn.PReLU() weight
GN_EPS = 1e-6    # GroupNorm eps used everywhere in the module


def _r8(n):
    return ((n + 7) // 8) * 8


# ---------------------------------------------------------------------------
# Fused kernel: whole batch in one grid step (batch folded into lanes).
# ---------------------------------------------------------------------------
def dual_path_kernel(x_ref, pack_ref, red_ref, brdm_ref, o_ref, *,
                     ch, N, L, K, H, t_out, f_out, offs):
    f32 = jnp.float32
    C2 = 2 * ch          # == 4*H
    P = 3                # FFN conv2 padding (module default)
    LN = L * N
    T = t_out * N

    o_wsru, o_w1, o_w2m, o_w3, o_wct, o_pv = offs

    x = x_ref[...].astype(f32)                       # (ch, T); lane = t*N + b*f_out + f

    # ---- constant reduce / broadcast matrices (DMA'd once, drive MXU) ------
    RED = red_ref[...]                               # (T, N): sum over (rows, t_out) per sample
    segR = red_ref[0:LN, :]                          # (LN, N): sum over (rows, L) per sample
    BRD = brdm_ref[:, 0:T]                           # (N, T): per-sample -> per-lane broadcast
    segB = brdm_ref[:, 0:LN]                         # (N, LN)
    MB = brdm_ref[:, T:T + N]                        # (N, N): same-batch merge / broadcast

    # ---- packed parameters (one VMEM block) ---------------------------------
    wsru = pack_ref[o_wsru:o_wsru + 8 * H, 0:K * ch]     # (8H, K*ch)
    w1 = pack_ref[o_w1:o_w1 + C2, 0:ch]                  # (C2, ch)
    w2m = pack_ref[o_w2m:o_w2m + C2, 0:K * C2]           # (C2, K*C2)
    w3 = pack_ref[o_w3:o_w3 + ch, 0:C2]                  # (ch, C2)
    wct = pack_ref[o_wct:o_wct + ch, 0:K * 2 * H]        # (ch, K*2H)
    PV = pack_ref[o_pv:o_pv + C2, 0:14]                  # (C2, 14)

    b1, g1, be1 = PV[:, 0:1], PV[:, 1:2], PV[:, 2:3]
    b2, g2, be2 = PV[:, 3:4], PV[:, 4:5], PV[:, 5:6]
    b3, g3, be3 = PV[0:ch, 6:7], PV[0:ch, 7:8], PV[0:ch, 8:9]
    ctb, ng, nb = PV[0:ch, 9:10], PV[0:ch, 10:11], PV[0:ch, 11:12]
    v4, b4 = PV[:, 12:13], PV[:, 13:14]                  # (4H,1): [vf_f,vf_b,vr_f,vr_b] / [bf_f,bf_b,br_f,br_b]

    # ---- outer GroupNorm(1, ch): per batch element over padded (ch,t,f) ----
    cnt_o = float(ch * t_out * f_out)
    s2 = jnp.concatenate([jnp.sum(x, axis=0, keepdims=True),
                          jnp.sum(x * x, axis=0, keepdims=True)], axis=0)    # (2, T)
    ps = jnp.dot(s2, RED, preferred_element_type=f32)                        # (2, N)  per-(b,f) sums
    pb = jnp.dot(ps, MB, preferred_element_type=f32) * (1.0 / cnt_o)         # (2, N)  per-batch stats
    mean = pb[0:1]
    var = pb[1:2] - mean * mean
    stat = jnp.concatenate([mean, lax.rsqrt(var + GN_EPS)], axis=0)          # (2, N)
    stl = jnp.dot(stat, BRD, preferred_element_type=f32)                     # (2, T)
    xn = (x - stl[0:1]) * stl[1:2] * ng + nb                                 # (ch, T)

    # ---- unfold (stride == 1): S[k*ch + c, l*N + n] = xn[c, (l + k)*N + n] --
    S = jnp.concatenate([xn[:, k * N:k * N + LN] for k in range(K)], axis=0)  # (K*ch, LN)

    # ---- SRU: all gate pre-activations, both directions, one matmul ---------
    U = jnp.dot(wsru, S, preferred_element_type=f32)      # (8H, LN): rows [f,r,z,x]_fwd | [f,r,z,x]_bwd
    Uf = U[0:4 * H]
    Ub = U[4 * H:8 * H]
    # time-reverse the backward half once (off the per-step critical path)
    Ub = jnp.concatenate([Ub[:, (L - 1 - l) * N:(L - l) * N] for l in range(L)], axis=1)
    G4 = jnp.concatenate([Uf[0:H], Ub[0:H], Uf[H:2 * H], Ub[H:2 * H]], axis=0) + b4   # (4H, LN) [f_f,f_b,r_f,r_b]
    Z = jnp.concatenate([Uf[2 * H:3 * H], Ub[2 * H:3 * H]], axis=0)                    # (2H, LN) [z_f,z_b]
    Xh = jnp.concatenate([Uf[3 * H:4 * H], Ub[3 * H:4 * H]], axis=0)                   # (2H, LN) [x_f,x_b]

    # fused bidirectional recurrence: fwd handles t=i, bwd handles t=L-1-i,
    # one sigmoid per step over the stacked (4H, N) gate pre-activations.
    # TODO(synk): sru-package rescale / layer-norm variants not replicated.
    c = jnp.zeros((2 * H, N), f32)                        # [c_fwd; c_bwd]
    hs = [None] * L
    for i in range(L):                                    # fully unrolled (L static)
        sl = slice(i * N, (i + 1) * N)
        zt = Z[:, sl]
        xt = Xh[:, sl]
        cc = jnp.concatenate([c, c], axis=0)              # (4H, N)
        g = jax.nn.sigmoid(G4[:, sl] + v4 * cc)           # f/r gates, both directions, one EUP call
        f = g[0:2 * H]
        r = g[2 * H:4 * H]
        c = zt + f * (c - zt)                             # c_t = f*c_{t-1} + (1-f)*z_t
        hs[i] = xt + r * (c - xt)                         # h_t = r*c_t + (1-r)*x_t

    Y = jnp.concatenate(
        [jnp.concatenate([hs[l][0:H] for l in range(L)], axis=1),
         jnp.concatenate([hs[L - 1 - l][H:2 * H] for l in range(L)], axis=1)],
        axis=0)                                           # (ch == 2H, LN): [fwd | bwd] features

    # ---- per-sample GroupNorm(+PReLU) via constant reduce/broadcast mats ----
    def gn_prelu(z, gcol, becol):
        cnt = float(z.shape[0] * L)
        s = jnp.concatenate([jnp.sum(z, axis=0, keepdims=True),
                             jnp.sum(z * z, axis=0, keepdims=True)], axis=0)   # (2, LN)
        q = jnp.dot(s, segR, preferred_element_type=f32) * (1.0 / cnt)         # (2, N)
        m = q[0:1]
        v = q[1:2] - m * m
        st = jnp.concatenate([m, lax.rsqrt(v + GN_EPS)], axis=0)               # (2, N)
        sb = jnp.dot(st, segB, preferred_element_type=f32)                     # (2, LN)
        zn = (z - sb[0:1]) * sb[1:2] * gcol + becol
        return jnp.where(zn >= 0, zn, PRELU_A * zn)

    # ---- FFN: 1x1 conv -> K-tap conv (pad=3) -> 1x1 conv, GN+PReLU each -----
    z1 = gn_prelu(jnp.dot(w1, Y, preferred_element_type=f32) + b1, g1, be1)    # (C2, LN)

    zpad = jnp.zeros((C2, P * N), f32)
    z1p = jnp.concatenate([zpad, z1, zpad], axis=-1)                           # (C2, (L+2P)*N)
    patches = jnp.concatenate([z1p[:, k * N:k * N + LN] for k in range(K)], axis=0)  # (K*C2, LN)
    z2 = gn_prelu(jnp.dot(w2m, patches, preferred_element_type=f32) + b2, g2, be2)   # (C2, LN)
    # TODO(synk): nn.Dropout(0.1) treated as identity (eval mode).

    z3 = gn_prelu(jnp.dot(w3, z2, preferred_element_type=f32) + b3, g3, be3)   # (ch, LN)
    ffn = z3 + Y                                                               # FFN residual

    # ---- ConvTranspose1d(2H -> ch, K, stride=1) as one im2col matmul --------
    cpad = jnp.zeros((ch, (K - 1) * N), f32)
    fpad = jnp.concatenate([cpad, ffn, cpad], axis=-1)                         # (ch, (L+2K-2)*N)
    pct = jnp.concatenate(
        [fpad[:, (K - 1 - k) * N:(K - 1 - k) * N + T] for k in range(K)], axis=0)   # (K*ch, T)
    z4 = jnp.dot(wct, pct, preferred_element_type=f32) + ctb                   # (ch, T)

    # ---- outer skip connection; single lane-dense 512-wide store ------------
    o_ref[...] = (z4 + x).astype(o_ref.dtype)


# ---------------------------------------------------------------------------
# Parameter repacking into one VMEM block (tiny, done once inside jit).
# ---------------------------------------------------------------------------
def prepare_packed_params(p, ch, H, K):
    C2 = 2 * ch
    wg, wr = p['sru_wg'], p['sru_wr']
    # per-direction column order [f | r | z | x(highway)], fwd block then bwd block
    wall = jnp.concatenate(
        [jnp.concatenate([wg[0][:, H:2 * H], wg[0][:, 2 * H:3 * H], wg[0][:, 0:H], wr[0]], axis=1),
         jnp.concatenate([wg[1][:, H:2 * H], wg[1][:, 2 * H:3 * H], wg[1][:, 0:H], wr[1]], axis=1)],
        axis=1).T                                                   # (8H, Din), Din index = c*K + k
    wsru = wall.reshape(8 * H, ch, K).transpose(0, 2, 1).reshape(8 * H, K * ch)   # -> k*ch + c
    w2m = jnp.transpose(p['w2'], (0, 2, 1)).reshape(C2, K * C2)     # [o, k*C2 + i]
    wctm = jnp.transpose(p['ct_w'], (1, 2, 0)).reshape(ch, K * 2 * H)  # [o, k*Cin + i]

    vb = p['sru_vb']                                                 # (8, H): [vf,vr,bf,br] x {fwd,bwd}
    v4 = jnp.concatenate([vb[0], vb[4], vb[1], vb[5]]).reshape(C2, 1)   # [vf_f, vf_b, vr_f, vr_b]
    b4 = jnp.concatenate([vb[2], vb[6], vb[3], vb[7]]).reshape(C2, 1)   # [bf_f, bf_b, br_f, br_b]

    def col(v):
        v = v.reshape(-1, 1)
        return jnp.pad(v, ((0, C2 - v.shape[0]), (0, 0)))

    pvec = jnp.concatenate(
        [p['b1'], p['g1'], p['be1'], p['b2'], p['g2'], p['be2'],
         col(p['b3']), col(p['g3']), col(p['be3']), col(p['ct_b']),
         col(p['norm_g']), col(p['norm_b']), v4, b4], axis=1)        # (C2, 14)

    blocks = [wsru, p['w1'], w2m, p['w3'], wctm, pvec]
    width = max(b.shape[1] for b in blocks)
    offs, rows, padded = [], 0, []
    for b in blocks:
        offs.append(rows)
        r8 = _r8(b.shape[0])
        padded.append(jnp.pad(b, ((0, r8 - b.shape[0]), (0, width - b.shape[1]))))
        rows += r8
    pack = jnp.concatenate(padded, axis=0).astype(jnp.float32)       # (rows, width)
    return pack, tuple(offs)


def build_constants(bs, t_out, f_out, N):
    # RED[t*N + n, n'] = (n == n'); BRD = RED-style broadcast; MB groups lanes by batch.
    eye = np.eye(N, dtype=np.float32)
    RED = np.tile(eye, (t_out, 1))                    # (T, N)
    BRD = np.tile(eye, (1, t_out))                    # (N, T)
    bidx = np.repeat(np.arange(bs), f_out)            # (N,)
    MB = (bidx[:, None] == bidx[None, :]).astype(np.float32)   # (N, N)
    BRDM = np.concatenate([BRD, MB], axis=1)          # (N, T + N)
    return jnp.asarray(RED), jnp.asarray(BRDM)


# ---------------------------------------------------------------------------
# DualPath forward: thin JAX glue around the single fused pallas_call.
# ---------------------------------------------------------------------------
def dual_path_forward(x, p, *, dim, kernel_size, stride=1):
    K = kernel_size
    assert stride == 1, "fused kernel supports stride=1"   # TODO(synk): general stride not implemented
    assert K == 7, "FFN conv2 uses padding=3 -> module only shape-consistent for kernel_size=7"
    if dim == 4:
        x = jnp.swapaxes(x, -1, -2)
    bs, ch, t_in, f_in = x.shape
    H = p['sru_vb'].shape[1]
    assert ch == 2 * H, "module requires in_c == 2 * out_c"
    t_out = math.ceil((t_in - K) / stride) * stride + K
    f_out = math.ceil((f_in - K) / stride) * stride + K
    x = jnp.pad(x, ((0, 0), (0, 0), (0, t_out - t_in), (0, f_out - f_in)))
    L = (t_out - K) // stride + 1
    N = bs * f_out                 # batch folded into the per-time sample (lane) axis
    T = t_out * N

    pack, offs = prepare_packed_params(p, ch, H, K)
    RED, BRDM = build_constants(bs, t_out, f_out, N)

    # fold batch into lanes: column = t*N + b*f_out + f
    x2 = jnp.transpose(x, (1, 2, 0, 3)).reshape(ch, T)

    kernel = functools.partial(dual_path_kernel, ch=ch, N=N, L=L, K=K, H=H,
                               t_out=t_out, f_out=f_out, offs=offs)
    out = pl.pallas_call(
        kernel,
        out_shape=jax.ShapeDtypeStruct((ch, T), jnp.float32),
        grid=(1,),
        in_specs=[pl.BlockSpec((ch, T), lambda i: (0, 0)),
                  pl.BlockSpec(pack.shape, lambda i: (0, 0)),
                  pl.BlockSpec(RED.shape, lambda i: (0, 0)),
                  pl.BlockSpec(BRDM.shape, lambda i: (0, 0))],
        out_specs=pl.BlockSpec((ch, T), lambda i: (0, 0)),
        compiler_params=pltpu.CompilerParams(dimension_semantics=("arbitrary",)),
    )(x2, pack, RED, BRDM)

    z = out.reshape(ch, t_out, bs, f_out).transpose(2, 0, 1, 3)   # (bs, ch, t_out, f_out)
    if dim == 4:
        z = z[:, :, :t_in, :f_in]
        z = jnp.swapaxes(z, -1, -2)
    else:
        z = z[:, :t_in, :f_in]
    return z


# ---------------------------------------------------------------------------
# Deterministic synthetic parameter init (shapes follow DualPath.__init__).
# ---------------------------------------------------------------------------
def init_params(key, in_c, out_c, kernel_size):
    ch = in_c
    K = kernel_size
    H = out_c
    Din = ch * K
    C2 = 2 * ch
    keys = jax.random.split(key, 12)

    def rnd(k, shape, s=0.2):
        return (s * jax.random.normal(k, shape)).astype(jnp.float32)

    p = {}
    # DualPath.norm = GroupNorm(1, in_c)  (PyTorch default affine init: 1 / 0)
    p['norm_g'] = jnp.ones((ch,), jnp.float32)
    p['norm_b'] = jnp.zeros((ch,), jnp.float32)
    # SRU(input_size=ch*K, hidden_size=out_c, bidirectional=True)
    p['sru_wg'] = rnd(keys[0], (2, Din, 3 * H))    # [xtilde | f | r] per direction
    p['sru_wr'] = rnd(keys[1], (2, Din, H))        # highway projection per direction
    p['sru_vb'] = rnd(keys[2], (8, H))             # [vf, vr, bf, br] x {fwd, bwd}
    # FFN: conv1 Conv1d(ch, 2ch, 1); conv2 Conv1d(2ch, 2ch, K, padding=3); conv3 Conv1d(2ch, ch, 1)
    p['w1'] = rnd(keys[3], (C2, ch))
    p['b1'] = rnd(keys[4], (C2, 1))
    p['g1'] = jnp.ones((C2, 1), jnp.float32)
    p['be1'] = jnp.zeros((C2, 1), jnp.float32)
    p['w2'] = rnd(keys[5], (C2, C2, K))
    p['b2'] = rnd(keys[6], (C2, 1))
    p['g2'] = jnp.ones((C2, 1), jnp.float32)
    p['be2'] = jnp.zeros((C2, 1), jnp.float32)
    p['w3'] = rnd(keys[7], (ch, C2))
    p['b3'] = rnd(keys[8], (ch, 1))
    p['g3'] = jnp.ones((ch, 1), jnp.float32)
    p['be3'] = jnp.zeros((ch, 1), jnp.float32)
    # ConvTranspose1d(2*out_c, in_c, K): PyTorch weight (Cin=2*out_c, Cout=in_c, K)
    p['ct_w'] = rnd(keys[9], (2 * H, ch, K))
    p['ct_b'] = rnd(keys[10], (ch, 1))
    return p


if __name__ == "__main__":
    # DualPath(in_c=4, out_c=2, dim=4, kernel_size=7, stride=1)
    in_c, out_c, dim = 4, 2, 4
    kernel_size, stride = 7, 1
    bs, T, Fdim = 2, 16, 16

    key = jax.random.PRNGKey(0)
    kx, kparam = jax.random.split(key)
    x = jax.random.normal(kx, (bs, in_c, T, Fdim), jnp.float32)
    params = init_params(kparam, in_c, out_c, kernel_size)

    fwd = jax.jit(functools.partial(dual_path_forward, dim=dim,
                                    kernel_size=kernel_size, stride=stride))
    out = jax.block_until_ready(fwd(x, params))

    assert out.shape == x.shape, f"bad output shape {out.shape}"
    assert bool(jnp.all(jnp.isfinite(out)))
    print("KERNEL_OK")
</pallas_src>

<mosaic_0001>
module attributes {stable_mosaic.version = 11 : i64} {
  func.func @dual_path_kernel(%arg0: i32, %arg1: memref<4x512xf32, #tpu.memory_space<vmem>>, %arg2: memref<56x56xf32, #tpu.memory_space<vmem>>, %arg3: memref<512x32xf32, #tpu.memory_space<vmem>>, %arg4: memref<32x544xf32, #tpu.memory_space<vmem>>, %arg5: memref<4x512xf32, #tpu.memory_space<vmem>>) attributes {dimension_semantics = [#tpu.dimension_semantics<arbitrary>], iteration_bounds = array<i64: 1>, scalar_prefetch = 0 : i64, scratch_operands = 0 : i64, tpu.core_type = #tpu.core_type<tc>, window_params = [{pipeline_mode = #tpu.pipeline_mode<synchronous>, transform_indices = @transform_0, window_bounds = array<i64: 4, 512>}, {pipeline_mode = #tpu.pipeline_mode<synchronous>, transform_indices = @transform_1, window_bounds = array<i64: 56, 56>}, {pipeline_mode = #tpu.pipeline_mode<synchronous>, transform_indices = @transform_2, window_bounds = array<i64: 512, 32>}, {pipeline_mode = #tpu.pipeline_mode<synchronous>, transform_indices = @transform_3, window_bounds = array<i64: 32, 544>}, {pipeline_mode = #tpu.pipeline_mode<synchronous>, transform_indices = @transform_4, window_bounds = array<i64: 4, 512>}]} {
    %c0 = arith.constant 0 : index
    %c0_0 = arith.constant 0 : index
    %0 = vector.load %arg1[%c0, %c0_0] : memref<4x512xf32, #tpu.memory_space<vmem>>, vector<4x512xf32>
    %c0_1 = arith.constant 0 : index
    %c0_2 = arith.constant 0 : index
    %1 = vector.load %arg3[%c0_1, %c0_2] : memref<512x32xf32, #tpu.memory_space<vmem>>, vector<512x32xf32>
    %c0_3 = arith.constant 0 : index
    %c0_4 = arith.constant 0 : index
    %2 = vector.load %arg3[%c0_3, %c0_4] : memref<512x32xf32, #tpu.memory_space<vmem>>, vector<320x32xf32>
    %c0_5 = arith.constant 0 : index
    %c0_6 = arith.constant 0 : index
    %3 = vector.load %arg4[%c0_5, %c0_6] : memref<32x544xf32, #tpu.memory_space<vmem>>, vector<32x512xf32>
    %c0_7 = arith.constant 0 : index
    %c0_8 = arith.constant 0 : index
    %4 = vector.load %arg4[%c0_7, %c0_8] : memref<32x544xf32, #tpu.memory_space<vmem>>, vector<32x320xf32>
    %c0_9 = arith.constant 0 : index
    %c512 = arith.constant 512 : index
    %5 = vector.load %arg4[%c0_9, %c512] : memref<32x544xf32, #tpu.memory_space<vmem>>, vector<32x32xf32>
    %c0_10 = arith.constant 0 : index
    %c0_11 = arith.constant 0 : index
    %6 = vector.load %arg2[%c0_10, %c0_11] : memref<56x56xf32, #tpu.memory_space<vmem>>, vector<16x28xf32>
    %c16 = arith.constant 16 : index
    %c0_12 = arith.constant 0 : index
    %7 = vector.load %arg2[%c16, %c0_12] : memref<56x56xf32, #tpu.memory_space<vmem>>, vector<8x4xf32>
    %c24 = arith.constant 24 : index
    %c0_13 = arith.constant 0 : index
    %8 = vector.load %arg2[%c24, %c0_13] : memref<56x56xf32, #tpu.memory_space<vmem>>, vector<8x56xf32>
    %c32 = arith.constant 32 : index
    %c0_14 = arith.constant 0 : index
    %9 = vector.load %arg2[%c32, %c0_14] : memref<56x56xf32, #tpu.memory_space<vmem>>, vector<4x8xf32>
    %c40 = arith.constant 40 : index
    %c0_15 = arith.constant 0 : index
    %10 = vector.load %arg2[%c40, %c0_15] : memref<56x56xf32, #tpu.memory_space<vmem>>, vector<4x28xf32>
    %c48 = arith.constant 48 : index
    %c0_16 = arith.constant 0 : index
    %11 = vector.load %arg2[%c48, %c0_16] : memref<56x56xf32, #tpu.memory_space<vmem>>, vector<8x14xf32>
    %12 = vector.extract_strided_slice %11 {offsets = [0, 0], sizes = [8, 1], strides = [1, 1]} : vector<8x14xf32> to vector<8x1xf32>
    %13 = vector.extract_strided_slice %11 {offsets = [0, 1], sizes = [8, 1], strides = [1, 1]} : vector<8x14xf32> to vector<8x1xf32>
    %14 = vector.extract_strided_slice %11 {offsets = [0, 2], sizes = [8, 1], strides = [1, 1]} : vector<8x14xf32> to vector<8x1xf32>
    %15 = vector.extract_strided_slice %11 {offsets = [0, 3], sizes = [8, 1], strides = [1, 1]} : vector<8x14xf32> to vector<8x1xf32>
    %16 = vector.extract_strided_slice %11 {offsets = [0, 4], sizes = [8, 1], strides = [1, 1]} : vector<8x14xf32> to vector<8x1xf32>
    %17 = vector.extract_strided_slice %11 {offsets = [0, 5], sizes = [8, 1], strides = [1, 1]} : vector<8x14xf32> to vector<8x1xf32>
    %18 = vector.extract_strided_slice %11 {offsets = [0, 6], sizes = [4, 1], strides = [1, 1]} : vector<8x14xf32> to vector<4x1xf32>
    %19 = vector.extract_strided_slice %11 {offsets = [0, 7], sizes = [4, 1], strides = [1, 1]} : vector<8x14xf32> to vector<4x1xf32>
    %20 = vector.extract_strided_slice %11 {offsets = [0, 8], sizes = [4, 1], strides = [1, 1]} : vector<8x14xf32> to vector<4x1xf32>
    %21 = vector.extract_strided_slice %11 {offsets = [0, 9], sizes = [4, 1], strides = [1, 1]} : vector<8x14xf32> to vector<4x1xf32>
    %22 = vector.extract_strided_slice %11 {offsets = [0, 10], sizes = [4, 1], strides = [1, 1]} : vector<8x14xf32> to vector<4x1xf32>
    %23 = vector.extract_strided_slice %11 {offsets = [0, 11], sizes = [4, 1], strides = [1, 1]} : vector<8x14xf32> to vector<4x1xf32>
    %24 = vector.extract_strided_slice %11 {offsets = [0, 12], sizes = [8, 1], strides = [1, 1]} : vector<8x14xf32> to vector<8x1xf32>
    %25 = vector.extract_strided_slice %11 {offsets = [0, 13], sizes = [8, 1], strides = [1, 1]} : vector<8x14xf32> to vector<8x1xf32>
    %cst = arith.constant dense<0.000000e+00> : vector<512xf32>
    %26 = vector.multi_reduction <add>, %0, %cst [0] : vector<4x512xf32> to vector<512xf32>
    %27 = vector.shape_cast %26 : vector<512xf32> to vector<1x512xf32>
    %28 = arith.mulf %0, %0 : vector<4x512xf32>
    %cst_17 = arith.constant dense<0.000000e+00> : vector<512xf32>
    %29 = vector.multi_reduction <add>, %28, %cst_17 [0] : vector<4x512xf32> to vector<512xf32>
    %30 = vector.shape_cast %29 : vector<512xf32> to vector<1x512xf32>
    %31 = tpu.concatenate %27, %30 in 0 : vector<1x512xf32>, vector<1x512xf32> -> vector<2x512xf32>
    %cst_18 = arith.constant dense<0.000000e+00> : vector<2x32xf32>
    %32 = tpu.matmul %31, %1, %cst_18 {dimension_numbers = #tpu.dot_dimension_numbers<[1], [0], [0], [1], [0, 0, 1, 1], [], []>} : vector<2x512xf32>, vector<512x32xf32>, vector<2x32xf32> -> vector<2x32xf32>
    %cst_19 = arith.constant dense<0.000000e+00> : vector<2x32xf32>
    %33 = tpu.matmul %32, %5, %cst_19 {dimension_numbers = #tpu.dot_dimension_numbers<[1], [0], [0], [1], [0, 0, 1, 1], [], []>} : vector<2x32xf32>, vector<32x32xf32>, vector<2x32xf32> -> vector<2x32xf32>
    %cst_20 = arith.constant 9.765625E-4 : f32
    %34 = vector.broadcast %cst_20 : f32 to vector<2x32xf32>
    %35 = arith.mulf %33, %34 : vector<2x32xf32>
    %36 = vector.extract_strided_slice %35 {offsets = [0, 0], sizes = [1, 32], strides = [1, 1]} : vector<2x32xf32> to vector<1x32xf32>
    %37 = vector.extract_strided_slice %35 {offsets = [1, 0], sizes = [1, 32], strides = [1, 1]} : vector<2x32xf32> to vector<1x32xf32>
    %38 = arith.mulf %36, %36 : vector<1x32xf32>
    %39 = arith.subf %37, %38 : vector<1x32xf32>
    %cst_21 = arith.constant 9.99999997E-7 : f32
    %40 = vector.broadcast %cst_21 : f32 to vector<1x32xf32>
    %41 = arith.addf %39, %40 : vector<1x32xf32>
    %42 = math.rsqrt %41 : vector<1x32xf32>
    %43 = tpu.concatenate %36, %42 in 0 : vector<1x32xf32>, vector<1x32xf32> -> vector<2x32xf32>
    %cst_22 = arith.constant dense<0.000000e+00> : vector<2x512xf32>
    %44 = tpu.matmul %43, %3, %cst_22 {dimension_numbers = #tpu.dot_dimension_numbers<[1], [0], [0], [1], [0, 0, 1, 1], [], []>} : vector<2x32xf32>, vector<32x512xf32>, vector<2x512xf32> -> vector<2x512xf32>
    %45 = vector.extract_strided_slice %44 {offsets = [0, 0], sizes = [1, 512], strides = [1, 1]} : vector<2x512xf32> to vector<1x512xf32>
    %46 = vector.broadcast %45 : vector<1x512xf32> to vector<4x512xf32>
    %47 = arith.subf %0, %46 : vector<4x512xf32>
    %48 = vector.extract_strided_slice %44 {offsets = [1, 0], sizes = [1, 512], strides = [1, 1]} : vector<2x512xf32> to vector<1x512xf32>
    %49 = vector.broadcast %48 : vector<1x512xf32> to vector<4x512xf32>
    %50 = arith.mulf %47, %49 : vector<4x512xf32>
    %51 = vector.broadcast %22 : vector<4x1xf32> to vector<4x512xf32>
    %52 = arith.mulf %50, %51 : vector<4x512xf32>
    %53 = vector.broadcast %23 : vector<4x1xf32> to vector<4x512xf32>
    %54 = arith.addf %52, %53 : vector<4x512xf32>
    %55 = vector.extract_strided_slice %54 {offsets = [0, 0], sizes = [4, 320], strides = [1, 1]} : vector<4x512xf32> to vector<4x320xf32>
    %56 = vector.extract_strided_slice %54 {offsets = [0, 32], sizes = [4, 320], strides = [1, 1]} : vector<4x512xf32> to vector<4x320xf32>
    %57 = vector.extract_strided_slice %54 {offsets = [0, 64], sizes = [4, 320], strides = [1, 1]} : vector<4x512xf32> to vector<4x320xf32>
    %58 = vector.extract_strided_slice %54 {offsets = [0, 96], sizes = [4, 320], strides = [1, 1]} : vector<4x512xf32> to vector<4x320xf32>
    %59 = vector.extract_strided_slice %54 {offsets = [0, 128], sizes = [4, 320], strides = [1, 1]} : vector<4x512xf32> to vector<4x320xf32>
    %60 = vector.extract_strided_slice %54 {offsets = [0, 160], sizes = [4, 320], strides = [1, 1]} : vector<4x512xf32> to vector<4x320xf32>
    %61 = vector.extract_strided_slice %54 {offsets = [0, 192], sizes = [4, 320], strides = [1, 1]} : vector<4x512xf32> to vector<4x320xf32>
    %62 = tpu.concatenate %55, %56, %57, %58, %59, %60, %61 in 0 : vector<4x320xf32>, vector<4x320xf32>, vector<4x320xf32>, vector<4x320xf32>, vector<4x320xf32>, vector<4x320xf32>, vector<4x320xf32> -> vector<28x320xf32>
    %cst_23 = arith.constant dense<0.000000e+00> : vector<16x320xf32>
    %63 = tpu.matmul %6, %62, %cst_23 {dimension_numbers = #tpu.dot_dimension_numbers<[1], [0], [0], [1], [0, 0, 1, 1], [], []>} : vector<16x28xf32>, vector<28x320xf32>, vector<16x320xf32> -> vector<16x320xf32>
    %64 = vector.extract_strided_slice %63 {offsets = [0, 0], sizes = [8, 320], strides = [1, 1]} : vector<16x320xf32> to vector<8x320xf32>
    %65 = vector.extract_strided_slice %63 {offsets = [8, 0], sizes = [8, 320], strides = [1, 1]} : vector<16x320xf32> to vector<8x320xf32>
    %66 = vector.extract_strided_slice %65 {offsets = [0, 288], sizes = [8, 32], strides = [1, 1]} : vector<8x320xf32> to vector<8x32xf32>
    %67 = vector.extract_strided_slice %65 {offsets = [0, 256], sizes = [8, 32], strides = [1, 1]} : vector<8x320xf32> to vector<8x32xf32>
    %68 = vector.extract_strided_slice %65 {offsets = [0, 224], sizes = [8, 32], strides = [1, 1]} : vector<8x320xf32> to vector<8x32xf32>
    %69 = vector.extract_strided_slice %65 {offsets = [0, 192], sizes = [8, 32], strides = [1, 1]} : vector<8x320xf32> to vector<8x32xf32>
    %70 = vector.extract_strided_slice %65 {offsets = [0, 160], sizes = [8, 32], strides = [1, 1]} : vector<8x320xf32> to vector<8x32xf32>
    %71 = vector.extract_strided_slice %65 {offsets = [0, 128], sizes = [8, 32], strides = [1, 1]} : vector<8x320xf32> to vector<8x32xf32>
    %72 = vector.extract_strided_slice %65 {offsets = [0, 96], sizes = [8, 32], strides = [1, 1]} : vector<8x320xf32> to vector<8x32xf32>
    %73 = vector.extract_strided_slice %65 {offsets = [0, 64], sizes = [8, 32], strides = [1, 1]} : vector<8x320xf32> to vector<8x32xf32>
    %74 = vector.extract_strided_slice %65 {offsets = [0, 32], sizes = [8, 32], strides = [1, 1]} : vector<8x320xf32> to vector<8x32xf32>
    %75 = vector.extract_strided_slice %65 {offsets = [0, 0], sizes = [8, 32], strides = [1, 1]} : vector<8x320xf32> to vector<8x32xf32>
    %76 = tpu.concatenate %66, %67, %68, %69, %70, %71, %72, %73, %74, %75 in 1 : vector<8x32xf32>, vector<8x32xf32>, vector<8x32xf32>, vector<8x32xf32>, vector<8x32xf32>, vector<8x32xf32>, vector<8x32xf32>, vector<8x32xf32>, vector<8x32xf32>, vector<8x32xf32> -> vector<8x320xf32>
    %77 = vector.extract_strided_slice %64 {offsets = [0, 0], sizes = [2, 320], strides = [1, 1]} : vector<8x320xf32> to vector<2x320xf32>
    %78 = vector.extract_strided_slice %76 {offsets = [0, 0], sizes = [2, 320], strides = [1, 1]} : vector<8x320xf32> to vector<2x320xf32>
    %79 = vector.extract_strided_slice %64 {offsets = [2, 0], sizes = [2, 320], strides = [1, 1]} : vector<8x320xf32> to vector<2x320xf32>
    %80 = vector.extract_strided_slice %76 {offsets = [2, 0], sizes = [2, 320], strides = [1, 1]} : vector<8x320xf32> to vector<2x320xf32>
    %81 = tpu.concatenate %77, %78, %79, %80 in 0 : vector<2x320xf32>, vector<2x320xf32>, vector<2x320xf32>, vector<2x320xf32> -> vector<8x320xf32>
    %82 = vector.broadcast %25 : vector<8x1xf32> to vector<8x320xf32>
    %83 = arith.addf %81, %82 : vector<8x320xf32>
    %84 = vector.extract_strided_slice %64 {offsets = [4, 0], sizes = [2, 320], strides = [1, 1]} : vector<8x320xf32> to vector<2x320xf32>
    %85 = vector.extract_strided_slice %76 {offsets = [4, 0], sizes = [2, 320], strides = [1, 1]} : vector<8x320xf32> to vector<2x320xf32>
    %86 = tpu.concatenate %84, %85 in 0 : vector<2x320xf32>, vector<2x320xf32> -> vector<4x320xf32>
    %87 = vector.extract_strided_slice %64 {offsets = [6, 0], sizes = [2, 320], strides = [1, 1]} : vector<8x320xf32> to vector<2x320xf32>
    %88 = vector.extract_strided_slice %76 {offsets = [6, 0], sizes = [2, 320], strides = [1, 1]} : vector<8x320xf32> to vector<2x320xf32>
    %89 = tpu.concatenate %87, %88 in 0 : vector<2x320xf32>, vector<2x320xf32> -> vector<4x320xf32>
    %cst_24 = arith.constant 0.000000e+00 : f32
    %90 = vector.broadcast %cst_24 : f32 to vector<4x32xf32>
    %91 = vector.extract_strided_slice %86 {offsets = [0, 0], sizes = [4, 32], strides = [1, 1]} : vector<4x320xf32> to vector<4x32xf32>
    %92 = vector.extract_strided_slice %89 {offsets = [0, 0], sizes = [4, 32], strides = [1, 1]} : vector<4x320xf32> to vector<4x32xf32>
    %93 = tpu.concatenate %90, %90 in 0 : vector<4x32xf32>, vector<4x32xf32> -> vector<8x32xf32>
    %94 = vector.extract_strided_slice %83 {offsets = [0, 0], sizes = [8, 32], strides = [1, 1]} : vector<8x320xf32> to vector<8x32xf32>
    %95 = vector.broadcast %24 : vector<8x1xf32> to vector<8x32xf32>
    %96 = arith.mulf %95, %93 : vector<8x32xf32>
    %97 = arith.addf %94, %96 : vector<8x32xf32>
    %98 = arith.negf %97 : vector<8x32xf32>
    %99 = math.exp %98 : vector<8x32xf32>
    %cst_25 = arith.constant 1.000000e+00 : f32
    %100 = vector.broadcast %cst_25 : f32 to vector<8x32xf32>
    %101 = arith.addf %100, %99 : vector<8x32xf32>
    %102 = arith.divf %100, %101 : vector<8x32xf32>
    %103 = vector.extract_strided_slice %102 {offsets = [0, 0], sizes = [4, 32], strides = [1, 1]} : vector<8x32xf32> to vector<4x32xf32>
    %104 = vector.extract_strided_slice %102 {offsets = [4, 0], sizes = [4, 32], strides = [1, 1]} : vector<8x32xf32> to vector<4x32xf32>
    %105 = arith.subf %90, %91 : vector<4x32xf32>
    %106 = arith.mulf %103, %105 : vector<4x32xf32>
    %107 = arith.addf %91, %106 : vector<4x32xf32>
    %108 = arith.subf %107, %92 : vector<4x32xf32>
    %109 = arith.mulf %104, %108 : vector<4x32xf32>
    %110 = arith.addf %92, %109 : vector<4x32xf32>
    %111 = vector.extract_strided_slice %86 {offsets = [0, 32], sizes = [4, 32], strides = [1, 1]} : vector<4x320xf32> to vector<4x32xf32>
    %112 = vector.extract_strided_slice %89 {offsets = [0, 32], sizes = [4, 32], strides = [1, 1]} : vector<4x320xf32> to vector<4x32xf32>
    %113 = tpu.concatenate %107, %107 in 0 : vector<4x32xf32>, vector<4x32xf32> -> vector<8x32xf32>
    %114 = vector.extract_strided_slice %83 {offsets = [0, 32], sizes = [8, 32], strides = [1, 1]} : vector<8x320xf32> to vector<8x32xf32>
    %115 = vector.broadcast %24 : vector<8x1xf32> to vector<8x32xf32>
    %116 = arith.mulf %115, %113 : vector<8x32xf32>
    %117 = arith.addf %114, %116 : vector<8x32xf32>
    %118 = arith.negf %117 : vector<8x32xf32>
    %119 = math.exp %118 : vector<8x32xf32>
    %cst_26 = arith.constant 1.000000e+00 : f32
    %120 = vector.broadcast %cst_26 : f32 to vector<8x32xf32>
    %121 = arith.addf %120, %119 : vector<8x32xf32>
    %122 = arith.divf %120, %121 : vector<8x32xf32>
    %123 = vector.extract_strided_slice %122 {offsets = [0, 0], sizes = [4, 32], strides = [1, 1]} : vector<8x32xf32> to vector<4x32xf32>
    %124 = vector.extract_strided_slice %122 {offsets = [4, 0], sizes = [4, 32], strides = [1, 1]} : vector<8x32xf32> to vector<4x32xf32>
    %125 = arith.subf %107, %111 : vector<4x32xf32>
    %126 = arith.mulf %123, %125 : vector<4x32xf32>
    %127 = arith.addf %111, %126 : vector<4x32xf32>
    %128 = arith.subf %127, %112 : vector<4x32xf32>
    %129 = arith.mulf %124, %128 : vector<4x32xf32>
    %130 = arith.addf %112, %129 : vector<4x32xf32>
    %131 = vector.extract_strided_slice %86 {offsets = [0, 64], sizes = [4, 32], strides = [1, 1]} : vector<4x320xf32> to vector<4x32xf32>
    %132 = vector.extract_strided_slice %89 {offsets = [0, 64], sizes = [4, 32], strides = [1, 1]} : vector<4x320xf32> to vector<4x32xf32>
    %133 = tpu.concatenate %127, %127 in 0 : vector<4x32xf32>, vector<4x32xf32> -> vector<8x32xf32>
    %134 = vector.extract_strided_slice %83 {offsets = [0, 64], sizes = [8, 32], strides = [1, 1]} : vector<8x320xf32> to vector<8x32xf32>
    %135 = vector.broadcast %24 : vector<8x1xf32> to vector<8x32xf32>
    %136 = arith.mulf %135, %133 : vector<8x32xf32>
    %137 = arith.addf %134, %136 : vector<8x32xf32>
    %138 = arith.negf %137 : vector<8x32xf32>
    %139 = math.exp %138 : vector<8x32xf32>
    %cst_27 = arith.constant 1.000000e+00 : f32
    %140 = vector.broadcast %cst_27 : f32 to vector<8x32xf32>
    %141 = arith.addf %140, %139 : vector<8x32xf32>
    %142 = arith.divf %140, %141 : vector<8x32xf32>
    %143 = vector.extract_strided_slice %142 {offsets = [0, 0], sizes = [4, 32], strides = [1, 1]} : vector<8x32xf32> to vector<4x32xf32>
    %144 = vector.extract_strided_slice %142 {offsets = [4, 0], sizes = [4, 32], strides = [1, 1]} : vector<8x32xf32> to vector<4x32xf32>
    %145 = arith.subf %127, %131 : vector<4x32xf32>
    %146 = arith.mulf %143, %145 : vector<4x32xf32>
    %147 = arith.addf %131, %146 : vector<4x32xf32>
    %148 = arith.subf %147, %132 : vector<4x32xf32>
    %149 = arith.mulf %144, %148 : vector<4x32xf32>
    %150 = arith.addf %132, %149 : vector<4x32xf32>
    %151 = vector.extract_strided_slice %86 {offsets = [0, 96], sizes = [4, 32], strides = [1, 1]} : vector<4x320xf32> to vector<4x32xf32>
    %152 = vector.extract_strided_slice %89 {offsets = [0, 96], sizes = [4, 32], strides = [1, 1]} : vector<4x320xf32> to vector<4x32xf32>
    %153 = tpu.concatenate %147, %147 in 0 : vector<4x32xf32>, vector<4x32xf32> -> vector<8x32xf32>
    %154 = vector.extract_strided_slice %83 {offsets = [0, 96], sizes = [8, 32], strides = [1, 1]} : vector<8x320xf32> to vector<8x32xf32>
    %155 = vector.broadcast %24 : vector<8x1xf32> to vector<8x32xf32>
    %156 = arith.mulf %155, %153 : vector<8x32xf32>
    %157 = arith.addf %154, %156 : vector<8x32xf32>
    %158 = arith.negf %157 : vector<8x32xf32>
    %159 = math.exp %158 : vector<8x32xf32>
    %cst_28 = arith.constant 1.000000e+00 : f32
    %160 = vector.broadcast %cst_28 : f32 to vector<8x32xf32>
    %161 = arith.addf %160, %159 : vector<8x32xf32>
    %162 = arith.divf %160, %161 : vector<8x32xf32>
    %163 = vector.extract_strided_slice %162 {offsets = [0, 0], sizes = [4, 32], strides = [1, 1]} : vector<8x32xf32> to vector<4x32xf32>
    %164 = vector.extract_strided_slice %162 {offsets = [4, 0], sizes = [4, 32], strides = [1, 1]} : vector<8x32xf32> to vector<4x32xf32>
    %165 = arith.subf %147, %151 : vector<4x32xf32>
    %166 = arith.mulf %163, %165 : vector<4x32xf32>
    %167 = arith.addf %151, %166 : vector<4x32xf32>
    %168 = arith.subf %167, %152 : vector<4x32xf32>
    %169 = arith.mulf %164, %168 : vector<4x32xf32>
    %170 = arith.addf %152, %169 : vector<4x32xf32>
    %171 = vector.extract_strided_slice %86 {offsets = [0, 128], sizes = [4, 32], strides = [1, 1]} : vector<4x320xf32> to vector<4x32xf32>
    %172 = vector.extract_strided_slice %89 {offsets = [0, 128], sizes = [4, 32], strides = [1, 1]} : vector<4x320xf32> to vector<4x32xf32>
    %173 = tpu.concatenate %167, %167 in 0 : vector<4x32xf32>, vector<4x32xf32> -> vector<8x32xf32>
    %174 = vector.extract_strided_slice %83 {offsets = [0, 128], sizes = [8, 32], strides = [1, 1]} : vector<8x320xf32> to vector<8x32xf32>
    %175 = vector.broadcast %24 : vector<8x1xf32> to vector<8x32xf32>
    %176 = arith.mulf %175, %173 : vector<8x32xf32>
    %177 = arith.addf %174, %176 : vector<8x32xf32>
    %178 = arith.negf %177 : vector<8x32xf32>
    %179 = math.exp %178 : vector<8x32xf32>
    %cst_29 = arith.constant 1.000000e+00 : f32
    %180 = vector.broadcast %cst_29 : f32 to vector<8x32xf32>
    %181 = arith.addf %180, %179 : vector<8x32xf32>
    %182 = arith.divf %180, %181 : vector<8x32xf32>
    %183 = vector.extract_strided_slice %182 {offsets = [0, 0], sizes = [4, 32], strides = [1, 1]} : vector<8x32xf32> to vector<4x32xf32>
    %184 = vector.extract_strided_slice %182 {offsets = [4, 0], sizes = [4, 32], strides = [1, 1]} : vector<8x32xf32> to vector<4x32xf32>
    %185 = arith.subf %167, %171 : vector<4x32xf32>
    %186 = arith.mulf %183, %185 : vector<4x32xf32>
    %187 = arith.addf %171, %186 : vector<4x32xf32>
    %188 = arith.subf %187, %172 : vector<4x32xf32>
    %189 = arith.mulf %184, %188 : vector<4x32xf32>
    %190 = arith.addf %172, %189 : vector<4x32xf32>
    %191 = vector.extract_strided_slice %86 {offsets = [0, 160], sizes = [4, 32], strides = [1, 1]} : vector<4x320xf32> to vector<4x32xf32>
    %192 = vector.extract_strided_slice %89 {offsets = [0, 160], sizes = [4, 32], strides = [1, 1]} : vector<4x320xf32> to vector<4x32xf32>
    %193 = tpu.concatenate %187, %187 in 0 : vector<4x32xf32>, vector<4x32xf32> -> vector<8x32xf32>
    %194 = vector.extract_strided_slice %83 {offsets = [0, 160], sizes = [8, 32], strides = [1, 1]} : vector<8x320xf32> to vector<8x32xf32>
    %195 = vector.broadcast %24 : vector<8x1xf32> to vector<8x32xf32>
    %196 = arith.mulf %195, %193 : vector<8x32xf32>
    %197 = arith.addf %194, %196 : vector<8x32xf32>
    %198 = arith.negf %197 : vector<8x32xf32>
    %199 = math.exp %198 : vector<8x32xf32>
    %cst_30 = arith.constant 1.000000e+00 : f32
    %200 = vector.broadcast %cst_30 : f32 to vector<8x32xf32>
    %201 = arith.addf %200, %199 : vector<8x32xf32>
    %202 = arith.divf %200, %201 : vector<8x32xf32>
    %203 = vector.extract_strided_slice %202 {offsets = [0, 0], sizes = [4, 32], strides = [1, 1]} : vector<8x32xf32> to vector<4x32xf32>
    %204 = vector.extract_strided_slice %202 {offsets = [4, 0], sizes = [4, 32], strides = [1, 1]} : vector<8x32xf32> to vector<4x32xf32>
    %205 = arith.subf %187, %191 : vector<4x32xf32>
    %206 = arith.mulf %203, %205 : vector<4x32xf32>
    %207 = arith.addf %191, %206 : vector<4x32xf32>
    %208 = arith.subf %207, %192 : vector<4x32xf32>
    %209 = arith.mulf %204, %208 : vector<4x32xf32>
    %210 = arith.addf %192, %209 : vector<4x32xf32>
    %211 = vector.extract_strided_slice %86 {offsets = [0, 192], sizes = [4, 32], strides = [1, 1]} : vector<4x320xf32> to vector<4x32xf32>
    %212 = vector.extract_strided_slice %89 {offsets = [0, 192], sizes = [4, 32], strides = [1, 1]} : vector<4x320xf32> to vector<4x32xf32>
    %213 = tpu.concatenate %207, %207 in 0 : vector<4x32xf32>, vector<4x32xf32> -> vector<8x32xf32>
    %214 = vector.extract_strided_slice %83 {offsets = [0, 192], sizes = [8, 32], strides = [1, 1]} : vector<8x320xf32> to vector<8x32xf32>
    %215 = vector.broadcast %24 : vector<8x1xf32> to vector<8x32xf32>
    %216 = arith.mulf %215, %213 : vector<8x32xf32>
    %217 = arith.addf %214, %216 : vector<8x32xf32>
    %218 = arith.negf %217 : vector<8x32xf32>
    %219 = math.exp %218 : vector<8x32xf32>
    %cst_31 = arith.constant 1.000000e+00 : f32
    %220 = vector.broadcast %cst_31 : f32 to vector<8x32xf32>
    %221 = arith.addf %220, %219 : vector<8x32xf32>
    %222 = arith.divf %220, %221 : vector<8x32xf32>
    %223 = vector.extract_strided_slice %222 {offsets = [0, 0], sizes = [4, 32], strides = [1, 1]} : vector<8x32xf32> to vector<4x32xf32>
    %224 = vector.extract_strided_slice %222 {offsets = [4, 0], sizes = [4, 32], strides = [1, 1]} : vector<8x32xf32> to vector<4x32xf32>
    %225 = arith.subf %207, %211 : vector<4x32xf32>
    %226 = arith.mulf %223, %225 : vector<4x32xf32>
    %227 = arith.addf %211, %226 : vector<4x32xf32>
    %228 = arith.subf %227, %212 : vector<4x32xf32>
    %229 = arith.mulf %224, %228 : vector<4x32xf32>
    %230 = arith.addf %212, %229 : vector<4x32xf32>
    %231 = vector.extract_strided_slice %86 {offsets = [0, 224], sizes = [4, 32], strides = [1, 1]} : vector<4x320xf32> to vector<4x32xf32>
    %232 = vector.extract_strided_slice %89 {offsets = [0, 224], sizes = [4, 32], strides = [1, 1]} : vector<4x320xf32> to vector<4x32xf32>
    %233 = tpu.concatenate %227, %227 in 0 : vector<4x32xf32>, vector<4x32xf32> -> vector<8x32xf32>
    %234 = vector.extract_strided_slice %83 {offsets = [0, 224], sizes = [8, 32], strides = [1, 1]} : vector<8x320xf32> to vector<8x32xf32>
    %235 = vector.broadcast %24 : vector<8x1xf32> to vector<8x32xf32>
    %236 = arith.mulf %235, %233 : vector<8x32xf32>
    %237 = arith.addf %234, %236 : vector<8x32xf32>
    %238 = arith.negf %237 : vector<8x32xf32>
    %239 = math.exp %238 : vector<8x32xf32>
    %cst_32 = arith.constant 1.000000e+00 : f32
    %240 = vector.broadcast %cst_32 : f32 to vector<8x32xf32>
    %241 = arith.addf %240, %239 : vector<8x32xf32>
    %242 = arith.divf %240, %241 : vector<8x32xf32>
    %243 = vector.extract_strided_slice %242 {offsets = [0, 0], sizes = [4, 32], strides = [1, 1]} : vector<8x32xf32> to vector<4x32xf32>
    %244 = vector.extract_strided_slice %242 {offsets = [4, 0], sizes = [4, 32], strides = [1, 1]} : vector<8x32xf32> to vector<4x32xf32>
    %245 = arith.subf %227, %231 : vector<4x32xf32>
    %246 = arith.mulf %243, %245 : vector<4x32xf32>
    %247 = arith.addf %231, %246 : vector<4x32xf32>
    %248 = arith.subf %247, %232 : vector<4x32xf32>
    %249 = arith.mulf %244, %248 : vector<4x32xf32>
    %250 = arith.addf %232, %249 : vector<4x32xf32>
    %251 = vector.extract_strided_slice %86 {offsets = [0, 256], sizes = [4, 32], strides = [1, 1]} : vector<4x320xf32> to vector<4x32xf32>
    %252 = vector.extract_strided_slice %89 {offsets = [0, 256], sizes = [4, 32], strides = [1, 1]} : vector<4x320xf32> to vector<4x32xf32>
    %253 = tpu.concatenate %247, %247 in 0 : vector<4x32xf32>, vector<4x32xf32> -> vector<8x32xf32>
    %254 = vector.extract_strided_slice %83 {offsets = [0, 256], sizes = [8, 32], strides = [1, 1]} : vector<8x320xf32> to vector<8x32xf32>
    %255 = vector.broadcast %24 : vector<8x1xf32> to vector<8x32xf32>
    %256 = arith.mulf %255, %253 : vector<8x32xf32>
    %257 = arith.addf %254, %256 : vector<8x32xf32>
    %258 = arith.negf %257 : vector<8x32xf32>
    %259 = math.exp %258 : vector<8x32xf32>
    %cst_33 = arith.constant 1.000000e+00 : f32
    %260 = vector.broadcast %cst_33 : f32 to vector<8x32xf32>
    %261 = arith.addf %260, %259 : vector<8x32xf32>
    %262 = arith.divf %260, %261 : vector<8x32xf32>
    %263 = vector.extract_strided_slice %262 {offsets = [0, 0], sizes = [4, 32], strides = [1, 1]} : vector<8x32xf32> to vector<4x32xf32>
    %264 = vector.extract_strided_slice %262 {offsets = [4, 0], sizes = [4, 32], strides = [1, 1]} : vector<8x32xf32> to vector<4x32xf32>
    %265 = arith.subf %247, %251 : vector<4x32xf32>
    %266 = arith.mulf %263, %265 : vector<4x32xf32>
    %267 = arith.addf %251, %266 : vector<4x32xf32>
    %268 = arith.subf %267, %252 : vector<4x32xf32>
    %269 = arith.mulf %264, %268 : vector<4x32xf32>
    %270 = arith.addf %252, %269 : vector<4x32xf32>
    %271 = vector.extract_strided_slice %86 {offsets = [0, 288], sizes = [4, 32], strides = [1, 1]} : vector<4x320xf32> to vector<4x32xf32>
    %272 = vector.extract_strided_slice %89 {offsets = [0, 288], sizes = [4, 32], strides = [1, 1]} : vector<4x320xf32> to vector<4x32xf32>
    %273 = tpu.concatenate %267, %267 in 0 : vector<4x32xf32>, vector<4x32xf32> -> vector<8x32xf32>
    %274 = vector.extract_strided_slice %83 {offsets = [0, 288], sizes = [8, 32], strides = [1, 1]} : vector<8x320xf32> to vector<8x32xf32>
    %275 = vector.broadcast %24 : vector<8x1xf32> to vector<8x32xf32>
    %276 = arith.mulf %275, %273 : vector<8x32xf32>
    %277 = arith.addf %274, %276 : vector<8x32xf32>
    %278 = arith.negf %277 : vector<8x32xf32>
    %279 = math.exp %278 : vector<8x32xf32>
    %cst_34 = arith.constant 1.000000e+00 : f32
    %280 = vector.broadcast %cst_34 : f32 to vector<8x32xf32>
    %281 = arith.addf %280, %279 : vector<8x32xf32>
    %282 = arith.divf %280, %281 : vector<8x32xf32>
    %283 = vector.extract_strided_slice %282 {offsets = [0, 0], sizes = [4, 32], strides = [1, 1]} : vector<8x32xf32> to vector<4x32xf32>
    %284 = vector.extract_strided_slice %282 {offsets = [4, 0], sizes = [4, 32], strides = [1, 1]} : vector<8x32xf32> to vector<4x32xf32>
    %285 = arith.subf %267, %271 : vector<4x32xf32>
    %286 = arith.mulf %283, %285 : vector<4x32xf32>
    %287 = arith.addf %271, %286 : vector<4x32xf32>
    %288 = arith.subf %287, %272 : vector<4x32xf32>
    %289 = arith.mulf %284, %288 : vector<4x32xf32>
    %290 = arith.addf %272, %289 : vector<4x32xf32>
    %291 = vector.extract_strided_slice %110 {offsets = [0, 0], sizes = [2, 32], strides = [1, 1]} : vector<4x32xf32> to vector<2x32xf32>
    %292 = vector.extract_strided_slice %130 {offsets = [0, 0], sizes = [2, 32], strides = [1, 1]} : vector<4x32xf32> to vector<2x32xf32>
    %293 = vector.extract_strided_slice %150 {offsets = [0, 0], sizes = [2, 32], strides = [1, 1]} : vector<4x32xf32> to vector<2x32xf32>
    %294 = vector.extract_strided_slice %170 {offsets = [0, 0], sizes = [2, 32], strides = [1, 1]} : vector<4x32xf32> to vector<2x32xf32>
    %295 = vector.extract_strided_slice %190 {offsets = [0, 0], sizes = [2, 32], strides = [1, 1]} : vector<4x32xf32> to vector<2x32xf32>
    %296 = vector.extract_strided_slice %210 {offsets = [0, 0], sizes = [2, 32], strides = [1, 1]} : vector<4x32xf32> to vector<2x32xf32>
    %297 = vector.extract_strided_slice %230 {offsets = [0, 0], sizes = [2, 32], strides = [1, 1]} : vector<4x32xf32> to vector<2x32xf32>
    %298 = vector.extract_strided_slice %250 {offsets = [0, 0], sizes = [2, 32], strides = [1, 1]} : vector<4x32xf32> to vector<2x32xf32>
    %299 = vector.extract_strided_slice %270 {offsets = [0, 0], sizes = [2, 32], strides = [1, 1]} : vector<4x32xf32> to vector<2x32xf32>
    %300 = vector.extract_strided_slice %290 {offsets = [0, 0], sizes = [2, 32], strides = [1, 1]} : vector<4x32xf32> to vector<2x32xf32>
    %301 = tpu.concatenate %291, %292, %293, %294, %295, %296, %297, %298, %299, %300 in 1 : vector<2x32xf32>, vector<2x32xf32>, vector<2x32xf32>, vector<2x32xf32>, vector<2x32xf32>, vector<2x32xf32>, vector<2x32xf32>, vector<2x32xf32>, vector<2x32xf32>, vector<2x32xf32> -> vector<2x320xf32>
    %302 = vector.extract_strided_slice %290 {offsets = [2, 0], sizes = [2, 32], strides = [1, 1]} : vector<4x32xf32> to vector<2x32xf32>
    %303 = vector.extract_strided_slice %270 {offsets = [2, 0], sizes = [2, 32], strides = [1, 1]} : vector<4x32xf32> to vector<2x32xf32>
    %304 = vector.extract_strided_slice %250 {offsets = [2, 0], sizes = [2, 32], strides = [1, 1]} : vector<4x32xf32> to vector<2x32xf32>
    %305 = vector.extract_strided_slice %230 {offsets = [2, 0], sizes = [2, 32], strides = [1, 1]} : vector<4x32xf32> to vector<2x32xf32>
    %306 = vector.extract_strided_slice %210 {offsets = [2, 0], sizes = [2, 32], strides = [1, 1]} : vector<4x32xf32> to vector<2x32xf32>
    %307 = vector.extract_strided_slice %190 {offsets = [2, 0], sizes = [2, 32], strides = [1, 1]} : vector<4x32xf32> to vector<2x32xf32>
    %308 = vector.extract_strided_slice %170 {offsets = [2, 0], sizes = [2, 32], strides = [1, 1]} : vector<4x32xf32> to vector<2x32xf32>
    %309 = vector.extract_strided_slice %150 {offsets = [2, 0], sizes = [2, 32], strides = [1, 1]} : vector<4x32xf32> to vector<2x32xf32>
    %310 = vector.extract_strided_slice %130 {offsets = [2, 0], sizes = [2, 32], strides = [1, 1]} : vector<4x32xf32> to vector<2x32xf32>
    %311 = vector.extract_strided_slice %110 {offsets = [2, 0], sizes = [2, 32], strides = [1, 1]} : vector<4x32xf32> to vector<2x32xf32>
    %312 = tpu.concatenate %302, %303, %304, %305, %306, %307, %308, %309, %310, %311 in 1 : vector<2x32xf32>, vector<2x32xf32>, vector<2x32xf32>, vector<2x32xf32>, vector<2x32xf32>, vector<2x32xf32>, vector<2x32xf32>, vector<2x32xf32>, vector<2x32xf32>, vector<2x32xf32> -> vector<2x320xf32>
    %313 = tpu.concatenate %301, %312 in 0 : vector<2x320xf32>, vector<2x320xf32> -> vector<4x320xf32>
    %cst_35 = arith.constant dense<0.000000e+00> : vector<8x320xf32>
    %314 = tpu.matmul %7, %313, %cst_35 {dimension_numbers = #tpu.dot_dimension_numbers<[1], [0], [0], [1], [0, 0, 1, 1], [], []>} : vector<8x4xf32>, vector<4x320xf32>, vector<8x320xf32> -> vector<8x320xf32>
    %315 = vector.broadcast %12 : vector<8x1xf32> to vector<8x320xf32>
    %316 = arith.addf %314, %315 : vector<8x320xf32>
    %cst_36 = arith.constant dense<0.000000e+00> : vector<320xf32>
    %317 = vector.multi_reduction <add>, %316, %cst_36 [0] : vector<8x320xf32> to vector<320xf32>
    %318 = vector.shape_cast %317 : vector<320xf32> to vector<1x320xf32>
    %319 = arith.mulf %316, %316 : vector<8x320xf32>
    %cst_37 = arith.constant dense<0.000000e+00> : vector<320xf32>
    %320 = vector.multi_reduction <add>, %319, %cst_37 [0] : vector<8x320xf32> to vector<320xf32>
    %321 = vector.shape_cast %320 : vector<320xf32> to vector<1x320xf32>
    %322 = tpu.concatenate %318, %321 in 0 : vector<1x320xf32>, vector<1x320xf32> -> vector<2x320xf32>
    %cst_38 = arith.constant dense<0.000000e+00> : vector<2x32xf32>
    %323 = tpu.matmul %322, %2, %cst_38 {dimension_numbers = #tpu.dot_dimension_numbers<[1], [0], [0], [1], [0, 0, 1, 1], [], []>} : vector<2x320xf32>, vector<320x32xf32>, vector<2x32xf32> -> vector<2x32xf32>
    %cst_39 = arith.constant 1.250000e-02 : f32
    %324 = vector.broadcast %cst_39 : f32 to vector<2x32xf32>
    %325 = arith.mulf %323, %324 : vector<2x32xf32>
    %326 = vector.extract_strided_slice %325 {offsets = [0, 0], sizes = [1, 32], strides = [1, 1]} : vector<2x32xf32> to vector<1x32xf32>
    %327 = vector.extract_strided_slice %325 {offsets = [1, 0], sizes = [1, 32], strides = [1, 1]} : vector<2x32xf32> to vector<1x32xf32>
    %328 = arith.mulf %326, %326 : vector<1x32xf32>
    %329 = arith.subf %327, %328 : vector<1x32xf32>
    %cst_40 = arith.constant 9.99999997E-7 : f32
    %330 = vector.broadcast %cst_40 : f32 to vector<1x32xf32>
    %331 = arith.addf %329, %330 : vector<1x32xf32>
    %332 = math.rsqrt %331 : vector<1x32xf32>
    %333 = tpu.concatenate %326, %332 in 0 : vector<1x32xf32>, vector<1x32xf32> -> vector<2x32xf32>
    %cst_41 = arith.constant dense<0.000000e+00> : vector<2x320xf32>
    %334 = tpu.matmul %333, %4, %cst_41 {dimension_numbers = #tpu.dot_dimension_numbers<[1], [0], [0], [1], [0, 0, 1, 1], [], []>} : vector<2x32xf32>, vector<32x320xf32>, vector<2x320xf32> -> vector<2x320xf32>
    %335 = vector.extract_strided_slice %334 {offsets = [0, 0], sizes = [1, 320], strides = [1, 1]} : vector<2x320xf32> to vector<1x320xf32>
    %336 = vector.broadcast %335 : vector<1x320xf32> to vector<8x320xf32>
    %337 = arith.subf %316, %336 : vector<8x320xf32>
    %338 = vector.extract_strided_slice %334 {offsets = [1, 0], sizes = [1, 320], strides = [1, 1]} : vector<2x320xf32> to vector<1x320xf32>
    %339 = vector.broadcast %338 : vector<1x320xf32> to vector<8x320xf32>
    %340 = arith.mulf %337, %339 : vector<8x320xf32>
    %341 = vector.broadcast %13 : vector<8x1xf32> to vector<8x320xf32>
    %342 = arith.mulf %340, %341 : vector<8x320xf32>
    %343 = vector.broadcast %14 : vector<8x1xf32> to vector<8x320xf32>
    %344 = arith.addf %342, %343 : vector<8x320xf32>
    %cst_42 = arith.constant 0.000000e+00 : f32
    %345 = vector.broadcast %cst_42 : f32 to vector<8x320xf32>
    %346 = arith.cmpf oge, %344, %345 : vector<8x320xf32>
    %cst_43 = arith.constant 2.500000e-01 : f32
    %347 = vector.broadcast %cst_43 : f32 to vector<8x320xf32>
    %348 = arith.mulf %347, %344 : vector<8x320xf32>
    %349 = arith.select %346, %344, %348 : vector<8x320xi1>, vector<8x320xf32>
    %cst_44 = arith.constant 0.000000e+00 : f32
    %350 = vector.broadcast %cst_44 : f32 to vector<8x96xf32>
    %351 = tpu.concatenate %350, %349, %350 in 1 : vector<8x96xf32>, vector<8x320xf32>, vector<8x96xf32> -> vector<8x512xf32>
    %352 = vector.extract_strided_slice %351 {offsets = [0, 0], sizes = [8, 320], strides = [1, 1]} : vector<8x512xf32> to vector<8x320xf32>
    %353 = vector.extract_strided_slice %351 {offsets = [0, 32], sizes = [8, 320], strides = [1, 1]} : vector<8x512xf32> to vector<8x320xf32>
    %354 = vector.extract_strided_slice %351 {offsets = [0, 64], sizes = [8, 320], strides = [1, 1]} : vector<8x512xf32> to vector<8x320xf32>
    %355 = vector.extract_strided_slice %351 {offsets = [0, 96], sizes = [8, 320], strides = [1, 1]} : vector<8x512xf32> to vector<8x320xf32>
    %356 = vector.extract_strided_slice %351 {offsets = [0, 128], sizes = [8, 320], strides = [1, 1]} : vector<8x512xf32> to vector<8x320xf32>
    %357 = vector.extract_strided_slice %351 {offsets = [0, 160], sizes = [8, 320], strides = [1, 1]} : vector<8x512xf32> to vector<8x320xf32>
    %358 = vector.extract_strided_slice %351 {offsets = [0, 192], sizes = [8, 320], strides = [1, 1]} : vector<8x512xf32> to vector<8x320xf32>
    %359 = tpu.concatenate %352, %353, %354, %355, %356, %357, %358 in 0 : vector<8x320xf32>, vector<8x320xf32>, vector<8x320xf32>, vector<8x320xf32>, vector<8x320xf32>, vector<8x320xf32>, vector<8x320xf32> -> vector<56x320xf32>
    %cst_45 = arith.constant dense<0.000000e+00> : vector<8x320xf32>
    %360 = tpu.matmul %8, %359, %cst_45 {dimension_numbers = #tpu.dot_dimension_numbers<[1], [0], [0], [1], [0, 0, 1, 1], [], []>} : vector<8x56xf32>, vector<56x320xf32>, vector<8x320xf32> -> vector<8x320xf32>
    %361 = vector.broadcast %15 : vector<8x1xf32> to vector<8x320xf32>
    %362 = arith.addf %360, %361 : vector<8x320xf32>
    %cst_46 = arith.constant dense<0.000000e+00> : vector<320xf32>
    %363 = vector.multi_reduction <add>, %362, %cst_46 [0] : vector<8x320xf32> to vector<320xf32>
    %364 = vector.shape_cast %363 : vector<320xf32> to vector<1x320xf32>
    %365 = arith.mulf %362, %362 : vector<8x320xf32>
    %cst_47 = arith.constant dense<0.000000e+00> : vector<320xf32>
    %366 = vector.multi_reduction <add>, %365, %cst_47 [0] : vector<8x320xf32> to vector<320xf32>
    %367 = vector.shape_cast %366 : vector<320xf32> to vector<1x320xf32>
    %368 = tpu.concatenate %364, %367 in 0 : vector<1x320xf32>, vector<1x320xf32> -> vector<2x320xf32>
    %cst_48 = arith.constant dense<0.000000e+00> : vector<2x32xf32>
    %369 = tpu.matmul %368, %2, %cst_48 {dimension_numbers = #tpu.dot_dimension_numbers<[1], [0], [0], [1], [0, 0, 1, 1], [], []>} : vector<2x320xf32>, vector<320x32xf32>, vector<2x32xf32> -> vector<2x32xf32>
    %cst_49 = arith.constant 1.250000e-02 : f32
    %370 = vector.broadcast %cst_49 : f32 to vector<2x32xf32>
    %371 = arith.mulf %369, %370 : vector<2x32xf32>
    %372 = vector.extract_strided_slice %371 {offsets = [0, 0], sizes = [1, 32], strides = [1, 1]} : vector<2x32xf32> to vector<1x32xf32>
    %373 = vector.extract_strided_slice %371 {offsets = [1, 0], sizes = [1, 32], strides = [1, 1]} : vector<2x32xf32> to vector<1x32xf32>
    %374 = arith.mulf %372, %372 : vector<1x32xf32>
    %375 = arith.subf %373, %374 : vector<1x32xf32>
    %cst_50 = arith.constant 9.99999997E-7 : f32
    %376 = vector.broadcast %cst_50 : f32 to vector<1x32xf32>
    %377 = arith.addf %375, %376 : vector<1x32xf32>
    %378 = math.rsqrt %377 : vector<1x32xf32>
    %379 = tpu.concatenate %372, %378 in 0 : vector<1x32xf32>, vector<1x32xf32> -> vector<2x32xf32>
    %cst_51 = arith.constant dense<0.000000e+00> : vector<2x320xf32>
    %380 = tpu.matmul %379, %4, %cst_51 {dimension_numbers = #tpu.dot_dimension_numbers<[1], [0], [0], [1], [0, 0, 1, 1], [], []>} : vector<2x32xf32>, vector<32x320xf32>, vector<2x320xf32> -> vector<2x320xf32>
    %381 = vector.extract_strided_slice %380 {offsets = [0, 0], sizes = [1, 320], strides = [1, 1]} : vector<2x320xf32> to vector<1x320xf32>
    %382 = vector.broadcast %381 : vector<1x320xf32> to vector<8x320xf32>
    %383 = arith.subf %362, %382 : vector<8x320xf32>
    %384 = vector.extract_strided_slice %380 {offsets = [1, 0], sizes = [1, 320], strides = [1, 1]} : vector<2x320xf32> to vector<1x320xf32>
    %385 = vector.broadcast %384 : vector<1x320xf32> to vector<8x320xf32>
    %386 = arith.mulf %383, %385 : vector<8x320xf32>
    %387 = vector.broadcast %16 : vector<8x1xf32> to vector<8x320xf32>
    %388 = arith.mulf %386, %387 : vector<8x320xf32>
    %389 = vector.broadcast %17 : vector<8x1xf32> to vector<8x320xf32>
    %390 = arith.addf %388, %389 : vector<8x320xf32>
    %cst_52 = arith.constant 0.000000e+00 : f32
    %391 = vector.broadcast %cst_52 : f32 to vector<8x320xf32>
    %392 = arith.cmpf oge, %390, %391 : vector<8x320xf32>
    %cst_53 = arith.constant 2.500000e-01 : f32
    %393 = vector.broadcast %cst_53 : f32 to vector<8x320xf32>
    %394 = arith.mulf %393, %390 : vector<8x320xf32>
    %395 = arith.select %392, %390, %394 : vector<8x320xi1>, vector<8x320xf32>
    %cst_54 = arith.constant dense<0.000000e+00> : vector<4x320xf32>
    %396 = tpu.matmul %9, %395, %cst_54 {dimension_numbers = #tpu.dot_dimension_numbers<[1], [0], [0], [1], [0, 0, 1, 1], [], []>} : vector<4x8xf32>, vector<8x320xf32>, vector<4x320xf32> -> vector<4x320xf32>
    %397 = vector.broadcast %18 : vector<4x1xf32> to vector<4x320xf32>
    %398 = arith.addf %396, %397 : vector<4x320xf32>
    %cst_55 = arith.constant dense<0.000000e+00> : vector<320xf32>
    %399 = vector.multi_reduction <add>, %398, %cst_55 [0] : vector<4x320xf32> to vector<320xf32>
    %400 = vector.shape_cast %399 : vector<320xf32> to vector<1x320xf32>
    %401 = arith.mulf %398, %398 : vector<4x320xf32>
    %cst_56 = arith.constant dense<0.000000e+00> : vector<320xf32>
    %402 = vector.multi_reduction <add>, %401, %cst_56 [0] : vector<4x320xf32> to vector<320xf32>
    %403 = vector.shape_cast %402 : vector<320xf32> to vector<1x320xf32>
    %404 = tpu.concatenate %400, %403 in 0 : vector<1x320xf32>, vector<1x320xf32> -> vector<2x320xf32>
    %cst_57 = arith.constant dense<0.000000e+00> : vector<2x32xf32>
    %405 = tpu.matmul %404, %2, %cst_57 {dimension_numbers = #tpu.dot_dimension_numbers<[1], [0], [0], [1], [0, 0, 1, 1], [], []>} : vector<2x320xf32>, vector<320x32xf32>, vector<2x32xf32> -> vector<2x32xf32>
    %cst_58 = arith.constant 2.500000e-02 : f32
    %406 = vector.broadcast %cst_58 : f32 to vector<2x32xf32>
    %407 = arith.mulf %405, %406 : vector<2x32xf32>
    %408 = vector.extract_strided_slice %407 {offsets = [0, 0], sizes = [1, 32], strides = [1, 1]} : vector<2x32xf32> to vector<1x32xf32>
    %409 = vector.extract_strided_slice %407 {offsets = [1, 0], sizes = [1, 32], strides = [1, 1]} : vector<2x32xf32> to vector<1x32xf32>
    %410 = arith.mulf %408, %408 : vector<1x32xf32>
    %411 = arith.subf %409, %410 : vector<1x32xf32>
    %cst_59 = arith.constant 9.99999997E-7 : f32
    %412 = vector.broadcast %cst_59 : f32 to vector<1x32xf32>
    %413 = arith.addf %411, %412 : vector<1x32xf32>
    %414 = math.rsqrt %413 : vector<1x32xf32>
    %415 = tpu.concatenate %408, %414 in 0 : vector<1x32xf32>, vector<1x32xf32> -> vector<2x32xf32>
    %cst_60 = arith.constant dense<0.000000e+00> : vector<2x320xf32>
    %416 = tpu.matmul %415, %4, %cst_60 {dimension_numbers = #tpu.dot_dimension_numbers<[1], [0], [0], [1], [0, 0, 1, 1], [], []>} : vector<2x32xf32>, vector<32x320xf32>, vector<2x320xf32> -> vector<2x320xf32>
    %417 = vector.extract_strided_slice %416 {offsets = [0, 0], sizes = [1, 320], strides = [1, 1]} : vector<2x320xf32> to vector<1x320xf32>
    %418 = vector.broadcast %417 : vector<1x320xf32> to vector<4x320xf32>
    %419 = arith.subf %398, %418 : vector<4x320xf32>
    %420 = vector.extract_strided_slice %416 {offsets = [1, 0], sizes = [1, 320], strides = [1, 1]} : vector<2x320xf32> to vector<1x320xf32>
    %421 = vector.broadcast %420 : vector<1x320xf32> to vector<4x320xf32>
    %422 = arith.mulf %419, %421 : vector<4x320xf32>
    %423 = vector.broadcast %19 : vector<4x1xf32> to vector<4x320xf32>
    %424 = arith.mulf %422, %423 : vector<4x320xf32>
    %425 = vector.broadcast %20 : vector<4x1xf32> to vector<4x320xf32>
    %426 = arith.addf %424, %425 : vector<4x320xf32>
    %cst_61 = arith.constant 0.000000e+00 : f32
    %427 = vector.broadcast %cst_61 : f32 to vector<4x320xf32>
    %428 = arith.cmpf oge, %426, %427 : vector<4x320xf32>
    %cst_62 = arith.constant 2.500000e-01 : f32
    %429 = vector.broadcast %cst_62 : f32 to vector<4x320xf32>
    %430 = arith.mulf %429, %426 : vector<4x320xf32>
    %431 = arith.select %428, %426, %430 : vector<4x320xi1>, vector<4x320xf32>
    %432 = arith.addf %431, %313 : vector<4x320xf32>
    %cst_63 = arith.constant 0.000000e+00 : f32
    %433 = vector.broadcast %cst_63 : f32 to vector<4x192xf32>
    %434 = tpu.concatenate %433, %432, %433 in 1 : vector<4x192xf32>, vector<4x320xf32>, vector<4x192xf32> -> vector<4x704xf32>
    %435 = vector.extract_strided_slice %434 {offsets = [0, 192], sizes = [4, 512], strides = [1, 1]} : vector<4x704xf32> to vector<4x512xf32>
    %436 = vector.extract_strided_slice %434 {offsets = [0, 160], sizes = [4, 512], strides = [1, 1]} : vector<4x704xf32> to vector<4x512xf32>
    %437 = vector.extract_strided_slice %434 {offsets = [0, 128], sizes = [4, 512], strides = [1, 1]} : vector<4x704xf32> to vector<4x512xf32>
    %438 = vector.extract_strided_slice %434 {offsets = [0, 96], sizes = [4, 512], strides = [1, 1]} : vector<4x704xf32> to vector<4x512xf32>
    %439 = vector.extract_strided_slice %434 {offsets = [0, 64], sizes = [4, 512], strides = [1, 1]} : vector<4x704xf32> to vector<4x512xf32>
    %440 = vector.extract_strided_slice %434 {offsets = [0, 32], sizes = [4, 512], strides = [1, 1]} : vector<4x704xf32> to vector<4x512xf32>
    %441 = vector.extract_strided_slice %434 {offsets = [0, 0], sizes = [4, 512], strides = [1, 1]} : vector<4x704xf32> to vector<4x512xf32>
    %442 = tpu.concatenate %435, %436, %437, %438, %439, %440, %441 in 0 : vector<4x512xf32>, vector<4x512xf32>, vector<4x512xf32>, vector<4x512xf32>, vector<4x512xf32>, vector<4x512xf32>, vector<4x512xf32> -> vector<28x512xf32>
    %cst_64 = arith.constant dense<0.000000e+00> : vector<4x512xf32>
    %443 = tpu.matmul %10, %442, %cst_64 {dimension_numbers = #tpu.dot_dimension_numbers<[1], [0], [0], [1], [0, 0, 1, 1], [], []>} : vector<4x28xf32>, vector<28x512xf32>, vector<4x512xf32> -> vector<4x512xf32>
    %444 = vector.broadcast %21 : vector<4x1xf32> to vector<4x512xf32>
    %445 = arith.addf %443, %444 : vector<4x512xf32>
    %446 = arith.addf %445, %0 : vector<4x512xf32>
    %c0_65 = arith.constant 0 : index
    %c0_66 = arith.constant 0 : index
    %447 = vector.load %arg5[%c0_65, %c0_66] : memref<4x512xf32, #tpu.memory_space<vmem>>, vector<4x512xf32>
    tpu.vector_store %arg5[%c0_65, %c0_66], %446 {strides = array<i32>} : memref<4x512xf32, #tpu.memory_space<vmem>>, vector<4x512xf32>,
    return
  }
  func.func @transform_0(%arg0: i32) -> (i32, i32) {
    %c0_i32 = arith.constant 0 : i32
    %c0_i32_0 = arith.constant 0 : i32
    %c0_i32_1 = arith.constant 0 : i32
    return %c0_i32, %c0_i32_0 : i32, i32
  }
  func.func @transform_1(%arg0: i32) -> (i32, i32) {
    %c0_i32 = arith.constant 0 : i32
    %c0_i32_0 = arith.constant 0 : i32
    %c0_i32_1 = arith.constant 0 : i32
    return %c0_i32, %c0_i32_0 : i32, i32
  }
  func.func @transform_2(%arg0: i32) -> (i32, i32) {
    %c0_i32 = arith.constant 0 : i32
    %c0_i32_0 = arith.constant 0 : i32
    %c0_i32_1 = arith.constant 0 : i32
    return %c0_i32, %c0_i32_0 : i32, i32
  }
  func.func @transform_3(%arg0: i32) -> (i32, i32) {
    %c0_i32 = arith.constant 0 : i32
    %c0_i32_0 = arith.constant 0 : i32
    %c0_i32_1 = arith.constant 0 : i32
    return %c0_i32, %c0_i32_0 : i32, i32
  }
  func.func @transform_4(%arg0: i32) -> (i32, i32) {
    %c0_i32 = arith.constant 0 : i32
    %c0_i32_0 = arith.constant 0 : i32
    %c0_i32_1 = arith.constant 0 : i32
    return %c0_i32, %c0_i32_0 : i32, i32
  }
}

</mosaic_0001>

<llo_original>
// kernel: dual_path_forward.1
$region0: #{dual_path_forward.1}
  #allocation0 [shape = 'u32[]', space=smem, size = 0x4, offset = 0x4, fixed_abs, tag = 'smem constant byte address 0x4 - core index']
  #allocation1 [shape = 'u32[144,128]{1,0:T(1,128)}', space=vmem, size = 0x12000, scoped, tag = 'internal scratch']
  %s0 = inlined_call_operand.vmem [shape: f32[4,512], index: 0, kind: input, shape index: {}]
  %s1 = inlined_call_operand.vmem [shape: f32[56,56], index: 1, kind: input, shape index: {}]
  %s2 = inlined_call_operand.vmem [shape: f32[512,32], index: 2, kind: input, shape index: {}]
  %s3 = inlined_call_operand.vmem [shape: f32[32,544], index: 3, kind: input, shape index: {}]
  %s4 = inlined_call_operand.vmem [shape: f32[4,512], index: 4, kind: output, shape index: {}]
  %s5 = sld [smem:[#allocation0]]
  $region26: #{dual_path_forward.1} parent=0
    _
  %s7 = ssub.s32 1, %s5
  %s8 = scalar_select 0, %s7, %s5
  // Predicated region
  $region2: #{dual_path_forward.1} parent=0 // pred_check
    _
  $region3: #{dual_path_forward.1} parent=0 // pred_check_branch
    %10 = sbr.rel (0) target = $region5
  $region4: #{dual_path_forward.1} parent=0 // pred_region
    _
  $region5: #{dual_path_forward.1} parent=0 // pred_fallthru
    _
  // Predicated region
  $region6: #{dual_path_forward.1} parent=0 // pred_check
    _
  $region7: #{dual_path_forward.1} parent=0 // pred_check_branch
    %12 = sbr.rel (0) target = $region9
  $region8: #{dual_path_forward.1} parent=0 // pred_region
    _
  $region9: #{dual_path_forward.1} parent=0 // pred_fallthru
    _
  // Predicated region
  $region10: #{dual_path_forward.1} parent=0 // pred_check
    _
  $region11: #{dual_path_forward.1} parent=0 // pred_check_branch
    %14 = sbr.rel (0) target = $region13
  $region12: #{dual_path_forward.1} parent=0 // pred_region
    _
  $region13: #{dual_path_forward.1} parent=0 // pred_fallthru
    _
  // Predicated region
  $region14: #{dual_path_forward.1} parent=0 // pred_check
    _
  $region15: #{dual_path_forward.1} parent=0 // pred_check_branch
    %16 = sbr.rel (0) target = $region17
  $region16: #{dual_path_forward.1} parent=0 // pred_region
    _
  $region17: #{dual_path_forward.1} parent=0 // pred_fallthru
    _
  %v17 = vld [vmem:[%s0] sm:$0xff]
  %v18 = vld [vmem:[%s0 + $0x8] sm:$0xff]
  %v19 = vld [vmem:[%s2] sm:$0xff]
  %v20 = vld [vmem:[%s2 + $0x8] sm:$0xff]
  %v21 = vld [vmem:[%s2 + $0x10] sm:$0xff]
  %v22 = vld [vmem:[%s2 + $0x18] sm:$0xff]
  %v23 = vld [vmem:[%s2 + $0x20] sm:$0xff]
  %v24 = vld [vmem:[%s2 + $0x28] sm:$0xff]
  %v25 = vld [vmem:[%s2 + $0x30] sm:$0xff]
  %v26 = vld [vmem:[%s2 + $0x38] sm:$0xff]
  %v27 = vld [vmem:[%s2 + $0x40] sm:$0xff]
  %v28 = vld [vmem:[%s2 + $0x48] sm:$0xff]
  %v29 = vld [vmem:[%s2 + $0x50] sm:$0xff]
  %v30 = vld [vmem:[%s2 + $0x58] sm:$0xff]
  %v31 = vld [vmem:[%s2 + $0x60] sm:$0xff]
  %v32 = vld [vmem:[%s2 + $0x68] sm:$0xff]
  %v33 = vld [vmem:[%s2 + $0x70] sm:$0xff]
  %v34 = vld [vmem:[%s2 + $0x78] sm:$0xff]
  %v35 = vld [vmem:[%s2 + $0x80] sm:$0xff]
  %v36 = vld [vmem:[%s2 + $0x88] sm:$0xff]
  %v37 = vld [vmem:[%s2 + $0x90] sm:$0xff]
  %v38 = vld [vmem:[%s2 + $0x98] sm:$0xff]
  %v39 = vld [vmem:[%s2 + $0xa0] sm:$0xff]
  %v40 = vld [vmem:[%s2 + $0xa8] sm:$0xff]
  %v41 = vld [vmem:[%s2 + $0xb0] sm:$0xff]
  %v42 = vld [vmem:[%s2 + $0xb8] sm:$0xff]
  %v43 = vld [vmem:[%s2 + $0xc0] sm:$0xff]
  %v44 = vld [vmem:[%s2 + $0xc8] sm:$0xff]
  %v45 = vld [vmem:[%s2 + $0xd0] sm:$0xff]
  %v46 = vld [vmem:[%s2 + $0xd8] sm:$0xff]
  %v47 = vld [vmem:[%s2 + $0xe0] sm:$0xff]
  %v48 = vld [vmem:[%s2 + $0xe8] sm:$0xff]
  %v49 = vld [vmem:[%s2 + $0xf0] sm:$0xff]
  %v50 = vld [vmem:[%s2 + $0xf8] sm:$0xff]
  %v51 = vld [vmem:[%s2 + $0x100] sm:$0xff]
  %v52 = vld [vmem:[%s2 + $0x108] sm:$0xff]
  %v53 = vld [vmem:[%s2 + $0x110] sm:$0xff]
  %v54 = vld [vmem:[%s2 + $0x118] sm:$0xff]
  %v55 = vld [vmem:[%s2 + $0x120] sm:$0xff]
  %v56 = vld [vmem:[%s2 + $0x128] sm:$0xff]
  %v57 = vld [vmem:[%s2 + $0x130] sm:$0xff]
  %v58 = vld [vmem:[%s2 + $0x138] sm:$0xff]
  %v59 = vld [vmem:[%s2 + $0x140] sm:$0xff]
  %v60 = vld [vmem:[%s2 + $0x148] sm:$0xff]
  %v61 = vld [vmem:[%s2 + $0x150] sm:$0xff]
  %v62 = vld [vmem:[%s2 + $0x158] sm:$0xff]
  %v63 = vld [vmem:[%s2 + $0x160] sm:$0xff]
  %v64 = vld [vmem:[%s2 + $0x168] sm:$0xff]
  %v65 = vld [vmem:[%s2 + $0x170] sm:$0xff]
  %v66 = vld [vmem:[%s2 + $0x178] sm:$0xff]
  %v67 = vld [vmem:[%s2 + $0x180] sm:$0xff]
  %v68 = vld [vmem:[%s2 + $0x188] sm:$0xff]
  %v69 = vld [vmem:[%s2 + $0x190] sm:$0xff]
  %v70 = vld [vmem:[%s2 + $0x198] sm:$0xff]
  %v71 = vld [vmem:[%s2 + $0x1a0] sm:$0xff]
  %v72 = vld [vmem:[%s2 + $0x1a8] sm:$0xff]
  %v73 = vld [vmem:[%s2 + $0x1b0] sm:$0xff]
  %v74 = vld [vmem:[%s2 + $0x1b8] sm:$0xff]
  %v75 = vld [vmem:[%s2 + $0x1c0] sm:$0xff]
  %v76 = vld [vmem:[%s2 + $0x1c8] sm:$0xff]
  %v77 = vld [vmem:[%s2 + $0x1d0] sm:$0xff]
  %v78 = vld [vmem:[%s2 + $0x1d8] sm:$0xff]
  %v79 = vld [vmem:[%s2 + $0x1e0] sm:$0xff]
  %v80 = vld [vmem:[%s2 + $0x1e8] sm:$0xff]
  %v81 = vld [vmem:[%s2 + $0x1f0] sm:$0xff]
  %v82 = vld [vmem:[%s2 + $0x1f8] sm:$0xff]
  %v83 = vld [vmem:[%s3] sm:$0xff]
  %v84 = vld [vmem:[%s3 + $0x8] sm:$0xff]
  %v85 = vld [vmem:[%s3 + $0x10] sm:$0xff]
  %v86 = vld [vmem:[%s3 + $0x18] sm:$0xff]
  %v87 = vld [vmem:[%s3 + $0x28] sm:$0xff]
  %v88 = vld [vmem:[%s3 + $0x30] sm:$0xff]
  %v89 = vld [vmem:[%s3 + $0x38] sm:$0xff]
  %v90 = vld [vmem:[%s3 + $0x40] sm:$0xff]
  %v91 = vld [vmem:[%s3 + $0x50] sm:$0xff]
  %v92 = vld [vmem:[%s3 + $0x58] sm:$0xff]
  %v93 = vld [vmem:[%s3 + $0x60] sm:$0xff]
  %v94 = vld [vmem:[%s3 + $0x68] sm:$0xff]
  %v95 = vld [vmem:[%s3 + $0x78] sm:$0xff]
  %v96 = vld [vmem:[%s3 + $0x80] sm:$0xff]
  %v97 = vld [vmem:[%s3 + $0x88] sm:$0xff]
  %v98 = vld [vmem:[%s3 + $0x90] sm:$0xff]
  %v99 = vld [vmem:[%s3 + $0x20] sm:$0xff]
  %v100 = vld [vmem:[%s3 + $0x48] sm:$0xff]
  %v101 = vld [vmem:[%s3 + $0x70] sm:$0xff]
  %v102 = vld [vmem:[%s3 + $0x98] sm:$0xff]
  %v103 = vld [vmem:[%s1] sm:$0xff]
  %v104 = vld [vmem:[%s1 + $0x8] sm:$0xff]
  %v105 = vld [vmem:[%s1 + $0x10] sm:$0xff]
  %v106 = vld [vmem:[%s1 + $0x18] sm:$0xff]
  %v107 = vld [vmem:[%s1 + $0x20] sm:$0xf]
  %v108 = vld [vmem:[%s1 + $0x28] sm:$0xf]
  %v109 = vld [vmem:[%s1 + $0x30] sm:$0xff]
  %v112 = vcombine.high %v17, %v17
  %v113 = vcombine.high %v18, %v18
  %vm116 = vcmask 1043456
  %v117 = vsel %vm116, %v17, 0.0
  %v118 = vrot.slane %v117, 4
  %v119 = vadd.f32 %v117, %v118
  %v120 = vrot.slane %v119, 2
  %v121 = vadd.f32 %v119, %v120
  %v122 = vrot.slane %v121, 1
  %v123 = vadd.f32 %v121, %v122
  %v124 = vsel %vm116, %v112, 0.0
  %v125 = vrot.slane %v124, 4
  %v126 = vadd.f32 %v124, %v125
  %v127 = vrot.slane %v126, 2
  %v128 = vadd.f32 %v126, %v127
  %v129 = vrot.slane %v128, 1
  %v130 = vadd.f32 %v128, %v129
  %v131 = vsel %vm116, %v18, 0.0
  %v132 = vrot.slane %v131, 4
  %v133 = vadd.f32 %v131, %v132
  %v134 = vrot.slane %v133, 2
  %v135 = vadd.f32 %v133, %v134
  %v136 = vrot.slane %v135, 1
  %v137 = vadd.f32 %v135, %v136
  %v138 = vsel %vm116, %v113, 0.0
  %v139 = vrot.slane %v138, 4
  %v140 = vadd.f32 %v138, %v139
  %v141 = vrot.slane %v140, 2
  %v142 = vadd.f32 %v140, %v141
  %v143 = vrot.slane %v142, 1
  %v144 = vadd.f32 %v142, %v143
  %v145 = vmul.f32 %v17, %v17
  %v146 = vmul.f32 %v18, %v18
  %v149 = vcombine.high %v145, %v145
  %v150 = vcombine.high %v146, %v146
  %v153 = vsel %vm116, %v145, 0.0
  %v154 = vrot.slane %v153, 4
  %v155 = vadd.f32 %v153, %v154
  %v156 = vrot.slane %v155, 2
  %v157 = vadd.f32 %v155, %v156
  %v158 = vrot.slane %v157, 1
  %v159 = vadd.f32 %v157, %v158
  %v160 = vsel %vm116, %v149, 0.0
  %v161 = vrot.slane %v160, 4
  %v162 = vadd.f32 %v160, %v161
  %v163 = vrot.slane %v162, 2
  %v164 = vadd.f32 %v162, %v163
  %v165 = vrot.slane %v164, 1
  %v166 = vadd.f32 %v164, %v165
  %v167 = vsel %vm116, %v146, 0.0
  %v168 = vrot.slane %v167, 4
  %v169 = vadd.f32 %v167, %v168
  %v170 = vrot.slane %v169, 2
  %v171 = vadd.f32 %v169, %v170
  %v172 = vrot.slane %v171, 1
  %v173 = vadd.f32 %v171, %v172
  %v174 = vsel %vm116, %v150, 0.0
  %v175 = vrot.slane %v174, 4
  %v176 = vadd.f32 %v174, %v175
  %v177 = vrot.slane %v176, 2
  %v178 = vadd.f32 %v176, %v177
  %v179 = vrot.slane %v178, 1
  %v180 = vadd.f32 %v178, %v179
  %vm181 = vcmask 1040384
  %v182 = vsel %vm181, %v123, %v159
  %v183 = vsel %vm181, %v130, %v166
  %v184 = vsel %vm181, %v137, %v173
  %v185 = vsel %vm181, %v144, %v180
  %186 = vmatprep.subr.mxu0 0.0
  %187 = vmatpush1.msra.mxu0 %v34
  %188 = vmatprep.subr.mxu0 0.0
  %189 = vmatpush1.msra.mxu0 %v33
  %190 = vmatprep.subr.mxu0 0.0
  %191 = vmatpush1.msra.mxu0 %v32
  %192 = vmatprep.subr.mxu0 0.0
  %193 = vmatpush1.msra.mxu0 %v31
  %194 = vmatprep.subr.mxu0 0.0
  %195 = vmatpush1.msra.mxu0 %v30
  %196 = vmatprep.subr.mxu0 0.0
  %197 = vmatpush1.msra.mxu0 %v29
  %198 = vmatprep.subr.mxu0 0.0
  %199 = vmatpush1.msra.mxu0 %v28
  %200 = vmatprep.subr.mxu0 0.0
  %201 = vmatpush1.msra.mxu0 %v27
  %202 = vmatprep.subr.mxu0 0.0
  %203 = vmatpush1.msra.mxu0 %v26
  %204 = vmatprep.subr.mxu0 0.0
  %205 = vmatpush1.msra.mxu0 %v25
  %206 = vmatprep.subr.mxu0 0.0
  %207 = vmatpush1.msra.mxu0 %v24
  %208 = vmatprep.subr.mxu0 0.0
  %209 = vmatpush1.msra.mxu0 %v23
  %210 = vmatprep.subr.mxu0 0.0
  %211 = vmatpush1.msra.mxu0 %v22
  %212 = vmatprep.subr.mxu0 0.0
  %213 = vmatpush1.msra.mxu0 %v21
  %214 = vmatprep.subr.mxu0 0.0
  %215 = vmatpush1.msra.mxu0 %v20
  %216 = vmatprep.subr.mxu0 0.0
  %217 = vmatpush1.msra.mxu0 %v19
  %218 = vmatprep.subr.mxu0 0.0
  %219 = vmatpush2.msra.mxu0 %v50
  %220 = vmatprep.subr.mxu0 0.0
  %221 = vmatpush2.msra.mxu0 %v49
  %222 = vmatprep.subr.mxu0 0.0
  %223 = vmatpush2.msra.mxu0 %v48
  %224 = vmatprep.subr.mxu0 0.0
  %225 = vmatpush2.msra.mxu0 %v47
  %226 = vmatprep.subr.mxu0 0.0
  %227 = vmatpush2.msra.mxu0 %v46
  %228 = vmatprep.subr.mxu0 0.0
  %229 = vmatpush2.msra.mxu0 %v45
  %230 = vmatprep.subr.mxu0 0.0
  %231 = vmatpush2.msra.mxu0 %v44
  %232 = vmatprep.subr.mxu0 0.0
  %233 = vmatpush2.msra.mxu0 %v43
  %234 = vmatprep.subr.mxu0 0.0
  %235 = vmatpush2.msra.mxu0 %v42
  %236 = vmatprep.subr.mxu0 0.0
  %237 = vmatpush2.msra.mxu0 %v41
  %238 = vmatprep.subr.mxu0 0.0
  %239 = vmatpush2.msra.mxu0 %v40
  %240 = vmatprep.subr.mxu0 0.0
  %241 = vmatpush2.msra.mxu0 %v39
  %242 = vmatprep.subr.mxu0 0.0
  %243 = vmatpush2.msra.mxu0 %v38
  %244 = vmatprep.subr.mxu0 0.0
  %245 = vmatpush2.msra.mxu0 %v37
  %246 = vmatprep.subr.mxu0 0.0
  %247 = vmatpush2.msra.mxu0 %v36
  %248 = vmatprep.subr.mxu0 0.0
  %249 = vmatpush2.msra.mxu0 %v35
  %250 = vmatprep.mubr.f32.mxu0 %v183
  %251 = vmatmul.mubr.f32.gmra.mxu0 %v182
  %v252 = vpop.f32.mrf.mxu0
  %v253 = vadd.f32 0.0, %v252
  %v254 = vpop.f32.mrf.mxu0
  %255 = vdwg.mxu0
  %256 = vmatprep.subr.mxu0 0.0
  %257 = vmatpush1.msra.mxu0 %v66
  %258 = vmatprep.subr.mxu0 0.0
  %259 = vmatpush1.msra.mxu0 %v65
  %260 = vmatprep.subr.mxu0 0.0
  %261 = vmatpush1.msra.mxu0 %v64
  %262 = vmatprep.subr.mxu0 0.0
  %263 = vmatpush1.msra.mxu0 %v63
  %264 = vmatprep.subr.mxu0 0.0
  %265 = vmatpush1.msra.mxu0 %v62
  %266 = vmatprep.subr.mxu0 0.0
  %267 = vmatpush1.msra.mxu0 %v61
  %268 = vmatprep.subr.mxu0 0.0
  %269 = vmatpush1.msra.mxu0 %v60
  %270 = vmatprep.subr.mxu0 0.0
  %271 = vmatpush1.msra.mxu0 %v59
  %272 = vmatprep.subr.mxu0 0.0
  %273 = vmatpush1.msra.mxu0 %v58
  %274 = vmatprep.subr.mxu0 0.0
  %275 = vmatpush1.msra.mxu0 %v57
  %276 = vmatprep.subr.mxu0 0.0
  %277 = vmatpush1.msra.mxu0 %v56
  %278 = vmatprep.subr.mxu0 0.0
  %279 = vmatpush1.msra.mxu0 %v55
  %280 = vmatprep.subr.mxu0 0.0
  %281 = vmatpush1.msra.mxu0 %v54
  %282 = vmatprep.subr.mxu0 0.0
  %283 = vmatpush1.msra.mxu0 %v53
  %284 = vmatprep.subr.mxu0 0.0
  %285 = vmatpush1.msra.mxu0 %v52
  %286 = vmatprep.subr.mxu0 0.0
  %287 = vmatpush1.msra.mxu0 %v51
  %288 = vmatprep.subr.mxu0 0.0
  %289 = vmatpush2.msra.mxu0 %v82
  %290 = vmatprep.subr.mxu0 0.0
  %291 = vmatpush2.msra.mxu0 %v81
  %292 = vmatprep.subr.mxu0 0.0
  %293 = vmatpush2.msra.mxu0 %v80
  %294 = vmatprep.subr.mxu0 0.0
  %295 = vmatpush2.msra.mxu0 %v79
  %296 = vmatprep.subr.mxu0 0.0
  %297 = vmatpush2.msra.mxu0 %v78
  %298 = vmatprep.subr.mxu0 0.0
  %299 = vmatpush2.msra.mxu0 %v77
  %300 = vmatprep.subr.mxu0 0.0
  %301 = vmatpush2.msra.mxu0 %v76
  %302 = vmatprep.subr.mxu0 0.0
  %303 = vmatpush2.msra.mxu0 %v75
  %304 = vmatprep.subr.mxu0 0.0
  %305 = vmatpush2.msra.mxu0 %v74
  %306 = vmatprep.subr.mxu0 0.0
  %307 = vmatpush2.msra.mxu0 %v73
  %308 = vmatprep.subr.mxu0 0.0
  %309 = vmatpush2.msra.mxu0 %v72
  %310 = vmatprep.subr.mxu0 0.0
  %311 = vmatpush2.msra.mxu0 %v71
  %312 = vmatprep.subr.mxu0 0.0
  %313 = vmatpush2.msra.mxu0 %v70
  %314 = vmatprep.subr.mxu0 0.0
  %315 = vmatpush2.msra.mxu0 %v69
  %316 = vmatprep.subr.mxu0 0.0
  %317 = vmatpush2.msra.mxu0 %v68
  %318 = vmatprep.subr.mxu0 0.0
  %319 = vmatpush2.msra.mxu0 %v67
  %320 = vmatprep.mubr.f32.mxu0 %v185
  %321 = vmatmul.mubr.f32.gmra.mxu0 %v184
  %v322 = vpop.f32.mrf.mxu0
  %v323 = vadd.f32 %v253, %v322
  %v324 = vpop.f32.mrf.mxu0
  %325 = vdwg.mxu0
  %vm326 = vcmask 261120
  %v328 = vsel %vm326, %v323, 0
  %330 = vmatprep.subr.mxu0 0.0
  %331 = vmatpush1.msra.mxu0 0.0
  %332 = vmatprep.subr.mxu0 0.0
  %333 = vmatpush1.msra.mxu0 0.0
  %334 = vmatprep.subr.mxu0 0.0
  %335 = vmatpush1.msra.mxu0 0.0
  %336 = vmatprep.subr.mxu0 0.0
  %337 = vmatpush1.msra.mxu0 0.0
  %338 = vmatprep.subr.mxu0 0.0
  %339 = vmatpush1.msra.mxu0 0.0
  %340 = vmatprep.subr.mxu0 0.0
  %341 = vmatpush1.msra.mxu0 0.0
  %342 = vmatprep.subr.mxu0 0.0
  %343 = vmatpush1.msra.mxu0 0.0
  %344 = vmatprep.subr.mxu0 0.0
  %345 = vmatpush1.msra.mxu0 0.0
  %346 = vmatprep.subr.mxu0 0.0
  %347 = vmatpush1.msra.mxu0 0.0
  %348 = vmatprep.subr.mxu0 0.0
  %349 = vmatpush1.msra.mxu0 0.0
  %350 = vmatprep.subr.mxu0 0.0
  %351 = vmatpush1.msra.mxu0 0.0
  %352 = vmatprep.subr.mxu0 0.0
  %353 = vmatpush1.msra.mxu0 0.0
  %354 = vmatprep.subr.mxu0 0.0
  %355 = vmatpush1.msra.mxu0 %v102
  %356 = vmatprep.subr.mxu0 0.0
  %357 = vmatpush1.msra.mxu0 %v101
  %358 = vmatprep.subr.mxu0 0.0
  %359 = vmatpush1.msra.mxu0 %v100
  %360 = vmatprep.subr.mxu0 0.0
  %361 = vmatpush1.msra.mxu0 %v99
  %362 = vmatprep.subr.mxu0 0.0
  %363 = vmatpush2.msra.mxu0 0.0
  %364 = vmatprep.subr.mxu0 0.0
  %365 = vmatpush2.msra.mxu0 0.0
  %366 = vmatprep.subr.mxu0 0.0
  %367 = vmatpush2.msra.mxu0 0.0
  %368 = vmatprep.subr.mxu0 0.0
  %369 = vmatpush2.msra.mxu0 0.0
  %370 = vmatprep.subr.mxu0 0.0
  %371 = vmatpush2.msra.mxu0 0.0
  %372 = vmatprep.subr.mxu0 0.0
  %373 = vmatpush2.msra.mxu0 0.0
  %374 = vmatprep.subr.mxu0 0.0
  %375 = vmatpush2.msra.mxu0 0.0
  %376 = vmatprep.subr.mxu0 0.0
  %377 = vmatpush2.msra.mxu0 0.0
  %378 = vmatprep.subr.mxu0 0.0
  %379 = vmatpush2.msra.mxu0 0.0
  %380 = vmatprep.subr.mxu0 0.0
  %381 = vmatpush2.msra.mxu0 0.0
  %382 = vmatprep.subr.mxu0 0.0
  %383 = vmatpush2.msra.mxu0 0.0
  %384 = vmatprep.subr.mxu0 0.0
  %385 = vmatpush2.msra.mxu0 0.0
  %386 = vmatprep.subr.mxu0 0.0
  %387 = vmatpush2.msra.mxu0 0.0
  %388 = vmatprep.subr.mxu0 0.0
  %389 = vmatpush2.msra.mxu0 0.0
  %390 = vmatprep.subr.mxu0 0.0
  %391 = vmatpush2.msra.mxu0 0.0
  %392 = vmatprep.subr.mxu0 0.0
  %393 = vmatpush2.msra.mxu0 0.0
  %394 = vmatprep.mubr.f32.mxu0 0.0
  %395 = vmatmul.mubr.f32.gmra.mxu0 %v328
  %v396 = vpop.f32.mrf.mxu0
  %v397 = vadd.f32 0.0, %v396
  %v398 = vpop.f32.mrf.mxu0
  %399 = vdwg.mxu0
  %v400 = vmul.f32 %v397, 0.0009765625
  %v401 = vmul.f32 %v400, %v400
  %v403 = vrot.slane %v401, 7
  %v405 = vsub.f32 %v400, %v403
  %v406 = vadd.f32 %v405, 1e-06
  %v407 = vrsqrt.pop %v406
  %v408 = vsel %vm181, %v400, %v407
  %v410 = vsel %vm326, %v408, 0
  %412 = vmatprep.subr.mxu0 0.0
  %413 = vmatpush1.msra.mxu0 0.0
  %414 = vmatprep.subr.mxu0 0.0
  %415 = vmatpush1.msra.mxu0 0.0
  %416 = vmatprep.subr.mxu0 0.0
  %417 = vmatpush1.msra.mxu0 0.0
  %418 = vmatprep.subr.mxu0 0.0
  %419 = vmatpush1.msra.mxu0 0.0
  %420 = vmatprep.subr.mxu0 0.0
  %421 = vmatpush1.msra.mxu0 0.0
  %422 = vmatprep.subr.mxu0 0.0
  %423 = vmatpush1.msra.mxu0 0.0
  %424 = vmatprep.subr.mxu0 0.0
  %425 = vmatpush1.msra.mxu0 0.0
  %426 = vmatprep.subr.mxu0 0.0
  %427 = vmatpush1.msra.mxu0 0.0
  %428 = vmatprep.subr.mxu0 0.0
  %429 = vmatpush1.msra.mxu0 0.0
  %430 = vmatprep.subr.mxu0 0.0
  %431 = vmatpush1.msra.mxu0 0.0
  %432 = vmatprep.subr.mxu0 0.0
  %433 = vmatpush1.msra.mxu0 0.0
  %434 = vmatprep.subr.mxu0 0.0
  %435 = vmatpush1.msra.mxu0 0.0
  %436 = vmatprep.subr.mxu0 %v96
  %437 = vmatpush1.msra.mxu0 %v95
  %438 = vmatprep.subr.mxu0 %v92
  %439 = vmatpush1.msra.mxu0 %v91
  %440 = vmatprep.subr.mxu0 %v88
  %441 = vmatpush1.msra.mxu0 %v87
  %442 = vmatprep.subr.mxu0 %v84
  %443 = vmatpush1.msra.mxu0 %v83
  %444 = vmatprep.subr.mxu0 0.0
  %445 = vmatpush2.msra.mxu0 0.0
  %446 = vmatprep.subr.mxu0 0.0
  %447 = vmatpush2.msra.mxu0 0.0
  %448 = vmatprep.subr.mxu0 0.0
  %449 = vmatpush2.msra.mxu0 0.0
  %450 = vmatprep.subr.mxu0 0.0
  %451 = vmatpush2.msra.mxu0 0.0
  %452 = vmatprep.subr.mxu0 0.0
  %453 = vmatpush2.msra.mxu0 0.0
  %454 = vmatprep.subr.mxu0 0.0
  %455 = vmatpush2.msra.mxu0 0.0
  %456 = vmatprep.subr.mxu0 0.0
  %457 = vmatpush2.msra.mxu0 0.0
  %458 = vmatprep.subr.mxu0 0.0
  %459 = vmatpush2.msra.mxu0 0.0
  %460 = vmatprep.subr.mxu0 0.0
  %461 = vmatpush2.msra.mxu0 0.0
  %462 = vmatprep.subr.mxu0 0.0
  %463 = vmatpush2.msra.mxu0 0.0
  %464 = vmatprep.subr.mxu0 0.0
  %465 = vmatpush2.msra.mxu0 0.0
  %466 = vmatprep.subr.mxu0 0.0
  %467 = vmatpush2.msra.mxu0 0.0
  %468 = vmatprep.subr.mxu0 0.0
  %469 = vmatpush2.msra.mxu0 0.0
  %470 = vmatprep.subr.mxu0 0.0
  %471 = vmatpush2.msra.mxu0 0.0
  %472 = vmatprep.subr.mxu0 0.0
  %473 = vmatpush2.msra.mxu0 0.0
  %474 = vmatprep.subr.mxu0 0.0
  %475 = vmatpush2.msra.mxu0 0.0
  %476 = vmatprep.mubr.f32.mxu0 0.0
  %477 = vmatmul.mubr.f32.gmra.mxu0 %v410
  %v478 = vpop.f32.mrf.mxu0
  %v479 = vadd.f32 0.0, %v478
  %v480 = vpop.f32.mrf.mxu0
  %v481 = vadd.f32 0.0, %v480
  %482 = vdwg.mxu0
  %483 = vmatprep.subr.mxu0 0.0
  %484 = vmatpush1.msra.mxu0 0.0
  %485 = vmatprep.subr.mxu0 0.0
  %486 = vmatpush1.msra.mxu0 0.0
  %487 = vmatprep.subr.mxu0 0.0
  %488 = vmatpush1.msra.mxu0 0.0
  %489 = vmatprep.subr.mxu0 0.0
  %490 = vmatpush1.msra.mxu0 0.0
  %491 = vmatprep.subr.mxu0 0.0
  %492 = vmatpush1.msra.mxu0 0.0
  %493 = vmatprep.subr.mxu0 0.0
  %494 = vmatpush1.msra.mxu0 0.0
  %495 = vmatprep.subr.mxu0 0.0
  %496 = vmatpush1.msra.mxu0 0.0
  %497 = vmatprep.subr.mxu0 0.0
  %498 = vmatpush1.msra.mxu0 0.0
  %499 = vmatprep.subr.mxu0 0.0
  %500 = vmatpush1.msra.mxu0 0.0
  %501 = vmatprep.subr.mxu0 0.0
  %502 = vmatpush1.msra.mxu0 0.0
  %503 = vmatprep.subr.mxu0 0.0
  %504 = vmatpush1.msra.mxu0 0.0
  %505 = vmatprep.subr.mxu0 0.0
  %506 = vmatpush1.msra.mxu0 0.0
  %507 = vmatprep.subr.mxu0 %v98
  %508 = vmatpush1.msra.mxu0 %v97
  %509 = vmatprep.subr.mxu0 %v94
  %510 = vmatpush1.msra.mxu0 %v93
  %511 = vmatprep.subr.mxu0 %v90
  %512 = vmatpush1.msra.mxu0 %v89
  %513 = vmatprep.subr.mxu0 %v86
  %514 = vmatpush1.msra.mxu0 %v85
  %515 = vmatprep.subr.mxu0 0.0
  %516 = vmatpush2.msra.mxu0 0.0
  %517 = vmatprep.subr.mxu0 0.0
  %518 = vmatpush2.msra.mxu0 0.0
  %519 = vmatprep.subr.mxu0 0.0
  %520 = vmatpush2.msra.mxu0 0.0
  %521 = vmatprep.subr.mxu0 0.0
  %522 = vmatpush2.msra.mxu0 0.0
  %523 = vmatprep.subr.mxu0 0.0
  %524 = vmatpush2.msra.mxu0 0.0
  %525 = vmatprep.subr.mxu0 0.0
  %526 = vmatpush2.msra.mxu0 0.0
  %527 = vmatprep.subr.mxu0 0.0
  %528 = vmatpush2.msra.mxu0 0.0
  %529 = vmatprep.subr.mxu0 0.0
  %530 = vmatpush2.msra.mxu0 0.0
  %531 = vmatprep.subr.mxu0 0.0
  %532 = vmatpush2.msra.mxu0 0.0
  %533 = vmatprep.subr.mxu0 0.0
  %534 = vmatpush2.msra.mxu0 0.0
  %535 = vmatprep.subr.mxu0 0.0
  %536 = vmatpush2.msra.mxu0 0.0
  %537 = vmatprep.subr.mxu0 0.0
  %538 = vmatpush2.msra.mxu0 0.0
  %539 = vmatprep.subr.mxu0 0.0
  %540 = vmatpush2.msra.mxu0 0.0
  %541 = vmatprep.subr.mxu0 0.0
  %542 = vmatpush2.msra.mxu0 0.0
  %543 = vmatprep.subr.mxu0 0.0
  %544 = vmatpush2.msra.mxu0 0.0
  %545 = vmatprep.subr.mxu0 0.0
  %546 = vmatpush2.msra.mxu0 0.0
  %547 = vmatprep.mubr.f32.mxu0 0.0
  %548 = vmatmul.mubr.f32.gmra.mxu0 %v410
  %v549 = vpop.f32.mrf.mxu0
  %v550 = vadd.f32 0.0, %v549
  %v551 = vpop.f32.mrf.mxu0
  %v552 = vadd.f32 0.0, %v551
  %553 = vdwg.mxu0
  %v554 = vlaneseq
  %v555 = vshrl.u32 %v554, 7
  %v556 = vsub.s32 0, %v555
  %v557 = vrot.slane %v479, %v556
  %v558 = vlaneseq
  %v559 = vshrl.u32 %v558, 7
  %v560 = vsub.s32 0, %v559
  %v561 = vrot.slane %v481, %v560
  %v562 = vlaneseq
  %v563 = vshrl.u32 %v562, 7
  %v564 = vsub.s32 0, %v563
  %v565 = vrot.slane %v550, %v564
  %v566 = vlaneseq
  %v567 = vshrl.u32 %v566, 7
  %v568 = vsub.s32 0, %v567
  %v569 = vrot.slane %v552, %v568
  %v574 = vcombine.low %v557, %v561
  %v575 = vcombine.low %v565, %v569
  %v578 = vsub.f32 %v17, %v574
  %v579 = vsub.f32 %v18, %v575
  %v580 = vlaneseq
  %v581 = vshrl.u32 %v580, 7
  %v582 = vsub.s32 1, %v581
  %v583 = vrot.slane %v479, %v582
  %v584 = vlaneseq
  %v585 = vshrl.u32 %v584, 7
  %v586 = vsub.s32 1, %v585
  %v587 = vrot.slane %v481, %v586
  %v588 = vlaneseq
  %v589 = vshrl.u32 %v588, 7
  %v590 = vsub.s32 1, %v589
  %v591 = vrot.slane %v550, %v590
  %v592 = vlaneseq
  %v593 = vshrl.u32 %v592, 7
  %v594 = vsub.s32 1, %v593
  %v595 = vrot.slane %v552, %v594
  %v600 = vcombine.low %v583, %v587
  %v601 = vcombine.low %v591, %v595
  %v604 = vmul.f32 %v578, %v600
  %v605 = vmul.f32 %v579, %v601
  %607 = vset.pattern.permute.xlu0 10
  %608 = vperm.xlu0 %607, %v109
  %v609 = vpop.permute.xlu0 %608
  %v611 = vunpack.c.l.s4 839922192
  %v612 = vunpack.c.0.s8 %v611
  %v613 = vlaneseq
  %v614 = vshrl.u32 %v613, 7
  %v615 = vsub.s32 %v612, %v614
  %v616 = vrot.slane %v609, %v615
  %v618 = vmul.f32 %v604, %v616
  %v619 = vmul.f32 %v605, %v616
  %620 = vset.pattern.permute.xlu0 11
  %621 = vperm.xlu0 %620, %v109
  %v622 = vpop.permute.xlu0 %621
  %v624 = vunpack.c.l.s4 839922192
  %v625 = vunpack.c.0.s8 %v624
  %v626 = vlaneseq
  %v627 = vshrl.u32 %v626, 7
  %v628 = vsub.s32 %v625, %v627
  %v629 = vrot.slane %v622, %v628
  %v631 = vadd.f32 %v618, %v629
  %v632 = vadd.f32 %v619, %v629
  %v635 = vcombine.high %v631, %v631
  %v637 = vcombine.low %v631, %v631
  %v638 = vcombine.low %v632, %v632
  %639 = vrot.lane.b32.xlu0 %v637, 96
  %v640 = vpop.permute.xlu0 %639
  %641 = vrot.lane.b32.xlu0 %v631, 96
  %v642 = vpop.permute.xlu0 %641
  %643 = vrot.lane.b32.xlu0 %v638, 96
  %v644 = vpop.permute.xlu0 %643
  %vm645 = vcmask 785408
  %v646 = vsel %vm645, %v640, %v642
  %v647 = vsel %vm645, %v642, %v644
  %651 = vrot.lane.b32.xlu0 %v631, 64
  %v652 = vpop.permute.xlu0 %651
  %653 = vrot.lane.b32.xlu0 %v635, 64
  %v654 = vpop.permute.xlu0 %653
  %655 = vrot.lane.b32.xlu0 %v632, 64
  %v656 = vpop.permute.xlu0 %655
  %vm657 = vcmask 523264
  %v658 = vsel %vm657, %v652, %v654
  %v659 = vsel %vm657, %v654, %v656
  %663 = vrot.lane.b32.xlu0 %v637, 32
  %v664 = vpop.permute.xlu0 %663
  %665 = vrot.lane.b32.xlu0 %v631, 32
  %v666 = vpop.permute.xlu0 %665
  %667 = vrot.lane.b32.xlu0 %v638, 32
  %v668 = vpop.permute.xlu0 %667
  %669 = vrot.lane.b32.xlu0 %v632, 32
  %v670 = vpop.permute.xlu0 %669
  %v671 = vsel %vm326, %v664, %v666
  %v672 = vsel %vm326, %v666, %v668
  %v673 = vsel %vm326, %v668, %v670
  %v677 = vcombine.high %v632, %v632
  %679 = vrot.lane.b32.xlu0 %v632, 96
  %v680 = vpop.permute.xlu0 %679
  %v681 = vsel %vm645, %v644, %v680
  %684 = vrot.lane.b32.xlu0 %v677, 64
  %v685 = vpop.permute.xlu0 %684
  %v686 = vsel %vm657, %v656, %v685
  %v687 = vsel %vm116, %v631, %v646
  %v688 = vsel %vm116, %v635, %v647
  %v689 = vsel %vm116, %v632, %v644
  %v690 = vsel %vm116, %v658, %v671
  %v691 = vsel %vm116, %v659, %v672
  %v692 = vsel %vm116, %v656, %v673
  %v693 = vsel %vm116, %v632, %v681
  %v694 = vsel %vm116, %v677, %v680
  %vm695 = vcmask 228352
  %v697 = vsel %vm695, %v103, 0
  %v700 = vsel %vm695, %v104, 0
  %v702 = vsel %vm116, %v659, 0
  %v704 = vsel %vm116, %v686, 0
  %v706 = vsel %vm116, %v685, 0
  %708 = vmatprep.subr.mxu0 0.0
  %709 = vmatpush1.msra.mxu0 0.0
  %710 = vmatprep.subr.mxu0 0.0
  %711 = vmatpush1.msra.mxu0 0.0
  %712 = vmatprep.subr.mxu0 0.0
  %713 = vmatpush1.msra.mxu0 0.0
  %714 = vmatprep.subr.mxu0 0.0
  %715 = vmatpush1.msra.mxu0 0.0
  %716 = vmatprep.subr.mxu0 0.0
  %717 = vmatpush1.msra.mxu0 0.0
  %718 = vmatprep.subr.mxu0 0.0
  %719 = vmatpush1.msra.mxu0 0.0
  %720 = vmatprep.subr.mxu0 0.0
  %721 = vmatpush1.msra.mxu0 0.0
  %722 = vmatprep.subr.mxu0 0.0
  %723 = vmatpush1.msra.mxu0 0.0
  %724 = vmatprep.subr.mxu0 0.0
  %725 = vmatpush1.msra.mxu0 0.0
  %726 = vmatprep.subr.mxu0 0.0
  %727 = vmatpush1.msra.mxu0 0.0
  %728 = vmatprep.subr.mxu0 0.0
  %729 = vmatpush1.msra.mxu0 0.0
  %730 = vmatprep.subr.mxu0 0.0
  %731 = vmatpush1.msra.mxu0 0.0
  %732 = vmatprep.subr.mxu0 %v704
  %733 = vmatpush1.msra.mxu0 %v702
  %734 = vmatprep.subr.mxu0 %v693
  %735 = vmatpush1.msra.mxu0 %v688
  %736 = vmatprep.subr.mxu0 %v691
  %737 = vmatpush1.msra.mxu0 %v690
  %738 = vmatprep.subr.mxu0 %v688
  %739 = vmatpush1.msra.mxu0 %v687
  %740 = vmatprep.subr.mxu0 0.0
  %741 = vmatpush2.msra.mxu0 0.0
  %742 = vmatprep.subr.mxu0 0.0
  %743 = vmatpush2.msra.mxu0 0.0
  %744 = vmatprep.subr.mxu0 0.0
  %745 = vmatpush2.msra.mxu0 0.0
  %746 = vmatprep.subr.mxu0 0.0
  %747 = vmatpush2.msra.mxu0 0.0
  %748 = vmatprep.subr.mxu0 0.0
  %749 = vmatpush2.msra.mxu0 0.0
  %750 = vmatprep.subr.mxu0 0.0
  %751 = vmatpush2.msra.mxu0 0.0
  %752 = vmatprep.subr.mxu0 0.0
  %753 = vmatpush2.msra.mxu0 0.0
  %754 = vmatprep.subr.mxu0 0.0
  %755 = vmatpush2.msra.mxu0 0.0
  %756 = vmatprep.subr.mxu0 0.0
  %757 = vmatpush2.msra.mxu0 0.0
  %758 = vmatprep.subr.mxu0 0.0
  %759 = vmatpush2.msra.mxu0 0.0
  %760 = vmatprep.subr.mxu0 0.0
  %761 = vmatpush2.msra.mxu0 0.0
  %762 = vmatprep.subr.mxu0 0.0
  %763 = vmatpush2.msra.mxu0 0.0
  %764 = vmatprep.subr.mxu0 0.0
  %765 = vmatpush2.msra.mxu0 0.0
  %766 = vmatprep.subr.mxu0 0.0
  %767 = vmatpush2.msra.mxu0 0.0
  %768 = vmatprep.subr.mxu0 0.0
  %769 = vmatpush2.msra.mxu0 0.0
  %770 = vmatprep.subr.mxu0 0.0
  %771 = vmatpush2.msra.mxu0 0.0
  %772 = vmatprep.mubr.f32.mxu0 0.0
  %773 = vmatmul.mubr.f32.gmra.mxu0 %v697
  %v774 = vpop.f32.mrf.mxu0
  %v775 = vadd.f32 0.0, %v774
  %v776 = vpop.f32.mrf.mxu0
  %v777 = vadd.f32 0.0, %v776
  %778 = vmatprep.mubr.f32.mxu0 0.0
  %779 = vmatmul.mubr.f32.gmra.mxu0 %v700
  %v780 = vpop.f32.mrf.mxu0
  %v781 = vadd.f32 0.0, %v780
  %v782 = vpop.f32.mrf.mxu0
  %v783 = vadd.f32 0.0, %v782
  %784 = vdwg.mxu0
  %785 = vmatprep.subr.mxu0 0.0
  %786 = vmatpush1.msra.mxu0 0.0
  %787 = vmatprep.subr.mxu0 0.0
  %788 = vmatpush1.msra.mxu0 0.0
  %789 = vmatprep.subr.mxu0 0.0
  %790 = vmatpush1.msra.mxu0 0.0
  %791 = vmatprep.subr.mxu0 0.0
  %792 = vmatpush1.msra.mxu0 0.0
  %793 = vmatprep.subr.mxu0 0.0
  %794 = vmatpush1.msra.mxu0 0.0
  %795 = vmatprep.subr.mxu0 0.0
  %796 = vmatpush1.msra.mxu0 0.0
  %797 = vmatprep.subr.mxu0 0.0
  %798 = vmatpush1.msra.mxu0 0.0
  %799 = vmatprep.subr.mxu0 0.0
  %800 = vmatpush1.msra.mxu0 0.0
  %801 = vmatprep.subr.mxu0 0.0
  %802 = vmatpush1.msra.mxu0 0.0
  %803 = vmatprep.subr.mxu0 0.0
  %804 = vmatpush1.msra.mxu0 0.0
  %805 = vmatprep.subr.mxu0 0.0
  %806 = vmatpush1.msra.mxu0 0.0
  %807 = vmatprep.subr.mxu0 0.0
  %808 = vmatpush1.msra.mxu0 0.0
  %809 = vmatprep.subr.mxu0 0.0
  %810 = vmatpush1.msra.mxu0 %v706
  %811 = vmatprep.subr.mxu0 0.0
  %812 = vmatpush1.msra.mxu0 %v694
  %813 = vmatprep.subr.mxu0 0.0
  %814 = vmatpush1.msra.mxu0 %v692
  %815 = vmatprep.subr.mxu0 0.0
  %816 = vmatpush1.msra.mxu0 %v689
  %817 = vmatprep.subr.mxu0 0.0
  %818 = vmatpush2.msra.mxu0 0.0
  %819 = vmatprep.subr.mxu0 0.0
  %820 = vmatpush2.msra.mxu0 0.0
  %821 = vmatprep.subr.mxu0 0.0
  %822 = vmatpush2.msra.mxu0 0.0
  %823 = vmatprep.subr.mxu0 0.0
  %824 = vmatpush2.msra.mxu0 0.0
  %825 = vmatprep.subr.mxu0 0.0
  %826 = vmatpush2.msra.mxu0 0.0
  %827 = vmatprep.subr.mxu0 0.0
  %828 = vmatpush2.msra.mxu0 0.0
  %829 = vmatprep.subr.mxu0 0.0
  %830 = vmatpush2.msra.mxu0 0.0
  %831 = vmatprep.subr.mxu0 0.0
  %832 = vmatpush2.msra.mxu0 0.0
  %833 = vmatprep.subr.mxu0 0.0
  %834 = vmatpush2.msra.mxu0 0.0
  %835 = vmatprep.subr.mxu0 0.0
  %836 = vmatpush2.msra.mxu0 0.0
  %837 = vmatprep.subr.mxu0 0.0
  %838 = vmatpush2.msra.mxu0 0.0
  %839 = vmatprep.subr.mxu0 0.0
  %840 = vmatpush2.msra.mxu0 0.0
  %841 = vmatprep.subr.mxu0 0.0
  %842 = vmatpush2.msra.mxu0 0.0
  %843 = vmatprep.subr.mxu0 0.0
  %844 = vmatpush2.msra.mxu0 0.0
  %845 = vmatprep.subr.mxu0 0.0
  %846 = vmatpush2.msra.mxu0 0.0
  %847 = vmatprep.subr.mxu0 0.0
  %848 = vmatpush2.msra.mxu0 0.0
  %849 = vmatprep.mubr.f32.mxu0 0.0
  %850 = vmatmul.mubr.f32.gmra.mxu0 %v697
  %v851 = vpop.f32.mrf.mxu0
  %v852 = vadd.f32 0.0, %v851
  %v853 = vpop.f32.mrf.mxu0
  %854 = vmatprep.mubr.f32.mxu0 0.0
  %855 = vmatmul.mubr.f32.gmra.mxu0 %v700
  %v856 = vpop.f32.mrf.mxu0
  %v857 = vadd.f32 0.0, %v856
  %v858 = vpop.f32.mrf.mxu0
  %859 = vdwg.mxu0
  %861 = vrot.lane.b32.xlu0 %v857, 96
  %v862 = vpop.permute.xlu0 %861
  %864 = vrot.lane.b32.xlu0 %v857, 32
  %v865 = vpop.permute.xlu0 %864
  %868 = vrot.lane.b32.xlu0 %v783, 96
  %v869 = vpop.permute.xlu0 %868
  %871 = vrot.lane.b32.xlu0 %v783, 32
  %v872 = vpop.permute.xlu0 %871
  %875 = vrot.lane.b32.xlu0 %v781, 96
  %v876 = vpop.permute.xlu0 %875
  %878 = vrot.lane.b32.xlu0 %v781, 32
  %v879 = vpop.permute.xlu0 %878
  %v881 = vsel %vm326, %v862, %v865
  %v882 = vsel %vm657, %v881, %v869
  %v883 = vsel %vm645, %v882, %v872
  %v884 = vsel %vm326, %v869, %v872
  %v885 = vsel %vm657, %v884, %v876
  %v886 = vsel %vm645, %v885, %v879
  %v887 = vsel %vm326, %v876, %v879
  %v891 = vrot.slane %v883, 6
  %v892 = vrot.slane %v886, 6
  %v893 = vrot.slane %v887, 6
  %v900 = vrot.slane %v775, 6
  %v901 = vrot.slane %v777, 6
  %v902 = vrot.slane %v852, 6
  %v906 = vrot.slane %v883, 4
  %v907 = vrot.slane %v886, 4
  %v908 = vrot.slane %v887, 4
  %vm912 = vcmask 1041408
  %v913 = vsel %vm912, %v775, %v891
  %v914 = vsel %vm912, %v777, %v892
  %v915 = vsel %vm912, %v852, %v893
  %v916 = vsel %vm116, %v913, %v900
  %v917 = vsel %vm116, %v914, %v901
  %v918 = vsel %vm116, %v915, %v902
  %vm919 = vcmask 1045504
  %v920 = vsel %vm919, %v916, %v906
  %v921 = vsel %vm919, %v917, %v907
  %v922 = vsel %vm919, %v918, %v908
  %923 = vset.pattern.permute.xlu0 13
  %924 = vperm.xlu0 %923, %v109
  %v925 = vpop.permute.xlu0 %924
  %v927 = vadd.f32 %v920, %v925
  %v928 = vadd.f32 %v921, %v925
  %v929 = vadd.f32 %v922, %v925
  %v930 = vrot.slane %v775, 4
  %v931 = vrot.slane %v777, 4
  %v932 = vrot.slane %v852, 4
  %v936 = vrot.slane %v883, 2
  %v937 = vrot.slane %v886, 2
  %v938 = vrot.slane %v887, 2
  %v942 = vsel %vm912, %v930, %v936
  %v943 = vsel %vm912, %v931, %v937
  %v944 = vsel %vm912, %v932, %v938
  %v945 = vsel %vm912, %v900, %v906
  %v946 = vsel %vm912, %v901, %v907
  %v947 = vsel %vm912, %v902, %v908
  %948 = vset.pattern.permute.xlu0 12
  %949 = vperm.xlu0 %948, %v109
  %v950 = vpop.permute.xlu0 %949
  %v952 = vmul.f32 %v950, 0.0
  %v953 = vadd.f32 %v927, %v952
  %v954 = vxor.u32 %v953, 2147483648
  %v955 = vmul.f32 %v954, 1.442695
  %v956 = vpow.pop %v955
  %v957 = vadd.f32 %v956, 1.0
  %v958 = vrcp.pop %v957
  %v959 = vmul.f32 1.0, %v958
  %v960 = vsub.f32 0.0, %v942
  %v961 = vmul.f32 %v959, %v960
  %v962 = vadd.f32 %v942, %v961
  %v963 = vsub.f32 %v962, %v945
  %v965 = vrot.slane %v963, 4
  %v967 = vmul.f32 %v959, %v965
  %v969 = vrot.slane %v967, 4
  %v971 = vadd.f32 %v945, %v969
  %v973 = vrot.slane %v962, 4
  %v975 = vsel %vm116, %v962, %v973
  %v976 = vmul.f32 %v950, %v975
  %978 = vrot.lane.b32.xlu0 %v976, 32
  %v979 = vpop.permute.xlu0 %978
  %v981 = vadd.f32 %v927, %v979
  %v982 = vxor.u32 %v981, 2147483648
  %v983 = vmul.f32 %v982, 1.442695
  %v984 = vpow.pop %v983
  %v985 = vadd.f32 %v984, 1.0
  %v986 = vrcp.pop %v985
  %v987 = vmul.f32 1.0, %v986
  %989 = vrot.lane.b32.xlu0 %v942, 96
  %v990 = vpop.permute.xlu0 %989
  %v992 = vsub.f32 %v962, %v990
  %994 = vrot.lane.b32.xlu0 %v992, 32
  %v995 = vpop.permute.xlu0 %994
  %v997 = vmul.f32 %v987, %v995
  %v998 = vadd.f32 %v942, %v997
  %v999 = vsub.f32 %v998, %v945
  %v1001 = vrot.slane %v999, 4
  %v1003 = vmul.f32 %v987, %v1001
  %v1005 = vrot.slane %v1003, 4
  %v1007 = vadd.f32 %v945, %v1005
  %v1009 = vrot.slane %v998, 4
  %v1011 = vsel %vm116, %v998, %v1009
  %v1012 = vmul.f32 %v950, %v1011
  %1014 = vrot.lane.b32.xlu0 %v1012, 32
  %v1015 = vpop.permute.xlu0 %1014
  %v1017 = vadd.f32 %v927, %v1015
  %v1018 = vxor.u32 %v1017, 2147483648
  %v1019 = vmul.f32 %v1018, 1.442695
  %v1020 = vpow.pop %v1019
  %v1021 = vadd.f32 %v1020, 1.0
  %v1022 = vrcp.pop %v1021
  %v1023 = vmul.f32 1.0, %v1022
  %v1024 = vsub.f32 %v998, %v990
  %1026 = vrot.lane.b32.xlu0 %v1024, 32
  %v1027 = vpop.permute.xlu0 %1026
  %v1029 = vmul.f32 %v1023, %v1027
  %v1030 = vadd.f32 %v942, %v1029
  %v1031 = vsub.f32 %v1030, %v945
  %v1033 = vrot.slane %v1031, 4
  %v1035 = vmul.f32 %v1023, %v1033
  %v1037 = vrot.slane %v1035, 4
  %v1039 = vadd.f32 %v945, %v1037
  %v1041 = vrot.slane %v1030, 4
  %v1043 = vsel %vm116, %v1030, %v1041
  %v1044 = vmul.f32 %v950, %v1043
  %1046 = vrot.lane.b32.xlu0 %v1044, 32
  %v1047 = vpop.permute.xlu0 %1046
  %v1049 = vadd.f32 %v927, %v1047
  %v1050 = vxor.u32 %v1049, 2147483648
  %v1051 = vmul.f32 %v1050, 1.442695
  %v1052 = vpow.pop %v1051
  %v1053 = vadd.f32 %v1052, 1.0
  %v1054 = vrcp.pop %v1053
  %v1055 = vmul.f32 1.0, %v1054
  %v1056 = vsub.f32 %v1030, %v990
  %1058 = vrot.lane.b32.xlu0 %v1056, 32
  %v1059 = vpop.permute.xlu0 %1058
  %v1061 = vmul.f32 %v1055, %v1059
  %v1062 = vadd.f32 %v942, %v1061
  %v1063 = vsub.f32 %v1062, %v945
  %v1065 = vrot.slane %v1063, 4
  %v1067 = vmul.f32 %v1055, %v1065
  %v1069 = vrot.slane %v1067, 4
  %v1071 = vadd.f32 %v945, %v1069
  %v1073 = vrot.slane %v1062, 4
  %v1075 = vsel %vm116, %v1062, %v1073
  %v1076 = vmul.f32 %v950, %v1075
  %1078 = vrot.lane.b32.xlu0 %v1076, 32
  %v1079 = vpop.permute.xlu0 %1078
  %v1081 = vadd.f32 %v928, %v1079
  %v1082 = vxor.u32 %v1081, 2147483648
  %v1083 = vmul.f32 %v1082, 1.442695
  %v1084 = vpow.pop %v1083
  %v1085 = vadd.f32 %v1084, 1.0
  %v1086 = vrcp.pop %v1085
  %v1087 = vmul.f32 1.0, %v1086
  %1089 = vrot.lane.b32.xlu0 %v943, 96
  %v1090 = vpop.permute.xlu0 %1089
  %v1092 = vsub.f32 %v1062, %v1090
  %1094 = vrot.lane.b32.xlu0 %v1092, 32
  %v1095 = vpop.permute.xlu0 %1094
  %v1097 = vmul.f32 %v1087, %v1095
  %v1098 = vadd.f32 %v943, %v1097
  %v1099 = vsub.f32 %v1098, %v946
  %v1101 = vrot.slane %v1099, 4
  %v1103 = vmul.f32 %v1087, %v1101
  %v1105 = vrot.slane %v1103, 4
  %v1107 = vadd.f32 %v946, %v1105
  %v1109 = vrot.slane %v1098, 4
  %v1111 = vsel %vm116, %v1098, %v1109
  %v1112 = vmul.f32 %v950, %v1111
  %1114 = vrot.lane.b32.xlu0 %v1112, 32
  %v1115 = vpop.permute.xlu0 %1114
  %v1117 = vadd.f32 %v928, %v1115
  %v1118 = vxor.u32 %v1117, 2147483648
  %v1119 = vmul.f32 %v1118, 1.442695
  %v1120 = vpow.pop %v1119
  %v1121 = vadd.f32 %v1120, 1.0
  %v1122 = vrcp.pop %v1121
  %v1123 = vmul.f32 1.0, %v1122
  %v1124 = vsub.f32 %v1098, %v1090
  %1126 = vrot.lane.b32.xlu0 %v1124, 32
  %v1127 = vpop.permute.xlu0 %1126
  %v1129 = vmul.f32 %v1123, %v1127
  %v1130 = vadd.f32 %v943, %v1129
  %v1131 = vsub.f32 %v1130, %v946
  %v1133 = vrot.slane %v1131, 4
  %v1135 = vmul.f32 %v1123, %v1133
  %v1137 = vrot.slane %v1135, 4
  %v1139 = vadd.f32 %v946, %v1137
  %v1141 = vrot.slane %v1130, 4
  %v1143 = vsel %vm116, %v1130, %v1141
  %v1144 = vmul.f32 %v950, %v1143
  %1146 = vrot.lane.b32.xlu0 %v1144, 32
  %v1147 = vpop.permute.xlu0 %1146
  %v1149 = vadd.f32 %v928, %v1147
  %v1150 = vxor.u32 %v1149, 2147483648
  %v1151 = vmul.f32 %v1150, 1.442695
  %v1152 = vpow.pop %v1151
  %v1153 = vadd.f32 %v1152, 1.0
  %v1154 = vrcp.pop %v1153
  %v1155 = vmul.f32 1.0, %v1154
  %v1156 = vsub.f32 %v1130, %v1090
  %1158 = vrot.lane.b32.xlu0 %v1156, 32
  %v1159 = vpop.permute.xlu0 %1158
  %v1161 = vmul.f32 %v1155, %v1159
  %v1162 = vadd.f32 %v943, %v1161
  %v1163 = vsub.f32 %v1162, %v946
  %v1165 = vrot.slane %v1163, 4
  %v1167 = vmul.f32 %v1155, %v1165
  %v1169 = vrot.slane %v1167, 4
  %v1171 = vadd.f32 %v946, %v1169
  %v1173 = vrot.slane %v1162, 4
  %v1175 = vsel %vm116, %v1162, %v1173
  %v1176 = vmul.f32 %v950, %v1175
  %1178 = vrot.lane.b32.xlu0 %v1176, 32
  %v1179 = vpop.permute.xlu0 %1178
  %v1181 = vadd.f32 %v928, %v1179
  %v1182 = vxor.u32 %v1181, 2147483648
  %v1183 = vmul.f32 %v1182, 1.442695
  %v1184 = vpow.pop %v1183
  %v1185 = vadd.f32 %v1184, 1.0
  %v1186 = vrcp.pop %v1185
  %v1187 = vmul.f32 1.0, %v1186
  %v1188 = vsub.f32 %v1162, %v1090
  %1190 = vrot.lane.b32.xlu0 %v1188, 32
  %v1191 = vpop.permute.xlu0 %1190
  %v1193 = vmul.f32 %v1187, %v1191
  %v1194 = vadd.f32 %v943, %v1193
  %v1195 = vsub.f32 %v1194, %v946
  %v1197 = vrot.slane %v1195, 4
  %v1199 = vmul.f32 %v1187, %v1197
  %v1201 = vrot.slane %v1199, 4
  %v1203 = vadd.f32 %v946, %v1201
  %v1205 = vrot.slane %v1194, 4
  %v1207 = vsel %vm116, %v1194, %v1205
  %v1208 = vmul.f32 %v950, %v1207
  %1210 = vrot.lane.b32.xlu0 %v1208, 32
  %v1211 = vpop.permute.xlu0 %1210
  %v1213 = vadd.f32 %v929, %v1211
  %v1214 = vxor.u32 %v1213, 2147483648
  %v1215 = vmul.f32 %v1214, 1.442695
  %v1216 = vpow.pop %v1215
  %v1217 = vadd.f32 %v1216, 1.0
  %v1218 = vrcp.pop %v1217
  %v1219 = vmul.f32 1.0, %v1218
  %1221 = vrot.lane.b32.xlu0 %v944, 96
  %v1222 = vpop.permute.xlu0 %1221
  %v1224 = vsub.f32 %v1194, %v1222
  %1226 = vrot.lane.b32.xlu0 %v1224, 32
  %v1227 = vpop.permute.xlu0 %1226
  %v1229 = vmul.f32 %v1219, %v1227
  %v1230 = vadd.f32 %v944, %v1229
  %v1231 = vsub.f32 %v1230, %v947
  %v1233 = vrot.slane %v1231, 4
  %v1235 = vmul.f32 %v1219, %v1233
  %v1237 = vrot.slane %v1235, 4
  %v1239 = vadd.f32 %v947, %v1237
  %v1241 = vrot.slane %v1230, 4
  %v1243 = vsel %vm116, %v1230, %v1241
  %v1244 = vmul.f32 %v950, %v1243
  %1246 = vrot.lane.b32.xlu0 %v1244, 32
  %v1247 = vpop.permute.xlu0 %1246
  %v1249 = vadd.f32 %v929, %v1247
  %v1250 = vxor.u32 %v1249, 2147483648
  %v1251 = vmul.f32 %v1250, 1.442695
  %v1252 = vpow.pop %v1251
  %v1253 = vadd.f32 %v1252, 1.0
  %v1254 = vrcp.pop %v1253
  %v1255 = vmul.f32 1.0, %v1254
  %v1256 = vsub.f32 %v1230, %v1222
  %1258 = vrot.lane.b32.xlu0 %v1256, 32
  %v1259 = vpop.permute.xlu0 %1258
  %v1261 = vmul.f32 %v1255, %v1259
  %v1262 = vadd.f32 %v944, %v1261
  %v1263 = vsub.f32 %v1262, %v947
  %v1265 = vrot.slane %v1263, 4
  %v1267 = vmul.f32 %v1255, %v1265
  %v1269 = vrot.slane %v1267, 4
  %v1271 = vadd.f32 %v947, %v1269
  %v1272 = vsel %vm326, %v971, %v1007
  %v1273 = vsel %vm657, %v1272, %v1039
  %v1274 = vsel %vm645, %v1273, %v1071
  %v1275 = vsel %vm326, %v1107, %v1139
  %v1276 = vsel %vm657, %v1275, %v1171
  %v1277 = vsel %vm645, %v1276, %v1203
  %v1278 = vsel %vm326, %v1239, %v1271
  %1280 = vrot.lane.b32.xlu0 %v1271, 96
  %v1281 = vpop.permute.xlu0 %1280
  %1284 = vrot.lane.b32.xlu0 %v1239, 32
  %v1285 = vpop.permute.xlu0 %1284
  %1288 = vrot.lane.b32.xlu0 %v1203, 96
  %v1289 = vpop.permute.xlu0 %1288
  %1292 = vrot.lane.b32.xlu0 %v1171, 32
  %v1293 = vpop.permute.xlu0 %1292
  %1296 = vrot.lane.b32.xlu0 %v1139, 96
  %v1297 = vpop.permute.xlu0 %1296
  %1300 = vrot.lane.b32.xlu0 %v1107, 32
  %v1301 = vpop.permute.xlu0 %1300
  %1304 = vrot.lane.b32.xlu0 %v1071, 96
  %v1305 = vpop.permute.xlu0 %1304
  %1308 = vrot.lane.b32.xlu0 %v1039, 32
  %v1309 = vpop.permute.xlu0 %1308
  %1312 = vrot.lane.b32.xlu0 %v1007, 96
  %v1313 = vpop.permute.xlu0 %1312
  %1316 = vrot.lane.b32.xlu0 %v971, 32
  %v1317 = vpop.permute.xlu0 %1316
  %v1319 = vsel %vm326, %v1281, %v1285
  %v1320 = vsel %vm657, %v1319, %v1289
  %v1321 = vsel %vm645, %v1320, %v1293
  %v1322 = vsel %vm326, %v1297, %v1301
  %v1323 = vsel %vm657, %v1322, %v1305
  %v1324 = vsel %vm645, %v1323, %v1309
  %v1325 = vsel %vm326, %v1313, %v1317
  %v1326 = vsel %vm912, %v1274, %v1321
  %v1327 = vsel %vm912, %v1277, %v1324
  %v1328 = vsel %vm912, %v1278, %v1325
  %1329 = vset.pattern.permute.xlu0 0
  %1330 = vperm.xlu0 %1329, %v109
  %v1331 = vpop.permute.xlu0 %1330
  %vm1333 = vcmask 31744
  %v1335 = vsel %vm1333, %v105, 0
  %v1338 = vsel %vm116, %v1326, 0
  %v1341 = vsel %vm116, %v1327, 0
  %v1344 = vsel %vm116, %v1328, 0
  %1346 = vmatprep.subr.mxu0 0.0
  %1347 = vmatpush1.msra.mxu0 0.0
  %1348 = vmatprep.subr.mxu0 0.0
  %1349 = vmatpush1.msra.mxu0 0.0
  %1350 = vmatprep.subr.mxu0 0.0
  %1351 = vmatpush1.msra.mxu0 0.0
  %1352 = vmatprep.subr.mxu0 0.0
  %1353 = vmatpush1.msra.mxu0 0.0
  %1354 = vmatprep.subr.mxu0 0.0
  %1355 = vmatpush1.msra.mxu0 0.0
  %1356 = vmatprep.subr.mxu0 0.0
  %1357 = vmatpush1.msra.mxu0 0.0
  %1358 = vmatprep.subr.mxu0 0.0
  %1359 = vmatpush1.msra.mxu0 0.0
  %1360 = vmatprep.subr.mxu0 0.0
  %1361 = vmatpush1.msra.mxu0 0.0
  %1362 = vmatprep.subr.mxu0 0.0
  %1363 = vmatpush1.msra.mxu0 0.0
  %1364 = vmatprep.subr.mxu0 0.0
  %1365 = vmatpush1.msra.mxu0 0.0
  %1366 = vmatprep.subr.mxu0 0.0
  %1367 = vmatpush1.msra.mxu0 0.0
  %1368 = vmatprep.subr.mxu0 0.0
  %1369 = vmatpush1.msra.mxu0 0.0
  %1370 = vmatprep.subr.mxu0 0.0
  %1371 = vmatpush1.msra.mxu0 0.0
  %1372 = vmatprep.subr.mxu0 0.0
  %1373 = vmatpush1.msra.mxu0 0.0
  %1374 = vmatprep.subr.mxu0 0.0
  %1375 = vmatpush1.msra.mxu0 0.0
  %1376 = vmatprep.subr.mxu0 %v1341
  %1377 = vmatpush1.msra.mxu0 %v1338
  %1378 = vmatprep.subr.mxu0 0.0
  %1379 = vmatpush2.msra.mxu0 0.0
  %1380 = vmatprep.subr.mxu0 0.0
  %1381 = vmatpush2.msra.mxu0 0.0
  %1382 = vmatprep.subr.mxu0 0.0
  %1383 = vmatpush2.msra.mxu0 0.0
  %1384 = vmatprep.subr.mxu0 0.0
  %1385 = vmatpush2.msra.mxu0 0.0
  %1386 = vmatprep.subr.mxu0 0.0
  %1387 = vmatpush2.msra.mxu0 0.0
  %1388 = vmatprep.subr.mxu0 0.0
  %1389 = vmatpush2.msra.mxu0 0.0
  %1390 = vmatprep.subr.mxu0 0.0
  %1391 = vmatpush2.msra.mxu0 0.0
  %1392 = vmatprep.subr.mxu0 0.0
  %1393 = vmatpush2.msra.mxu0 0.0
  %1394 = vmatprep.subr.mxu0 0.0
  %1395 = vmatpush2.msra.mxu0 0.0
  %1396 = vmatprep.subr.mxu0 0.0
  %1397 = vmatpush2.msra.mxu0 0.0
  %1398 = vmatprep.subr.mxu0 0.0
  %1399 = vmatpush2.msra.mxu0 0.0
  %1400 = vmatprep.subr.mxu0 0.0
  %1401 = vmatpush2.msra.mxu0 0.0
  %1402 = vmatprep.subr.mxu0 0.0
  %1403 = vmatpush2.msra.mxu0 0.0
  %1404 = vmatprep.subr.mxu0 0.0
  %1405 = vmatpush2.msra.mxu0 0.0
  %1406 = vmatprep.subr.mxu0 0.0
  %1407 = vmatpush2.msra.mxu0 0.0
  %1408 = vmatprep.subr.mxu0 0.0
  %1409 = vmatpush2.msra.mxu0 0.0
  %1410 = vmatprep.mubr.f32.mxu0 0.0
  %1411 = vmatmul.mubr.f32.gmra.mxu0 %v1335
  %v1412 = vpop.f32.mrf.mxu0
  %v1413 = vadd.f32 %v1331, %v1412
  %v1414 = vpop.f32.mrf.mxu0
  %v1415 = vadd.f32 %v1331, %v1414
  %1416 = vdwg.mxu0
  %1417 = vmatprep.subr.mxu0 0.0
  %1418 = vmatpush1.msra.mxu0 0.0
  %1419 = vmatprep.subr.mxu0 0.0
  %1420 = vmatpush1.msra.mxu0 0.0
  %1421 = vmatprep.subr.mxu0 0.0
  %1422 = vmatpush1.msra.mxu0 0.0
  %1423 = vmatprep.subr.mxu0 0.0
  %1424 = vmatpush1.msra.mxu0 0.0
  %1425 = vmatprep.subr.mxu0 0.0
  %1426 = vmatpush1.msra.mxu0 0.0
  %1427 = vmatprep.subr.mxu0 0.0
  %1428 = vmatpush1.msra.mxu0 0.0
  %1429 = vmatprep.subr.mxu0 0.0
  %1430 = vmatpush1.msra.mxu0 0.0
  %1431 = vmatprep.subr.mxu0 0.0
  %1432 = vmatpush1.msra.mxu0 0.0
  %1433 = vmatprep.subr.mxu0 0.0
  %1434 = vmatpush1.msra.mxu0 0.0
  %1435 = vmatprep.subr.mxu0 0.0
  %1436 = vmatpush1.msra.mxu0 0.0
  %1437 = vmatprep.subr.mxu0 0.0
  %1438 = vmatpush1.msra.mxu0 0.0
  %1439 = vmatprep.subr.mxu0 0.0
  %1440 = vmatpush1.msra.mxu0 0.0
  %1441 = vmatprep.subr.mxu0 0.0
  %1442 = vmatpush1.msra.mxu0 0.0
  %1443 = vmatprep.subr.mxu0 0.0
  %1444 = vmatpush1.msra.mxu0 0.0
  %1445 = vmatprep.subr.mxu0 0.0
  %1446 = vmatpush1.msra.mxu0 0.0
  %1447 = vmatprep.subr.mxu0 0.0
  %1448 = vmatpush1.msra.mxu0 %v1344
  %1449 = vmatprep.subr.mxu0 0.0
  %1450 = vmatpush2.msra.mxu0 0.0
  %1451 = vmatprep.subr.mxu0 0.0
  %1452 = vmatpush2.msra.mxu0 0.0
  %1453 = vmatprep.subr.mxu0 0.0
  %1454 = vmatpush2.msra.mxu0 0.0
  %1455 = vmatprep.subr.mxu0 0.0
  %1456 = vmatpush2.msra.mxu0 0.0
  %1457 = vmatprep.subr.mxu0 0.0
  %1458 = vmatpush2.msra.mxu0 0.0
  %1459 = vmatprep.subr.mxu0 0.0
  %1460 = vmatpush2.msra.mxu0 0.0
  %1461 = vmatprep.subr.mxu0 0.0
  %1462 = vmatpush2.msra.mxu0 0.0
  %1463 = vmatprep.subr.mxu0 0.0
  %1464 = vmatpush2.msra.mxu0 0.0
  %1465 = vmatprep.subr.mxu0 0.0
  %1466 = vmatpush2.msra.mxu0 0.0
  %1467 = vmatprep.subr.mxu0 0.0
  %1468 = vmatpush2.msra.mxu0 0.0
  %1469 = vmatprep.subr.mxu0 0.0
  %1470 = vmatpush2.msra.mxu0 0.0
  %1471 = vmatprep.subr.mxu0 0.0
  %1472 = vmatpush2.msra.mxu0 0.0
  %1473 = vmatprep.subr.mxu0 0.0
  %1474 = vmatpush2.msra.mxu0 0.0
  %1475 = vmatprep.subr.mxu0 0.0
  %1476 = vmatpush2.msra.mxu0 0.0
  %1477 = vmatprep.subr.mxu0 0.0
  %1478 = vmatpush2.msra.mxu0 0.0
  %1479 = vmatprep.subr.mxu0 0.0
  %1480 = vmatpush2.msra.mxu0 0.0
  %1481 = vmatprep.mubr.f32.mxu0 0.0
  %1482 = vmatmul.mubr.f32.gmra.mxu0 %v1335
  %v1483 = vpop.f32.mrf.mxu0
  %v1484 = vadd.f32 %v1331, %v1483
  %v1485 = vpop.f32.mrf.mxu0
  %1486 = vdwg.mxu0
  %v1487 = vrot.slane %v1413, 4
  %v1488 = vadd.f32 %v1413, %v1487
  %v1489 = vrot.slane %v1488, 2
  %v1490 = vadd.f32 %v1488, %v1489
  %v1491 = vrot.slane %v1490, 1
  %v1492 = vadd.f32 %v1490, %v1491
  %v1493 = vrot.slane %v1415, 4
  %v1494 = vadd.f32 %v1415, %v1493
  %v1495 = vrot.slane %v1494, 2
  %v1496 = vadd.f32 %v1494, %v1495
  %v1497 = vrot.slane %v1496, 1
  %v1498 = vadd.f32 %v1496, %v1497
  %v1499 = vsel %vm657, %v1484, 0.0
  %v1500 = vrot.slane %v1499, 4
  %v1501 = vadd.f32 %v1499, %v1500
  %v1502 = vrot.slane %v1501, 2
  %v1503 = vadd.f32 %v1501, %v1502
  %v1504 = vrot.slane %v1503, 1
  %v1505 = vadd.f32 %v1503, %v1504
  %v1506 = vmul.f32 %v1413, %v1413
  %v1507 = vmul.f32 %v1415, %v1415
  %v1508 = vmul.f32 %v1484, %v1484
  %v1509 = vrot.slane %v1506, 4
  %v1510 = vadd.f32 %v1506, %v1509
  %v1511 = vrot.slane %v1510, 2
  %v1512 = vadd.f32 %v1510, %v1511
  %v1513 = vrot.slane %v1512, 1
  %v1514 = vadd.f32 %v1512, %v1513
  %v1515 = vrot.slane %v1507, 4
  %v1516 = vadd.f32 %v1507, %v1515
  %v1517 = vrot.slane %v1516, 2
  %v1518 = vadd.f32 %v1516, %v1517
  %v1519 = vrot.slane %v1518, 1
  %v1520 = vadd.f32 %v1518, %v1519
  %v1521 = vsel %vm657, %v1508, 0.0
  %v1522 = vrot.slane %v1521, 4
  %v1523 = vadd.f32 %v1521, %v1522
  %v1524 = vrot.slane %v1523, 2
  %v1525 = vadd.f32 %v1523, %v1524
  %v1526 = vrot.slane %v1525, 1
  %v1527 = vadd.f32 %v1525, %v1526
  %v1528 = vsel %vm181, %v1492, %v1514
  %v1529 = vsel %vm181, %v1498, %v1520
  %v1530 = vsel %vm181, %v1505, %v1527
  %v1532 = vsel %vm657, %v1530, 0
  %1534 = vmatprep.subr.mxu0 0.0
  %1535 = vmatpush1.msra.mxu0 %v34
  %1536 = vmatprep.subr.mxu0 0.0
  %1537 = vmatpush1.msra.mxu0 %v33
  %1538 = vmatprep.subr.mxu0 0.0
  %1539 = vmatpush1.msra.mxu0 %v32
  %1540 = vmatprep.subr.mxu0 0.0
  %1541 = vmatpush1.msra.mxu0 %v31
  %1542 = vmatprep.subr.mxu0 0.0
  %1543 = vmatpush1.msra.mxu0 %v30
  %1544 = vmatprep.subr.mxu0 0.0
  %1545 = vmatpush1.msra.mxu0 %v29
  %1546 = vmatprep.subr.mxu0 0.0
  %1547 = vmatpush1.msra.mxu0 %v28
  %1548 = vmatprep.subr.mxu0 0.0
  %1549 = vmatpush1.msra.mxu0 %v27
  %1550 = vmatprep.subr.mxu0 0.0
  %1551 = vmatpush1.msra.mxu0 %v26
  %1552 = vmatprep.subr.mxu0 0.0
  %1553 = vmatpush1.msra.mxu0 %v25
  %1554 = vmatprep.subr.mxu0 0.0
  %1555 = vmatpush1.msra.mxu0 %v24
  %1556 = vmatprep.subr.mxu0 0.0
  %1557 = vmatpush1.msra.mxu0 %v23
  %1558 = vmatprep.subr.mxu0 0.0
  %1559 = vmatpush1.msra.mxu0 %v22
  %1560 = vmatprep.subr.mxu0 0.0
  %1561 = vmatpush1.msra.mxu0 %v21
  %1562 = vmatprep.subr.mxu0 0.0
  %1563 = vmatpush1.msra.mxu0 %v20
  %1564 = vmatprep.subr.mxu0 0.0
  %1565 = vmatpush1.msra.mxu0 %v19
  %1566 = vmatprep.subr.mxu0 0.0
  %1567 = vmatpush2.msra.mxu0 %v50
  %1568 = vmatprep.subr.mxu0 0.0
  %1569 = vmatpush2.msra.mxu0 %v49
  %1570 = vmatprep.subr.mxu0 0.0
  %1571 = vmatpush2.msra.mxu0 %v48
  %1572 = vmatprep.subr.mxu0 0.0
  %1573 = vmatpush2.msra.mxu0 %v47
  %1574 = vmatprep.subr.mxu0 0.0
  %1575 = vmatpush2.msra.mxu0 %v46
  %1576 = vmatprep.subr.mxu0 0.0
  %1577 = vmatpush2.msra.mxu0 %v45
  %1578 = vmatprep.subr.mxu0 0.0
  %1579 = vmatpush2.msra.mxu0 %v44
  %1580 = vmatprep.subr.mxu0 0.0
  %1581 = vmatpush2.msra.mxu0 %v43
  %1582 = vmatprep.subr.mxu0 0.0
  %1583 = vmatpush2.msra.mxu0 %v42
  %1584 = vmatprep.subr.mxu0 0.0
  %1585 = vmatpush2.msra.mxu0 %v41
  %1586 = vmatprep.subr.mxu0 0.0
  %1587 = vmatpush2.msra.mxu0 %v40
  %1588 = vmatprep.subr.mxu0 0.0
  %1589 = vmatpush2.msra.mxu0 %v39
  %1590 = vmatprep.subr.mxu0 0.0
  %1591 = vmatpush2.msra.mxu0 %v38
  %1592 = vmatprep.subr.mxu0 0.0
  %1593 = vmatpush2.msra.mxu0 %v37
  %1594 = vmatprep.subr.mxu0 0.0
  %1595 = vmatpush2.msra.mxu0 %v36
  %1596 = vmatprep.subr.mxu0 0.0
  %1597 = vmatpush2.msra.mxu0 %v35
  %1598 = vmatprep.mubr.f32.mxu0 %v1529
  %1599 = vmatmul.mubr.f32.gmra.mxu0 %v1528
  %v1600 = vpop.f32.mrf.mxu0
  %v1601 = vadd.f32 0.0, %v1600
  %v1602 = vpop.f32.mrf.mxu0
  %1603 = vdwg.mxu0
  %1604 = vmatprep.subr.mxu0 0.0
  %1605 = vmatpush1.msra.mxu0 0.0
  %1606 = vmatprep.subr.mxu0 0.0
  %1607 = vmatpush1.msra.mxu0 0.0
  %1608 = vmatprep.subr.mxu0 0.0
  %1609 = vmatpush1.msra.mxu0 0.0
  %1610 = vmatprep.subr.mxu0 0.0
  %1611 = vmatpush1.msra.mxu0 0.0
  %1612 = vmatprep.subr.mxu0 0.0
  %1613 = vmatpush1.msra.mxu0 0.0
  %1614 = vmatprep.subr.mxu0 0.0
  %1615 = vmatpush1.msra.mxu0 0.0
  %1616 = vmatprep.subr.mxu0 0.0
  %1617 = vmatpush1.msra.mxu0 0.0
  %1618 = vmatprep.subr.mxu0 0.0
  %1619 = vmatpush1.msra.mxu0 0.0
  %1620 = vmatprep.subr.mxu0 0.0
  %1621 = vmatpush1.msra.mxu0 %v58
  %1622 = vmatprep.subr.mxu0 0.0
  %1623 = vmatpush1.msra.mxu0 %v57
  %1624 = vmatprep.subr.mxu0 0.0
  %1625 = vmatpush1.msra.mxu0 %v56
  %1626 = vmatprep.subr.mxu0 0.0
  %1627 = vmatpush1.msra.mxu0 %v55
  %1628 = vmatprep.subr.mxu0 0.0
  %1629 = vmatpush1.msra.mxu0 %v54
  %1630 = vmatprep.subr.mxu0 0.0
  %1631 = vmatpush1.msra.mxu0 %v53
  %1632 = vmatprep.subr.mxu0 0.0
  %1633 = vmatpush1.msra.mxu0 %v52
  %1634 = vmatprep.subr.mxu0 0.0
  %1635 = vmatpush1.msra.mxu0 %v51
  %1636 = vmatprep.subr.mxu0 0.0
  %1637 = vmatpush2.msra.mxu0 0.0
  %1638 = vmatprep.subr.mxu0 0.0
  %1639 = vmatpush2.msra.mxu0 0.0
  %1640 = vmatprep.subr.mxu0 0.0
  %1641 = vmatpush2.msra.mxu0 0.0
  %1642 = vmatprep.subr.mxu0 0.0
  %1643 = vmatpush2.msra.mxu0 0.0
  %1644 = vmatprep.subr.mxu0 0.0
  %1645 = vmatpush2.msra.mxu0 0.0
  %1646 = vmatprep.subr.mxu0 0.0
  %1647 = vmatpush2.msra.mxu0 0.0
  %1648 = vmatprep.subr.mxu0 0.0
  %1649 = vmatpush2.msra.mxu0 0.0
  %1650 = vmatprep.subr.mxu0 0.0
  %1651 = vmatpush2.msra.mxu0 0.0
  %1652 = vmatprep.subr.mxu0 0.0
  %1653 = vmatpush2.msra.mxu0 0.0
  %1654 = vmatprep.subr.mxu0 0.0
  %1655 = vmatpush2.msra.mxu0 0.0
  %1656 = vmatprep.subr.mxu0 0.0
  %1657 = vmatpush2.msra.mxu0 0.0
  %1658 = vmatprep.subr.mxu0 0.0
  %1659 = vmatpush2.msra.mxu0 0.0
  %1660 = vmatprep.subr.mxu0 0.0
  %1661 = vmatpush2.msra.mxu0 0.0
  %1662 = vmatprep.subr.mxu0 0.0
  %1663 = vmatpush2.msra.mxu0 0.0
  %1664 = vmatprep.subr.mxu0 0.0
  %1665 = vmatpush2.msra.mxu0 0.0
  %1666 = vmatprep.subr.mxu0 0.0
  %1667 = vmatpush2.msra.mxu0 0.0
  %1668 = vmatprep.mubr.f32.mxu0 0.0
  %1669 = vmatmul.mubr.f32.gmra.mxu0 %v1532
  %v1670 = vpop.f32.mrf.mxu0
  %v1671 = vadd.f32 %v1601, %v1670
  %v1672 = vpop.f32.mrf.mxu0
  %1673 = vdwg.mxu0
  %v1674 = vmul.f32 %v1671, 0.0125
  %v1675 = vmul.f32 %v1674, %v1674
  %v1677 = vrot.slane %v1675, 7
  %v1679 = vsub.f32 %v1674, %v1677
  %v1680 = vadd.f32 %v1679, 1e-06
  %v1681 = vrsqrt.pop %v1680
  %v1682 = vsel %vm181, %v1674, %v1681
  %v1684 = vsel %vm326, %v1682, 0
  %1686 = vmatprep.subr.mxu0 0.0
  %1687 = vmatpush1.msra.mxu0 0.0
  %1688 = vmatprep.subr.mxu0 0.0
  %1689 = vmatpush1.msra.mxu0 0.0
  %1690 = vmatprep.subr.mxu0 0.0
  %1691 = vmatpush1.msra.mxu0 0.0
  %1692 = vmatprep.subr.mxu0 0.0
  %1693 = vmatpush1.msra.mxu0 0.0
  %1694 = vmatprep.subr.mxu0 0.0
  %1695 = vmatpush1.msra.mxu0 0.0
  %1696 = vmatprep.subr.mxu0 0.0
  %1697 = vmatpush1.msra.mxu0 0.0
  %1698 = vmatprep.subr.mxu0 0.0
  %1699 = vmatpush1.msra.mxu0 0.0
  %1700 = vmatprep.subr.mxu0 0.0
  %1701 = vmatpush1.msra.mxu0 0.0
  %1702 = vmatprep.subr.mxu0 0.0
  %1703 = vmatpush1.msra.mxu0 0.0
  %1704 = vmatprep.subr.mxu0 0.0
  %1705 = vmatpush1.msra.mxu0 0.0
  %1706 = vmatprep.subr.mxu0 0.0
  %1707 = vmatpush1.msra.mxu0 0.0
  %1708 = vmatprep.subr.mxu0 0.0
  %1709 = vmatpush1.msra.mxu0 0.0
  %1710 = vmatprep.subr.mxu0 %v96
  %1711 = vmatpush1.msra.mxu0 %v95
  %1712 = vmatprep.subr.mxu0 %v92
  %1713 = vmatpush1.msra.mxu0 %v91
  %1714 = vmatprep.subr.mxu0 %v88
  %1715 = vmatpush1.msra.mxu0 %v87
  %1716 = vmatprep.subr.mxu0 %v84
  %1717 = vmatpush1.msra.mxu0 %v83
  %1718 = vmatprep.subr.mxu0 0.0
  %1719 = vmatpush2.msra.mxu0 0.0
  %1720 = vmatprep.subr.mxu0 0.0
  %1721 = vmatpush2.msra.mxu0 0.0
  %1722 = vmatprep.subr.mxu0 0.0
  %1723 = vmatpush2.msra.mxu0 0.0
  %1724 = vmatprep.subr.mxu0 0.0
  %1725 = vmatpush2.msra.mxu0 0.0
  %1726 = vmatprep.subr.mxu0 0.0
  %1727 = vmatpush2.msra.mxu0 0.0
  %1728 = vmatprep.subr.mxu0 0.0
  %1729 = vmatpush2.msra.mxu0 0.0
  %1730 = vmatprep.subr.mxu0 0.0
  %1731 = vmatpush2.msra.mxu0 0.0
  %1732 = vmatprep.subr.mxu0 0.0
  %1733 = vmatpush2.msra.mxu0 0.0
  %1734 = vmatprep.subr.mxu0 0.0
  %1735 = vmatpush2.msra.mxu0 0.0
  %1736 = vmatprep.subr.mxu0 0.0
  %1737 = vmatpush2.msra.mxu0 0.0
  %1738 = vmatprep.subr.mxu0 0.0
  %1739 = vmatpush2.msra.mxu0 0.0
  %1740 = vmatprep.subr.mxu0 0.0
  %1741 = vmatpush2.msra.mxu0 0.0
  %1742 = vmatprep.subr.mxu0 0.0
  %1743 = vmatpush2.msra.mxu0 0.0
  %1744 = vmatprep.subr.mxu0 0.0
  %1745 = vmatpush2.msra.mxu0 0.0
  %1746 = vmatprep.subr.mxu0 0.0
  %1747 = vmatpush2.msra.mxu0 0.0
  %1748 = vmatprep.subr.mxu0 0.0
  %1749 = vmatpush2.msra.mxu0 0.0
  %1750 = vmatprep.mubr.f32.mxu0 0.0
  %1751 = vmatmul.mubr.f32.gmra.mxu0 %v1684
  %v1752 = vpop.f32.mrf.mxu0
  %v1753 = vadd.f32 0.0, %v1752
  %v1754 = vpop.f32.mrf.mxu0
  %v1755 = vadd.f32 0.0, %v1754
  %1756 = vdwg.mxu0
  %1757 = vmatprep.subr.mxu0 0.0
  %1758 = vmatpush1.msra.mxu0 0.0
  %1759 = vmatprep.subr.mxu0 0.0
  %1760 = vmatpush1.msra.mxu0 0.0
  %1761 = vmatprep.subr.mxu0 0.0
  %1762 = vmatpush1.msra.mxu0 0.0
  %1763 = vmatprep.subr.mxu0 0.0
  %1764 = vmatpush1.msra.mxu0 0.0
  %1765 = vmatprep.subr.mxu0 0.0
  %1766 = vmatpush1.msra.mxu0 0.0
  %1767 = vmatprep.subr.mxu0 0.0
  %1768 = vmatpush1.msra.mxu0 0.0
  %1769 = vmatprep.subr.mxu0 0.0
  %1770 = vmatpush1.msra.mxu0 0.0
  %1771 = vmatprep.subr.mxu0 0.0
  %1772 = vmatpush1.msra.mxu0 0.0
  %1773 = vmatprep.subr.mxu0 0.0
  %1774 = vmatpush1.msra.mxu0 0.0
  %1775 = vmatprep.subr.mxu0 0.0
  %1776 = vmatpush1.msra.mxu0 0.0
  %1777 = vmatprep.subr.mxu0 0.0
  %1778 = vmatpush1.msra.mxu0 0.0
  %1779 = vmatprep.subr.mxu0 0.0
  %1780 = vmatpush1.msra.mxu0 0.0
  %1781 = vmatprep.subr.mxu0 0.0
  %1782 = vmatpush1.msra.mxu0 %v97
  %1783 = vmatprep.subr.mxu0 0.0
  %1784 = vmatpush1.msra.mxu0 %v93
  %1785 = vmatprep.subr.mxu0 0.0
  %1786 = vmatpush1.msra.mxu0 %v89
  %1787 = vmatprep.subr.mxu0 0.0
  %1788 = vmatpush1.msra.mxu0 %v85
  %1789 = vmatprep.subr.mxu0 0.0
  %1790 = vmatpush2.msra.mxu0 0.0
  %1791 = vmatprep.subr.mxu0 0.0
  %1792 = vmatpush2.msra.mxu0 0.0
  %1793 = vmatprep.subr.mxu0 0.0
  %1794 = vmatpush2.msra.mxu0 0.0
  %1795 = vmatprep.subr.mxu0 0.0
  %1796 = vmatpush2.msra.mxu0 0.0
  %1797 = vmatprep.subr.mxu0 0.0
  %1798 = vmatpush2.msra.mxu0 0.0
  %1799 = vmatprep.subr.mxu0 0.0
  %1800 = vmatpush2.msra.mxu0 0.0
  %1801 = vmatprep.subr.mxu0 0.0
  %1802 = vmatpush2.msra.mxu0 0.0
  %1803 = vmatprep.subr.mxu0 0.0
  %1804 = vmatpush2.msra.mxu0 0.0
  %1805 = vmatprep.subr.mxu0 0.0
  %1806 = vmatpush2.msra.mxu0 0.0
  %1807 = vmatprep.subr.mxu0 0.0
  %1808 = vmatpush2.msra.mxu0 0.0
  %1809 = vmatprep.subr.mxu0 0.0
  %1810 = vmatpush2.msra.mxu0 0.0
  %1811 = vmatprep.subr.mxu0 0.0
  %1812 = vmatpush2.msra.mxu0 0.0
  %1813 = vmatprep.subr.mxu0 0.0
  %1814 = vmatpush2.msra.mxu0 0.0
  %1815 = vmatprep.subr.mxu0 0.0
  %1816 = vmatpush2.msra.mxu0 0.0
  %1817 = vmatprep.subr.mxu0 0.0
  %1818 = vmatpush2.msra.mxu0 0.0
  %1819 = vmatprep.subr.mxu0 0.0
  %1820 = vmatpush2.msra.mxu0 0.0
  %1821 = vmatprep.mubr.f32.mxu0 0.0
  %1822 = vmatmul.mubr.f32.gmra.mxu0 %v1684
  %v1823 = vpop.f32.mrf.mxu0
  %v1824 = vadd.f32 0.0, %v1823
  %v1825 = vpop.f32.mrf.mxu0
  %1826 = vdwg.mxu0
  %v1827 = vlaneseq
  %v1828 = vshrl.u32 %v1827, 7
  %v1829 = vsub.s32 0, %v1828
  %v1830 = vrot.slane %v1753, %v1829
  %v1831 = vlaneseq
  %v1832 = vshrl.u32 %v1831, 7
  %v1833 = vsub.s32 0, %v1832
  %v1834 = vrot.slane %v1755, %v1833
  %v1835 = vlaneseq
  %v1836 = vshrl.u32 %v1835, 7
  %v1837 = vsub.s32 0, %v1836
  %v1838 = vrot.slane %v1824, %v1837
  %v1839 = vsub.f32 %v1413, %v1830
  %v1840 = vsub.f32 %v1415, %v1834
  %v1841 = vsub.f32 %v1484, %v1838
  %v1842 = vlaneseq
  %v1843 = vshrl.u32 %v1842, 7
  %v1844 = vsub.s32 1, %v1843
  %v1845 = vrot.slane %v1753, %v1844
  %v1846 = vlaneseq
  %v1847 = vshrl.u32 %v1846, 7
  %v1848 = vsub.s32 1, %v1847
  %v1849 = vrot.slane %v1755, %v1848
  %v1850 = vlaneseq
  %v1851 = vshrl.u32 %v1850, 7
  %v1852 = vsub.s32 1, %v1851
  %v1853 = vrot.slane %v1824, %v1852
  %v1854 = vmul.f32 %v1839, %v1845
  %v1855 = vmul.f32 %v1840, %v1849
  %v1856 = vmul.f32 %v1841, %v1853
  %1857 = vset.pattern.permute.xlu0 1
  %1858 = vperm.xlu0 %1857, %v109
  %v1859 = vpop.permute.xlu0 %1858
  %v1861 = vmul.f32 %v1854, %v1859
  %v1862 = vmul.f32 %v1855, %v1859
  %v1863 = vmul.f32 %v1856, %v1859
  %1864 = vset.pattern.permute.xlu0 2
  %1865 = vperm.xlu0 %1864, %v109
  %v1866 = vpop.permute.xlu0 %1865
  %v1868 = vadd.f32 %v1861, %v1866
  %v1869 = vadd.f32 %v1862, %v1866
  %v1870 = vadd.f32 %v1863, %v1866
  %vm1871 = vcmp.ge.f32.partialorder %v1868, 0.0
  %vm1872 = vcmp.ge.f32.partialorder %v1869, 0.0
  %vm1873 = vcmp.ge.f32.partialorder %v1870, 0.0
  %v1874 = vmul.f32 %v1868, 0.25
  %v1875 = vmul.f32 %v1869, 0.25
  %v1876 = vmul.f32 %v1870, 0.25
  %v1877 = vsel %vm1871, %v1868, %v1874
  %v1878 = vsel %vm1872, %v1869, %v1875
  %v1879 = vsel %vm1873, %v1870, %v1876
  %1883 = vrot.lane.b32.xlu0 %v1877, 96
  %v1884 = vpop.permute.xlu0 %1883
  %1885 = vrot.lane.b32.xlu0 %v1878, 96
  %v1886 = vpop.permute.xlu0 %1885
  %1887 = vrot.lane.b32.xlu0 %v1879, 96
  %v1888 = vpop.permute.xlu0 %1887
  %v1889 = vsel %vm645, %v1884, %v1886
  %v1890 = vsel %vm645, %v1886, %v1888
  %v1895 = vsel %vm645, 0.0, %v1884
  %v1896 = vsel %vm326, %v1888, 0.0
  %1898 = vrot.lane.b32.xlu0 %v1895, 96
  %v1899 = vpop.permute.xlu0 %1898
  %1900 = vrot.lane.b32.xlu0 %v1889, 96
  %v1901 = vpop.permute.xlu0 %1900
  %1902 = vrot.lane.b32.xlu0 %v1890, 96
  %v1903 = vpop.permute.xlu0 %1902
  %v1904 = vsel %vm645, %v1899, %v1901
  %v1905 = vsel %vm645, %v1901, %v1903
  %1909 = vrot.lane.b32.xlu0 %v1895, 64
  %v1910 = vpop.permute.xlu0 %1909
  %1911 = vrot.lane.b32.xlu0 %v1889, 64
  %v1912 = vpop.permute.xlu0 %1911
  %1913 = vrot.lane.b32.xlu0 %v1890, 64
  %v1914 = vpop.permute.xlu0 %1913
  %v1915 = vsel %vm657, %v1910, %v1912
  %v1916 = vsel %vm657, %v1912, %v1914
  %1921 = vrot.lane.b32.xlu0 %v1895, 32
  %v1922 = vpop.permute.xlu0 %1921
  %1923 = vrot.lane.b32.xlu0 %v1889, 32
  %v1924 = vpop.permute.xlu0 %1923
  %1925 = vrot.lane.b32.xlu0 %v1890, 32
  %v1926 = vpop.permute.xlu0 %1925
  %1927 = vrot.lane.b32.xlu0 %v1896, 32
  %v1928 = vpop.permute.xlu0 %1927
  %v1929 = vsel %vm326, %v1922, %v1924
  %v1930 = vsel %vm326, %v1924, %v1926
  %v1931 = vsel %vm326, %v1926, %v1928
  %1935 = vrot.lane.b32.xlu0 %v1896, 96
  %v1936 = vpop.permute.xlu0 %1935
  %v1937 = vsel %vm645, %v1903, %v1936
  %1940 = vrot.lane.b32.xlu0 %v1896, 64
  %v1941 = vpop.permute.xlu0 %1940
  %v1942 = vsel %vm657, %v1914, %v1941
  %1945 = vset.pattern.permute.xlu0 3
  %1946 = vperm.xlu0 %1945, %v109
  %v1947 = vpop.permute.xlu0 %1946
  %vm1949 = vcmask 457728
  %v1951 = vsel %vm1949, %v106, 0
  %1953 = vmatprep.subr.mxu0 0.0
  %1954 = vmatpush1.msra.mxu0 0.0
  %1955 = vmatprep.subr.mxu0 0.0
  %1956 = vmatpush1.msra.mxu0 0.0
  %1957 = vmatprep.subr.mxu0 0.0
  %1958 = vmatpush1.msra.mxu0 0.0
  %1959 = vmatprep.subr.mxu0 0.0
  %1960 = vmatpush1.msra.mxu0 0.0
  %1961 = vmatprep.subr.mxu0 0.0
  %1962 = vmatpush1.msra.mxu0 0.0
  %1963 = vmatprep.subr.mxu0 0.0
  %1964 = vmatpush1.msra.mxu0 0.0
  %1965 = vmatprep.subr.mxu0 0.0
  %1966 = vmatpush1.msra.mxu0 0.0
  %1967 = vmatprep.subr.mxu0 0.0
  %1968 = vmatpush1.msra.mxu0 0.0
  %1969 = vmatprep.subr.mxu0 0.0
  %1970 = vmatpush1.msra.mxu0 0.0
  %1971 = vmatprep.subr.mxu0 %v1942
  %1972 = vmatpush1.msra.mxu0 %v1916
  %1973 = vmatprep.subr.mxu0 %v1937
  %1974 = vmatpush1.msra.mxu0 %v1905
  %1975 = vmatprep.subr.mxu0 %v1890
  %1976 = vmatpush1.msra.mxu0 %v1889
  %1977 = vmatprep.subr.mxu0 %v1930
  %1978 = vmatpush1.msra.mxu0 %v1929
  %1979 = vmatprep.subr.mxu0 %v1916
  %1980 = vmatpush1.msra.mxu0 %v1915
  %1981 = vmatprep.subr.mxu0 %v1905
  %1982 = vmatpush1.msra.mxu0 %v1904
  %1983 = vmatprep.subr.mxu0 %v1889
  %1984 = vmatpush1.msra.mxu0 %v1895
  %1985 = vmatprep.subr.mxu0 0.0
  %1986 = vmatpush2.msra.mxu0 0.0
  %1987 = vmatprep.subr.mxu0 0.0
  %1988 = vmatpush2.msra.mxu0 0.0
  %1989 = vmatprep.subr.mxu0 0.0
  %1990 = vmatpush2.msra.mxu0 0.0
  %1991 = vmatprep.subr.mxu0 0.0
  %1992 = vmatpush2.msra.mxu0 0.0
  %1993 = vmatprep.subr.mxu0 0.0
  %1994 = vmatpush2.msra.mxu0 0.0
  %1995 = vmatprep.subr.mxu0 0.0
  %1996 = vmatpush2.msra.mxu0 0.0
  %1997 = vmatprep.subr.mxu0 0.0
  %1998 = vmatpush2.msra.mxu0 0.0
  %1999 = vmatprep.subr.mxu0 0.0
  %2000 = vmatpush2.msra.mxu0 0.0
  %2001 = vmatprep.subr.mxu0 0.0
  %2002 = vmatpush2.msra.mxu0 0.0
  %2003 = vmatprep.subr.mxu0 0.0
  %2004 = vmatpush2.msra.mxu0 0.0
  %2005 = vmatprep.subr.mxu0 0.0
  %2006 = vmatpush2.msra.mxu0 0.0
  %2007 = vmatprep.subr.mxu0 0.0
  %2008 = vmatpush2.msra.mxu0 0.0
  %2009 = vmatprep.subr.mxu0 0.0
  %2010 = vmatpush2.msra.mxu0 0.0
  %2011 = vmatprep.subr.mxu0 0.0
  %2012 = vmatpush2.msra.mxu0 0.0
  %2013 = vmatprep.subr.mxu0 0.0
  %2014 = vmatpush2.msra.mxu0 0.0
  %2015 = vmatprep.subr.mxu0 0.0
  %2016 = vmatpush2.msra.mxu0 0.0
  %2017 = vmatprep.mubr.f32.mxu0 0.0
  %2018 = vmatmul.mubr.f32.gmra.mxu0 %v1951
  %v2019 = vpop.f32.mrf.mxu0
  %v2020 = vadd.f32 %v1947, %v2019
  %v2021 = vpop.f32.mrf.mxu0
  %v2022 = vadd.f32 %v1947, %v2021
  %2023 = vdwg.mxu0
  %2024 = vmatprep.subr.mxu0 0.0
  %2025 = vmatpush1.msra.mxu0 0.0
  %2026 = vmatprep.subr.mxu0 0.0
  %2027 = vmatpush1.msra.mxu0 0.0
  %2028 = vmatprep.subr.mxu0 0.0
  %2029 = vmatpush1.msra.mxu0 0.0
  %2030 = vmatprep.subr.mxu0 0.0
  %2031 = vmatpush1.msra.mxu0 0.0
  %2032 = vmatprep.subr.mxu0 0.0
  %2033 = vmatpush1.msra.mxu0 0.0
  %2034 = vmatprep.subr.mxu0 0.0
  %2035 = vmatpush1.msra.mxu0 0.0
  %2036 = vmatprep.subr.mxu0 0.0
  %2037 = vmatpush1.msra.mxu0 0.0
  %2038 = vmatprep.subr.mxu0 0.0
  %2039 = vmatpush1.msra.mxu0 0.0
  %2040 = vmatprep.subr.mxu0 0.0
  %2041 = vmatpush1.msra.mxu0 0.0
  %2042 = vmatprep.subr.mxu0 0.0
  %2043 = vmatpush1.msra.mxu0 %v1941
  %2044 = vmatprep.subr.mxu0 0.0
  %2045 = vmatpush1.msra.mxu0 %v1936
  %2046 = vmatprep.subr.mxu0 0.0
  %2047 = vmatpush1.msra.mxu0 %v1896
  %2048 = vmatprep.subr.mxu0 0.0
  %2049 = vmatpush1.msra.mxu0 %v1931
  %2050 = vmatprep.subr.mxu0 0.0
  %2051 = vmatpush1.msra.mxu0 %v1914
  %2052 = vmatprep.subr.mxu0 0.0
  %2053 = vmatpush1.msra.mxu0 %v1903
  %2054 = vmatprep.subr.mxu0 0.0
  %2055 = vmatpush1.msra.mxu0 %v1890
  %2056 = vmatprep.subr.mxu0 0.0
  %2057 = vmatpush2.msra.mxu0 0.0
  %2058 = vmatprep.subr.mxu0 0.0
  %2059 = vmatpush2.msra.mxu0 0.0
  %2060 = vmatprep.subr.mxu0 0.0
  %2061 = vmatpush2.msra.mxu0 0.0
  %2062 = vmatprep.subr.mxu0 0.0
  %2063 = vmatpush2.msra.mxu0 0.0
  %2064 = vmatprep.subr.mxu0 0.0
  %2065 = vmatpush2.msra.mxu0 0.0
  %2066 = vmatprep.subr.mxu0 0.0
  %2067 = vmatpush2.msra.mxu0 0.0
  %2068 = vmatprep.subr.mxu0 0.0
  %2069 = vmatpush2.msra.mxu0 0.0
  %2070 = vmatprep.subr.mxu0 0.0
  %2071 = vmatpush2.msra.mxu0 0.0
  %2072 = vmatprep.subr.mxu0 0.0
  %2073 = vmatpush2.msra.mxu0 0.0
  %2074 = vmatprep.subr.mxu0 0.0
  %2075 = vmatpush2.msra.mxu0 0.0
  %2076 = vmatprep.subr.mxu0 0.0
  %2077 = vmatpush2.msra.mxu0 0.0
  %2078 = vmatprep.subr.mxu0 0.0
  %2079 = vmatpush2.msra.mxu0 0.0
  %2080 = vmatprep.subr.mxu0 0.0
  %2081 = vmatpush2.msra.mxu0 0.0
  %2082 = vmatprep.subr.mxu0 0.0
  %2083 = vmatpush2.msra.mxu0 0.0
  %2084 = vmatprep.subr.mxu0 0.0
  %2085 = vmatpush2.msra.mxu0 0.0
  %2086 = vmatprep.subr.mxu0 0.0
  %2087 = vmatpush2.msra.mxu0 0.0
  %2088 = vmatprep.mubr.f32.mxu0 0.0
  %2089 = vmatmul.mubr.f32.gmra.mxu0 %v1951
  %v2090 = vpop.f32.mrf.mxu0
  %v2091 = vadd.f32 %v1947, %v2090
  %v2092 = vpop.f32.mrf.mxu0
  %2093 = vdwg.mxu0
  %v2094 = vrot.slane %v2020, 4
  %v2095 = vadd.f32 %v2020, %v2094
  %v2096 = vrot.slane %v2095, 2
  %v2097 = vadd.f32 %v2095, %v2096
  %v2098 = vrot.slane %v2097, 1
  %v2099 = vadd.f32 %v2097, %v2098
  %v2100 = vrot.slane %v2022, 4
  %v2101 = vadd.f32 %v2022, %v2100
  %v2102 = vrot.slane %v2101, 2
  %v2103 = vadd.f32 %v2101, %v2102
  %v2104 = vrot.slane %v2103, 1
  %v2105 = vadd.f32 %v2103, %v2104
  %v2106 = vsel %vm657, %v2091, 0.0
  %v2107 = vrot.slane %v2106, 4
  %v2108 = vadd.f32 %v2106, %v2107
  %v2109 = vrot.slane %v2108, 2
  %v2110 = vadd.f32 %v2108, %v2109
  %v2111 = vrot.slane %v2110, 1
  %v2112 = vadd.f32 %v2110, %v2111
  %v2113 = vmul.f32 %v2020, %v2020
  %v2114 = vmul.f32 %v2022, %v2022
  %v2115 = vmul.f32 %v2091, %v2091
  %v2116 = vrot.slane %v2113, 4
  %v2117 = vadd.f32 %v2113, %v2116
  %v2118 = vrot.slane %v2117, 2
  %v2119 = vadd.f32 %v2117, %v2118
  %v2120 = vrot.slane %v2119, 1
  %v2121 = vadd.f32 %v2119, %v2120
  %v2122 = vrot.slane %v2114, 4
  %v2123 = vadd.f32 %v2114, %v2122
  %v2124 = vrot.slane %v2123, 2
  %v2125 = vadd.f32 %v2123, %v2124
  %v2126 = vrot.slane %v2125, 1
  %v2127 = vadd.f32 %v2125, %v2126
  %v2128 = vsel %vm657, %v2115, 0.0
  %v2129 = vrot.slane %v2128, 4
  %v2130 = vadd.f32 %v2128, %v2129
  %v2131 = vrot.slane %v2130, 2
  %v2132 = vadd.f32 %v2130, %v2131
  %v2133 = vrot.slane %v2132, 1
  %v2134 = vadd.f32 %v2132, %v2133
  %v2135 = vsel %vm181, %v2099, %v2121
  %v2136 = vsel %vm181, %v2105, %v2127
  %v2137 = vsel %vm181, %v2112, %v2134
  %v2139 = vsel %vm657, %v2137, 0
  %2141 = vmatprep.subr.mxu0 0.0
  %2142 = vmatpush1.msra.mxu0 %v34
  %2143 = vmatprep.subr.mxu0 0.0
  %2144 = vmatpush1.msra.mxu0 %v33
  %2145 = vmatprep.subr.mxu0 0.0
  %2146 = vmatpush1.msra.mxu0 %v32
  %2147 = vmatprep.subr.mxu0 0.0
  %2148 = vmatpush1.msra.mxu0 %v31
  %2149 = vmatprep.subr.mxu0 0.0
  %2150 = vmatpush1.msra.mxu0 %v30
  %2151 = vmatprep.subr.mxu0 0.0
  %2152 = vmatpush1.msra.mxu0 %v29
  %2153 = vmatprep.subr.mxu0 0.0
  %2154 = vmatpush1.msra.mxu0 %v28
  %2155 = vmatprep.subr.mxu0 0.0
  %2156 = vmatpush1.msra.mxu0 %v27
  %2157 = vmatprep.subr.mxu0 0.0
  %2158 = vmatpush1.msra.mxu0 %v26
  %2159 = vmatprep.subr.mxu0 0.0
  %2160 = vmatpush1.msra.mxu0 %v25
  %2161 = vmatprep.subr.mxu0 0.0
  %2162 = vmatpush1.msra.mxu0 %v24
  %2163 = vmatprep.subr.mxu0 0.0
  %2164 = vmatpush1.msra.mxu0 %v23
  %2165 = vmatprep.subr.mxu0 0.0
  %2166 = vmatpush1.msra.mxu0 %v22
  %2167 = vmatprep.subr.mxu0 0.0
  %2168 = vmatpush1.msra.mxu0 %v21
  %2169 = vmatprep.subr.mxu0 0.0
  %2170 = vmatpush1.msra.mxu0 %v20
  %2171 = vmatprep.subr.mxu0 0.0
  %2172 = vmatpush1.msra.mxu0 %v19
  %2173 = vmatprep.subr.mxu0 0.0
  %2174 = vmatpush2.msra.mxu0 %v50
  %2175 = vmatprep.subr.mxu0 0.0
  %2176 = vmatpush2.msra.mxu0 %v49
  %2177 = vmatprep.subr.mxu0 0.0
  %2178 = vmatpush2.msra.mxu0 %v48
  %2179 = vmatprep.subr.mxu0 0.0
  %2180 = vmatpush2.msra.mxu0 %v47
  %2181 = vmatprep.subr.mxu0 0.0
  %2182 = vmatpush2.msra.mxu0 %v46
  %2183 = vmatprep.subr.mxu0 0.0
  %2184 = vmatpush2.msra.mxu0 %v45
  %2185 = vmatprep.subr.mxu0 0.0
  %2186 = vmatpush2.msra.mxu0 %v44
  %2187 = vmatprep.subr.mxu0 0.0
  %2188 = vmatpush2.msra.mxu0 %v43
  %2189 = vmatprep.subr.mxu0 0.0
  %2190 = vmatpush2.msra.mxu0 %v42
  %2191 = vmatprep.subr.mxu0 0.0
  %2192 = vmatpush2.msra.mxu0 %v41
  %2193 = vmatprep.subr.mxu0 0.0
  %2194 = vmatpush2.msra.mxu0 %v40
  %2195 = vmatprep.subr.mxu0 0.0
  %2196 = vmatpush2.msra.mxu0 %v39
  %2197 = vmatprep.subr.mxu0 0.0
  %2198 = vmatpush2.msra.mxu0 %v38
  %2199 = vmatprep.subr.mxu0 0.0
  %2200 = vmatpush2.msra.mxu0 %v37
  %2201 = vmatprep.subr.mxu0 0.0
  %2202 = vmatpush2.msra.mxu0 %v36
  %2203 = vmatprep.subr.mxu0 0.0
  %2204 = vmatpush2.msra.mxu0 %v35
  %2205 = vmatprep.mubr.f32.mxu0 %v2136
  %2206 = vmatmul.mubr.f32.gmra.mxu0 %v2135
  %v2207 = vpop.f32.mrf.mxu0
  %v2208 = vadd.f32 0.0, %v2207
  %v2209 = vpop.f32.mrf.mxu0
  %2210 = vdwg.mxu0
  %2211 = vmatprep.subr.mxu0 0.0
  %2212 = vmatpush1.msra.mxu0 0.0
  %2213 = vmatprep.subr.mxu0 0.0
  %2214 = vmatpush1.msra.mxu0 0.0
  %2215 = vmatprep.subr.mxu0 0.0
  %2216 = vmatpush1.msra.mxu0 0.0
  %2217 = vmatprep.subr.mxu0 0.0
  %2218 = vmatpush1.msra.mxu0 0.0
  %2219 = vmatprep.subr.mxu0 0.0
  %2220 = vmatpush1.msra.mxu0 0.0
  %2221 = vmatprep.subr.mxu0 0.0
  %2222 = vmatpush1.msra.mxu0 0.0
  %2223 = vmatprep.subr.mxu0 0.0
  %2224 = vmatpush1.msra.mxu0 0.0
  %2225 = vmatprep.subr.mxu0 0.0
  %2226 = vmatpush1.msra.mxu0 0.0
  %2227 = vmatprep.subr.mxu0 0.0
  %2228 = vmatpush1.msra.mxu0 %v58
  %2229 = vmatprep.subr.mxu0 0.0
  %2230 = vmatpush1.msra.mxu0 %v57
  %2231 = vmatprep.subr.mxu0 0.0
  %2232 = vmatpush1.msra.mxu0 %v56
  %2233 = vmatprep.subr.mxu0 0.0
  %2234 = vmatpush1.msra.mxu0 %v55
  %2235 = vmatprep.subr.mxu0 0.0
  %2236 = vmatpush1.msra.mxu0 %v54
  %2237 = vmatprep.subr.mxu0 0.0
  %2238 = vmatpush1.msra.mxu0 %v53
  %2239 = vmatprep.subr.mxu0 0.0
  %2240 = vmatpush1.msra.mxu0 %v52
  %2241 = vmatprep.subr.mxu0 0.0
  %2242 = vmatpush1.msra.mxu0 %v51
  %2243 = vmatprep.subr.mxu0 0.0
  %2244 = vmatpush2.msra.mxu0 0.0
  %2245 = vmatprep.subr.mxu0 0.0
  %2246 = vmatpush2.msra.mxu0 0.0
  %2247 = vmatprep.subr.mxu0 0.0
  %2248 = vmatpush2.msra.mxu0 0.0
  %2249 = vmatprep.subr.mxu0 0.0
  %2250 = vmatpush2.msra.mxu0 0.0
  %2251 = vmatprep.subr.mxu0 0.0
  %2252 = vmatpush2.msra.mxu0 0.0
  %2253 = vmatprep.subr.mxu0 0.0
  %2254 = vmatpush2.msra.mxu0 0.0
  %2255 = vmatprep.subr.mxu0 0.0
  %2256 = vmatpush2.msra.mxu0 0.0
  %2257 = vmatprep.subr.mxu0 0.0
  %2258 = vmatpush2.msra.mxu0 0.0
  %2259 = vmatprep.subr.mxu0 0.0
  %2260 = vmatpush2.msra.mxu0 0.0
  %2261 = vmatprep.subr.mxu0 0.0
  %2262 = vmatpush2.msra.mxu0 0.0
  %2263 = vmatprep.subr.mxu0 0.0
  %2264 = vmatpush2.msra.mxu0 0.0
  %2265 = vmatprep.subr.mxu0 0.0
  %2266 = vmatpush2.msra.mxu0 0.0
  %2267 = vmatprep.subr.mxu0 0.0
  %2268 = vmatpush2.msra.mxu0 0.0
  %2269 = vmatprep.subr.mxu0 0.0
  %2270 = vmatpush2.msra.mxu0 0.0
  %2271 = vmatprep.subr.mxu0 0.0
  %2272 = vmatpush2.msra.mxu0 0.0
  %2273 = vmatprep.subr.mxu0 0.0
  %2274 = vmatpush2.msra.mxu0 0.0
  %2275 = vmatprep.mubr.f32.mxu0 0.0
  %2276 = vmatmul.mubr.f32.gmra.mxu0 %v2139
  %v2277 = vpop.f32.mrf.mxu0
  %v2278 = vadd.f32 %v2208, %v2277
  %v2279 = vpop.f32.mrf.mxu0
  %2280 = vdwg.mxu0
  %v2281 = vmul.f32 %v2278, 0.0125
  %v2282 = vmul.f32 %v2281, %v2281
  %v2284 = vrot.slane %v2282, 7
  %v2286 = vsub.f32 %v2281, %v2284
  %v2287 = vadd.f32 %v2286, 1e-06
  %v2288 = vrsqrt.pop %v2287
  %v2289 = vsel %vm181, %v2281, %v2288
  %v2291 = vsel %vm326, %v2289, 0
  %2293 = vmatprep.subr.mxu0 0.0
  %2294 = vmatpush1.msra.mxu0 0.0
  %2295 = vmatprep.subr.mxu0 0.0
  %2296 = vmatpush1.msra.mxu0 0.0
  %2297 = vmatprep.subr.mxu0 0.0
  %2298 = vmatpush1.msra.mxu0 0.0
  %2299 = vmatprep.subr.mxu0 0.0
  %2300 = vmatpush1.msra.mxu0 0.0
  %2301 = vmatprep.subr.mxu0 0.0
  %2302 = vmatpush1.msra.mxu0 0.0
  %2303 = vmatprep.subr.mxu0 0.0
  %2304 = vmatpush1.msra.mxu0 0.0
  %2305 = vmatprep.subr.mxu0 0.0
  %2306 = vmatpush1.msra.mxu0 0.0
  %2307 = vmatprep.subr.mxu0 0.0
  %2308 = vmatpush1.msra.mxu0 0.0
  %2309 = vmatprep.subr.mxu0 0.0
  %2310 = vmatpush1.msra.mxu0 0.0
  %2311 = vmatprep.subr.mxu0 0.0
  %2312 = vmatpush1.msra.mxu0 0.0
  %2313 = vmatprep.subr.mxu0 0.0
  %2314 = vmatpush1.msra.mxu0 0.0
  %2315 = vmatprep.subr.mxu0 0.0
  %2316 = vmatpush1.msra.mxu0 0.0
  %2317 = vmatprep.subr.mxu0 %v96
  %2318 = vmatpush1.msra.mxu0 %v95
  %2319 = vmatprep.subr.mxu0 %v92
  %2320 = vmatpush1.msra.mxu0 %v91
  %2321 = vmatprep.subr.mxu0 %v88
  %2322 = vmatpush1.msra.mxu0 %v87
  %2323 = vmatprep.subr.mxu0 %v84
  %2324 = vmatpush1.msra.mxu0 %v83
  %2325 = vmatprep.subr.mxu0 0.0
  %2326 = vmatpush2.msra.mxu0 0.0
  %2327 = vmatprep.subr.mxu0 0.0
  %2328 = vmatpush2.msra.mxu0 0.0
  %2329 = vmatprep.subr.mxu0 0.0
  %2330 = vmatpush2.msra.mxu0 0.0
  %2331 = vmatprep.subr.mxu0 0.0
  %2332 = vmatpush2.msra.mxu0 0.0
  %2333 = vmatprep.subr.mxu0 0.0
  %2334 = vmatpush2.msra.mxu0 0.0
  %2335 = vmatprep.subr.mxu0 0.0
  %2336 = vmatpush2.msra.mxu0 0.0
  %2337 = vmatprep.subr.mxu0 0.0
  %2338 = vmatpush2.msra.mxu0 0.0
  %2339 = vmatprep.subr.mxu0 0.0
  %2340 = vmatpush2.msra.mxu0 0.0
  %2341 = vmatprep.subr.mxu0 0.0
  %2342 = vmatpush2.msra.mxu0 0.0
  %2343 = vmatprep.subr.mxu0 0.0
  %2344 = vmatpush2.msra.mxu0 0.0
  %2345 = vmatprep.subr.mxu0 0.0
  %2346 = vmatpush2.msra.mxu0 0.0
  %2347 = vmatprep.subr.mxu0 0.0
  %2348 = vmatpush2.msra.mxu0 0.0
  %2349 = vmatprep.subr.mxu0 0.0
  %2350 = vmatpush2.msra.mxu0 0.0
  %2351 = vmatprep.subr.mxu0 0.0
  %2352 = vmatpush2.msra.mxu0 0.0
  %2353 = vmatprep.subr.mxu0 0.0
  %2354 = vmatpush2.msra.mxu0 0.0
  %2355 = vmatprep.subr.mxu0 0.0
  %2356 = vmatpush2.msra.mxu0 0.0
  %2357 = vmatprep.mubr.f32.mxu0 0.0
  %2358 = vmatmul.mubr.f32.gmra.mxu0 %v2291
  %v2359 = vpop.f32.mrf.mxu0
  %v2360 = vadd.f32 0.0, %v2359
  %v2361 = vpop.f32.mrf.mxu0
  %v2362 = vadd.f32 0.0, %v2361
  %2363 = vdwg.mxu0
  %2364 = vmatprep.subr.mxu0 0.0
  %2365 = vmatpush1.msra.mxu0 0.0
  %2366 = vmatprep.subr.mxu0 0.0
  %2367 = vmatpush1.msra.mxu0 0.0
  %2368 = vmatprep.subr.mxu0 0.0
  %2369 = vmatpush1.msra.mxu0 0.0
  %2370 = vmatprep.subr.mxu0 0.0
  %2371 = vmatpush1.msra.mxu0 0.0
  %2372 = vmatprep.subr.mxu0 0.0
  %2373 = vmatpush1.msra.mxu0 0.0
  %2374 = vmatprep.subr.mxu0 0.0
  %2375 = vmatpush1.msra.mxu0 0.0
  %2376 = vmatprep.subr.mxu0 0.0
  %2377 = vmatpush1.msra.mxu0 0.0
  %2378 = vmatprep.subr.mxu0 0.0
  %2379 = vmatpush1.msra.mxu0 0.0
  %2380 = vmatprep.subr.mxu0 0.0
  %2381 = vmatpush1.msra.mxu0 0.0
  %2382 = vmatprep.subr.mxu0 0.0
  %2383 = vmatpush1.msra.mxu0 0.0
  %2384 = vmatprep.subr.mxu0 0.0
  %2385 = vmatpush1.msra.mxu0 0.0
  %2386 = vmatprep.subr.mxu0 0.0
  %2387 = vmatpush1.msra.mxu0 0.0
  %2388 = vmatprep.subr.mxu0 0.0
  %2389 = vmatpush1.msra.mxu0 %v97
  %2390 = vmatprep.subr.mxu0 0.0
  %2391 = vmatpush1.msra.mxu0 %v93
  %2392 = vmatprep.subr.mxu0 0.0
  %2393 = vmatpush1.msra.mxu0 %v89
  %2394 = vmatprep.subr.mxu0 0.0
  %2395 = vmatpush1.msra.mxu0 %v85
  %2396 = vmatprep.subr.mxu0 0.0
  %2397 = vmatpush2.msra.mxu0 0.0
  %2398 = vmatprep.subr.mxu0 0.0
  %2399 = vmatpush2.msra.mxu0 0.0
  %2400 = vmatprep.subr.mxu0 0.0
  %2401 = vmatpush2.msra.mxu0 0.0
  %2402 = vmatprep.subr.mxu0 0.0
  %2403 = vmatpush2.msra.mxu0 0.0
  %2404 = vmatprep.subr.mxu0 0.0
  %2405 = vmatpush2.msra.mxu0 0.0
  %2406 = vmatprep.subr.mxu0 0.0
  %2407 = vmatpush2.msra.mxu0 0.0
  %2408 = vmatprep.subr.mxu0 0.0
  %2409 = vmatpush2.msra.mxu0 0.0
  %2410 = vmatprep.subr.mxu0 0.0
  %2411 = vmatpush2.msra.mxu0 0.0
  %2412 = vmatprep.subr.mxu0 0.0
  %2413 = vmatpush2.msra.mxu0 0.0
  %2414 = vmatprep.subr.mxu0 0.0
  %2415 = vmatpush2.msra.mxu0 0.0
  %2416 = vmatprep.subr.mxu0 0.0
  %2417 = vmatpush2.msra.mxu0 0.0
  %2418 = vmatprep.subr.mxu0 0.0
  %2419 = vmatpush2.msra.mxu0 0.0
  %2420 = vmatprep.subr.mxu0 0.0
  %2421 = vmatpush2.msra.mxu0 0.0
  %2422 = vmatprep.subr.mxu0 0.0
  %2423 = vmatpush2.msra.mxu0 0.0
  %2424 = vmatprep.subr.mxu0 0.0
  %2425 = vmatpush2.msra.mxu0 0.0
  %2426 = vmatprep.subr.mxu0 0.0
  %2427 = vmatpush2.msra.mxu0 0.0
  %2428 = vmatprep.mubr.f32.mxu0 0.0
  %2429 = vmatmul.mubr.f32.gmra.mxu0 %v2291
  %v2430 = vpop.f32.mrf.mxu0
  %v2431 = vadd.f32 0.0, %v2430
  %v2432 = vpop.f32.mrf.mxu0
  %2433 = vdwg.mxu0
  %v2434 = vlaneseq
  %v2435 = vshrl.u32 %v2434, 7
  %v2436 = vsub.s32 0, %v2435
  %v2437 = vrot.slane %v2360, %v2436
  %v2438 = vlaneseq
  %v2439 = vshrl.u32 %v2438, 7
  %v2440 = vsub.s32 0, %v2439
  %v2441 = vrot.slane %v2362, %v2440
  %v2442 = vlaneseq
  %v2443 = vshrl.u32 %v2442, 7
  %v2444 = vsub.s32 0, %v2443
  %v2445 = vrot.slane %v2431, %v2444
  %v2446 = vsub.f32 %v2020, %v2437
  %v2447 = vsub.f32 %v2022, %v2441
  %v2448 = vsub.f32 %v2091, %v2445
  %v2449 = vlaneseq
  %v2450 = vshrl.u32 %v2449, 7
  %v2451 = vsub.s32 1, %v2450
  %v2452 = vrot.slane %v2360, %v2451
  %v2453 = vlaneseq
  %v2454 = vshrl.u32 %v2453, 7
  %v2455 = vsub.s32 1, %v2454
  %v2456 = vrot.slane %v2362, %v2455
  %v2457 = vlaneseq
  %v2458 = vshrl.u32 %v2457, 7
  %v2459 = vsub.s32 1, %v2458
  %v2460 = vrot.slane %v2431, %v2459
  %v2461 = vmul.f32 %v2446, %v2452
  %v2462 = vmul.f32 %v2447, %v2456
  %v2463 = vmul.f32 %v2448, %v2460
  %2464 = vset.pattern.permute.xlu0 4
  %2465 = vperm.xlu0 %2464, %v109
  %v2466 = vpop.permute.xlu0 %2465
  %v2468 = vmul.f32 %v2461, %v2466
  %v2469 = vmul.f32 %v2462, %v2466
  %v2470 = vmul.f32 %v2463, %v2466
  %2471 = vset.pattern.permute.xlu0 5
  %2472 = vperm.xlu0 %2471, %v109
  %v2473 = vpop.permute.xlu0 %2472
  %v2475 = vadd.f32 %v2468, %v2473
  %v2476 = vadd.f32 %v2469, %v2473
  %v2477 = vadd.f32 %v2470, %v2473
  %vm2478 = vcmp.ge.f32.partialorder %v2475, 0.0
  %vm2479 = vcmp.ge.f32.partialorder %v2476, 0.0
  %vm2480 = vcmp.ge.f32.partialorder %v2477, 0.0
  %v2481 = vmul.f32 %v2475, 0.25
  %v2482 = vmul.f32 %v2476, 0.25
  %v2483 = vmul.f32 %v2477, 0.25
  %v2484 = vsel %vm2478, %v2475, %v2481
  %v2485 = vsel %vm2479, %v2476, %v2482
  %v2486 = vsel %vm2480, %v2477, %v2483
  %2487 = vset.pattern.permute.xlu0 6
  %2488 = vperm.xlu0 %2487, %v109
  %v2489 = vpop.permute.xlu0 %2488
  %vm2491 = vcmask 64512
  %v2493 = vsel %vm2491, %v107, 0
  %2495 = vmatprep.subr.mxu0 0.0
  %2496 = vmatpush1.msra.mxu0 0.0
  %2497 = vmatprep.subr.mxu0 0.0
  %2498 = vmatpush1.msra.mxu0 0.0
  %2499 = vmatprep.subr.mxu0 0.0
  %2500 = vmatpush1.msra.mxu0 0.0
  %2501 = vmatprep.subr.mxu0 0.0
  %2502 = vmatpush1.msra.mxu0 0.0
  %2503 = vmatprep.subr.mxu0 0.0
  %2504 = vmatpush1.msra.mxu0 0.0
  %2505 = vmatprep.subr.mxu0 0.0
  %2506 = vmatpush1.msra.mxu0 0.0
  %2507 = vmatprep.subr.mxu0 0.0
  %2508 = vmatpush1.msra.mxu0 0.0
  %2509 = vmatprep.subr.mxu0 0.0
  %2510 = vmatpush1.msra.mxu0 0.0
  %2511 = vmatprep.subr.mxu0 0.0
  %2512 = vmatpush1.msra.mxu0 0.0
  %2513 = vmatprep.subr.mxu0 0.0
  %2514 = vmatpush1.msra.mxu0 0.0
  %2515 = vmatprep.subr.mxu0 0.0
  %2516 = vmatpush1.msra.mxu0 0.0
  %2517 = vmatprep.subr.mxu0 0.0
  %2518 = vmatpush1.msra.mxu0 0.0
  %2519 = vmatprep.subr.mxu0 0.0
  %2520 = vmatpush1.msra.mxu0 0.0
  %2521 = vmatprep.subr.mxu0 0.0
  %2522 = vmatpush1.msra.mxu0 0.0
  %2523 = vmatprep.subr.mxu0 0.0
  %2524 = vmatpush1.msra.mxu0 0.0
  %2525 = vmatprep.subr.mxu0 %v2485
  %2526 = vmatpush1.msra.mxu0 %v2484
  %2527 = vmatprep.subr.mxu0 0.0
  %2528 = vmatpush2.msra.mxu0 0.0
  %2529 = vmatprep.subr.mxu0 0.0
  %2530 = vmatpush2.msra.mxu0 0.0
  %2531 = vmatprep.subr.mxu0 0.0
  %2532 = vmatpush2.msra.mxu0 0.0
  %2533 = vmatprep.subr.mxu0 0.0
  %2534 = vmatpush2.msra.mxu0 0.0
  %2535 = vmatprep.subr.mxu0 0.0
  %2536 = vmatpush2.msra.mxu0 0.0
  %2537 = vmatprep.subr.mxu0 0.0
  %2538 = vmatpush2.msra.mxu0 0.0
  %2539 = vmatprep.subr.mxu0 0.0
  %2540 = vmatpush2.msra.mxu0 0.0
  %2541 = vmatprep.subr.mxu0 0.0
  %2542 = vmatpush2.msra.mxu0 0.0
  %2543 = vmatprep.subr.mxu0 0.0
  %2544 = vmatpush2.msra.mxu0 0.0
  %2545 = vmatprep.subr.mxu0 0.0
  %2546 = vmatpush2.msra.mxu0 0.0
  %2547 = vmatprep.subr.mxu0 0.0
  %2548 = vmatpush2.msra.mxu0 0.0
  %2549 = vmatprep.subr.mxu0 0.0
  %2550 = vmatpush2.msra.mxu0 0.0
  %2551 = vmatprep.subr.mxu0 0.0
  %2552 = vmatpush2.msra.mxu0 0.0
  %2553 = vmatprep.subr.mxu0 0.0
  %2554 = vmatpush2.msra.mxu0 0.0
  %2555 = vmatprep.subr.mxu0 0.0
  %2556 = vmatpush2.msra.mxu0 0.0
  %2557 = vmatprep.subr.mxu0 0.0
  %2558 = vmatpush2.msra.mxu0 0.0
  %2559 = vmatprep.mubr.f32.mxu0 0.0
  %2560 = vmatmul.mubr.f32.gmra.mxu0 %v2493
  %v2561 = vpop.f32.mrf.mxu0
  %v2562 = vadd.f32 %v2489, %v2561
  %v2563 = vpop.f32.mrf.mxu0
  %v2564 = vadd.f32 %v2489, %v2563
  %2565 = vdwg.mxu0
  %2566 = vmatprep.subr.mxu0 0.0
  %2567 = vmatpush1.msra.mxu0 0.0
  %2568 = vmatprep.subr.mxu0 0.0
  %2569 = vmatpush1.msra.mxu0 0.0
  %2570 = vmatprep.subr.mxu0 0.0
  %2571 = vmatpush1.msra.mxu0 0.0
  %2572 = vmatprep.subr.mxu0 0.0
  %2573 = vmatpush1.msra.mxu0 0.0
  %2574 = vmatprep.subr.mxu0 0.0
  %2575 = vmatpush1.msra.mxu0 0.0
  %2576 = vmatprep.subr.mxu0 0.0
  %2577 = vmatpush1.msra.mxu0 0.0
  %2578 = vmatprep.subr.mxu0 0.0
  %2579 = vmatpush1.msra.mxu0 0.0
  %2580 = vmatprep.subr.mxu0 0.0
  %2581 = vmatpush1.msra.mxu0 0.0
  %2582 = vmatprep.subr.mxu0 0.0
  %2583 = vmatpush1.msra.mxu0 0.0
  %2584 = vmatprep.subr.mxu0 0.0
  %2585 = vmatpush1.msra.mxu0 0.0
  %2586 = vmatprep.subr.mxu0 0.0
  %2587 = vmatpush1.msra.mxu0 0.0
  %2588 = vmatprep.subr.mxu0 0.0
  %2589 = vmatpush1.msra.mxu0 0.0
  %2590 = vmatprep.subr.mxu0 0.0
  %2591 = vmatpush1.msra.mxu0 0.0
  %2592 = vmatprep.subr.mxu0 0.0
  %2593 = vmatpush1.msra.mxu0 0.0
  %2594 = vmatprep.subr.mxu0 0.0
  %2595 = vmatpush1.msra.mxu0 0.0
  %2596 = vmatprep.subr.mxu0 0.0
  %2597 = vmatpush1.msra.mxu0 %v2486
  %2598 = vmatprep.subr.mxu0 0.0
  %2599 = vmatpush2.msra.mxu0 0.0
  %2600 = vmatprep.subr.mxu0 0.0
  %2601 = vmatpush2.msra.mxu0 0.0
  %2602 = vmatprep.subr.mxu0 0.0
  %2603 = vmatpush2.msra.mxu0 0.0
  %2604 = vmatprep.subr.mxu0 0.0
  %2605 = vmatpush2.msra.mxu0 0.0
  %2606 = vmatprep.subr.mxu0 0.0
  %2607 = vmatpush2.msra.mxu0 0.0
  %2608 = vmatprep.subr.mxu0 0.0
  %2609 = vmatpush2.msra.mxu0 0.0
  %2610 = vmatprep.subr.mxu0 0.0
  %2611 = vmatpush2.msra.mxu0 0.0
  %2612 = vmatprep.subr.mxu0 0.0
  %2613 = vmatpush2.msra.mxu0 0.0
  %2614 = vmatprep.subr.mxu0 0.0
  %2615 = vmatpush2.msra.mxu0 0.0
  %2616 = vmatprep.subr.mxu0 0.0
  %2617 = vmatpush2.msra.mxu0 0.0
  %2618 = vmatprep.subr.mxu0 0.0
  %2619 = vmatpush2.msra.mxu0 0.0
  %2620 = vmatprep.subr.mxu0 0.0
  %2621 = vmatpush2.msra.mxu0 0.0
  %2622 = vmatprep.subr.mxu0 0.0
  %2623 = vmatpush2.msra.mxu0 0.0
  %2624 = vmatprep.subr.mxu0 0.0
  %2625 = vmatpush2.msra.mxu0 0.0
  %2626 = vmatprep.subr.mxu0 0.0
  %2627 = vmatpush2.msra.mxu0 0.0
  %2628 = vmatprep.subr.mxu0 0.0
  %2629 = vmatpush2.msra.mxu0 0.0
  %2630 = vmatprep.mubr.f32.mxu0 0.0
  %2631 = vmatmul.mubr.f32.gmra.mxu0 %v2493
  %v2632 = vpop.f32.mrf.mxu0
  %v2633 = vadd.f32 %v2489, %v2632
  %v2634 = vpop.f32.mrf.mxu0
  %2635 = vdwg.mxu0
  %v2636 = vsel %vm116, %v2562, 0.0
  %v2637 = vrot.slane %v2636, 4
  %v2638 = vadd.f32 %v2636, %v2637
  %v2639 = vrot.slane %v2638, 2
  %v2640 = vadd.f32 %v2638, %v2639
  %v2641 = vrot.slane %v2640, 1
  %v2642 = vadd.f32 %v2640, %v2641
  %v2643 = vsel %vm116, %v2564, 0.0
  %v2644 = vrot.slane %v2643, 4
  %v2645 = vadd.f32 %v2643, %v2644
  %v2646 = vrot.slane %v2645, 2
  %v2647 = vadd.f32 %v2645, %v2646
  %v2648 = vrot.slane %v2647, 1
  %v2649 = vadd.f32 %v2647, %v2648
  %vm2650 = vcmask 519168
  %v2651 = vsel %vm2650, %v2633, 0.0
  %v2652 = vrot.slane %v2651, 4
  %v2653 = vadd.f32 %v2651, %v2652
  %v2654 = vrot.slane %v2653, 2
  %v2655 = vadd.f32 %v2653, %v2654
  %v2656 = vrot.slane %v2655, 1
  %v2657 = vadd.f32 %v2655, %v2656
  %v2658 = vmul.f32 %v2562, %v2562
  %v2659 = vmul.f32 %v2564, %v2564
  %v2660 = vmul.f32 %v2633, %v2633
  %v2661 = vsel %vm116, %v2658, 0.0
  %v2662 = vrot.slane %v2661, 4
  %v2663 = vadd.f32 %v2661, %v2662
  %v2664 = vrot.slane %v2663, 2
  %v2665 = vadd.f32 %v2663, %v2664
  %v2666 = vrot.slane %v2665, 1
  %v2667 = vadd.f32 %v2665, %v2666
  %v2668 = vsel %vm116, %v2659, 0.0
  %v2669 = vrot.slane %v2668, 4
  %v2670 = vadd.f32 %v2668, %v2669
  %v2671 = vrot.slane %v2670, 2
  %v2672 = vadd.f32 %v2670, %v2671
  %v2673 = vrot.slane %v2672, 1
  %v2674 = vadd.f32 %v2672, %v2673
  %v2675 = vsel %vm2650, %v2660, 0.0
  %v2676 = vrot.slane %v2675, 4
  %v2677 = vadd.f32 %v2675, %v2676
  %v2678 = vrot.slane %v2677, 2
  %v2679 = vadd.f32 %v2677, %v2678
  %v2680 = vrot.slane %v2679, 1
  %v2681 = vadd.f32 %v2679, %v2680
  %v2682 = vsel %vm181, %v2642, %v2667
  %v2683 = vsel %vm181, %v2649, %v2674
  %v2684 = vsel %vm181, %v2657, %v2681
  %v2686 = vsel %vm657, %v2684, 0
  %2688 = vmatprep.subr.mxu0 0.0
  %2689 = vmatpush1.msra.mxu0 %v34
  %2690 = vmatprep.subr.mxu0 0.0
  %2691 = vmatpush1.msra.mxu0 %v33
  %2692 = vmatprep.subr.mxu0 0.0
  %2693 = vmatpush1.msra.mxu0 %v32
  %2694 = vmatprep.subr.mxu0 0.0
  %2695 = vmatpush1.msra.mxu0 %v31
  %2696 = vmatprep.subr.mxu0 0.0
  %2697 = vmatpush1.msra.mxu0 %v30
  %2698 = vmatprep.subr.mxu0 0.0
  %2699 = vmatpush1.msra.mxu0 %v29
  %2700 = vmatprep.subr.mxu0 0.0
  %2701 = vmatpush1.msra.mxu0 %v28
  %2702 = vmatprep.subr.mxu0 0.0
  %2703 = vmatpush1.msra.mxu0 %v27
  %2704 = vmatprep.subr.mxu0 0.0
  %2705 = vmatpush1.msra.mxu0 %v26
  %2706 = vmatprep.subr.mxu0 0.0
  %2707 = vmatpush1.msra.mxu0 %v25
  %2708 = vmatprep.subr.mxu0 0.0
  %2709 = vmatpush1.msra.mxu0 %v24
  %2710 = vmatprep.subr.mxu0 0.0
  %2711 = vmatpush1.msra.mxu0 %v23
  %2712 = vmatprep.subr.mxu0 0.0
  %2713 = vmatpush1.msra.mxu0 %v22
  %2714 = vmatprep.subr.mxu0 0.0
  %2715 = vmatpush1.msra.mxu0 %v21
  %2716 = vmatprep.subr.mxu0 0.0
  %2717 = vmatpush1.msra.mxu0 %v20
  %2718 = vmatprep.subr.mxu0 0.0
  %2719 = vmatpush1.msra.mxu0 %v19
  %2720 = vmatprep.subr.mxu0 0.0
  %2721 = vmatpush2.msra.mxu0 %v50
  %2722 = vmatprep.subr.mxu0 0.0
  %2723 = vmatpush2.msra.mxu0 %v49
  %2724 = vmatprep.subr.mxu0 0.0
  %2725 = vmatpush2.msra.mxu0 %v48
  %2726 = vmatprep.subr.mxu0 0.0
  %2727 = vmatpush2.msra.mxu0 %v47
  %2728 = vmatprep.subr.mxu0 0.0
  %2729 = vmatpush2.msra.mxu0 %v46
  %2730 = vmatprep.subr.mxu0 0.0
  %2731 = vmatpush2.msra.mxu0 %v45
  %2732 = vmatprep.subr.mxu0 0.0
  %2733 = vmatpush2.msra.mxu0 %v44
  %2734 = vmatprep.subr.mxu0 0.0
  %2735 = vmatpush2.msra.mxu0 %v43
  %2736 = vmatprep.subr.mxu0 0.0
  %2737 = vmatpush2.msra.mxu0 %v42
  %2738 = vmatprep.subr.mxu0 0.0
  %2739 = vmatpush2.msra.mxu0 %v41
  %2740 = vmatprep.subr.mxu0 0.0
  %2741 = vmatpush2.msra.mxu0 %v40
  %2742 = vmatprep.subr.mxu0 0.0
  %2743 = vmatpush2.msra.mxu0 %v39
  %2744 = vmatprep.subr.mxu0 0.0
  %2745 = vmatpush2.msra.mxu0 %v38
  %2746 = vmatprep.subr.mxu0 0.0
  %2747 = vmatpush2.msra.mxu0 %v37
  %2748 = vmatprep.subr.mxu0 0.0
  %2749 = vmatpush2.msra.mxu0 %v36
  %2750 = vmatprep.subr.mxu0 0.0
  %2751 = vmatpush2.msra.mxu0 %v35
  %2752 = vmatprep.mubr.f32.mxu0 %v2683
  %2753 = vmatmul.mubr.f32.gmra.mxu0 %v2682
  %v2754 = vpop.f32.mrf.mxu0
  %v2755 = vadd.f32 0.0, %v2754
  %v2756 = vpop.f32.mrf.mxu0
  %2757 = vdwg.mxu0
  %2758 = vmatprep.subr.mxu0 0.0
  %2759 = vmatpush1.msra.mxu0 0.0
  %2760 = vmatprep.subr.mxu0 0.0
  %2761 = vmatpush1.msra.mxu0 0.0
  %2762 = vmatprep.subr.mxu0 0.0
  %2763 = vmatpush1.msra.mxu0 0.0
  %2764 = vmatprep.subr.mxu0 0.0
  %2765 = vmatpush1.msra.mxu0 0.0
  %2766 = vmatprep.subr.mxu0 0.0
  %2767 = vmatpush1.msra.mxu0 0.0
  %2768 = vmatprep.subr.mxu0 0.0
  %2769 = vmatpush1.msra.mxu0 0.0
  %2770 = vmatprep.subr.mxu0 0.0
  %2771 = vmatpush1.msra.mxu0 0.0
  %2772 = vmatprep.subr.mxu0 0.0
  %2773 = vmatpush1.msra.mxu0 0.0
  %2774 = vmatprep.subr.mxu0 0.0
  %2775 = vmatpush1.msra.mxu0 %v58
  %2776 = vmatprep.subr.mxu0 0.0
  %2777 = vmatpush1.msra.mxu0 %v57
  %2778 = vmatprep.subr.mxu0 0.0
  %2779 = vmatpush1.msra.mxu0 %v56
  %2780 = vmatprep.subr.mxu0 0.0
  %2781 = vmatpush1.msra.mxu0 %v55
  %2782 = vmatprep.subr.mxu0 0.0
  %2783 = vmatpush1.msra.mxu0 %v54
  %2784 = vmatprep.subr.mxu0 0.0
  %2785 = vmatpush1.msra.mxu0 %v53
  %2786 = vmatprep.subr.mxu0 0.0
  %2787 = vmatpush1.msra.mxu0 %v52
  %2788 = vmatprep.subr.mxu0 0.0
  %2789 = vmatpush1.msra.mxu0 %v51
  %2790 = vmatprep.subr.mxu0 0.0
  %2791 = vmatpush2.msra.mxu0 0.0
  %2792 = vmatprep.subr.mxu0 0.0
  %2793 = vmatpush2.msra.mxu0 0.0
  %2794 = vmatprep.subr.mxu0 0.0
  %2795 = vmatpush2.msra.mxu0 0.0
  %2796 = vmatprep.subr.mxu0 0.0
  %2797 = vmatpush2.msra.mxu0 0.0
  %2798 = vmatprep.subr.mxu0 0.0
  %2799 = vmatpush2.msra.mxu0 0.0
  %2800 = vmatprep.subr.mxu0 0.0
  %2801 = vmatpush2.msra.mxu0 0.0
  %2802 = vmatprep.subr.mxu0 0.0
  %2803 = vmatpush2.msra.mxu0 0.0
  %2804 = vmatprep.subr.mxu0 0.0
  %2805 = vmatpush2.msra.mxu0 0.0
  %2806 = vmatprep.subr.mxu0 0.0
  %2807 = vmatpush2.msra.mxu0 0.0
  %2808 = vmatprep.subr.mxu0 0.0
  %2809 = vmatpush2.msra.mxu0 0.0
  %2810 = vmatprep.subr.mxu0 0.0
  %2811 = vmatpush2.msra.mxu0 0.0
  %2812 = vmatprep.subr.mxu0 0.0
  %2813 = vmatpush2.msra.mxu0 0.0
  %2814 = vmatprep.subr.mxu0 0.0
  %2815 = vmatpush2.msra.mxu0 0.0
  %2816 = vmatprep.subr.mxu0 0.0
  %2817 = vmatpush2.msra.mxu0 0.0
  %2818 = vmatprep.subr.mxu0 0.0
  %2819 = vmatpush2.msra.mxu0 0.0
  %2820 = vmatprep.subr.mxu0 0.0
  %2821 = vmatpush2.msra.mxu0 0.0
  %2822 = vmatprep.mubr.f32.mxu0 0.0
  %2823 = vmatmul.mubr.f32.gmra.mxu0 %v2686
  %v2824 = vpop.f32.mrf.mxu0
  %v2825 = vadd.f32 %v2755, %v2824
  %v2826 = vpop.f32.mrf.mxu0
  %2827 = vdwg.mxu0
  %v2828 = vmul.f32 %v2825, 0.025
  %v2829 = vmul.f32 %v2828, %v2828
  %v2831 = vrot.slane %v2829, 7
  %v2833 = vsub.f32 %v2828, %v2831
  %v2834 = vadd.f32 %v2833, 1e-06
  %v2835 = vrsqrt.pop %v2834
  %v2836 = vsel %vm181, %v2828, %v2835
  %v2838 = vsel %vm326, %v2836, 0
  %2840 = vmatprep.subr.mxu0 0.0
  %2841 = vmatpush1.msra.mxu0 0.0
  %2842 = vmatprep.subr.mxu0 0.0
  %2843 = vmatpush1.msra.mxu0 0.0
  %2844 = vmatprep.subr.mxu0 0.0
  %2845 = vmatpush1.msra.mxu0 0.0
  %2846 = vmatprep.subr.mxu0 0.0
  %2847 = vmatpush1.msra.mxu0 0.0
  %2848 = vmatprep.subr.mxu0 0.0
  %2849 = vmatpush1.msra.mxu0 0.0
  %2850 = vmatprep.subr.mxu0 0.0
  %2851 = vmatpush1.msra.mxu0 0.0
  %2852 = vmatprep.subr.mxu0 0.0
  %2853 = vmatpush1.msra.mxu0 0.0
  %2854 = vmatprep.subr.mxu0 0.0
  %2855 = vmatpush1.msra.mxu0 0.0
  %2856 = vmatprep.subr.mxu0 0.0
  %2857 = vmatpush1.msra.mxu0 0.0
  %2858 = vmatprep.subr.mxu0 0.0
  %2859 = vmatpush1.msra.mxu0 0.0
  %2860 = vmatprep.subr.mxu0 0.0
  %2861 = vmatpush1.msra.mxu0 0.0
  %2862 = vmatprep.subr.mxu0 0.0
  %2863 = vmatpush1.msra.mxu0 0.0
  %2864 = vmatprep.subr.mxu0 %v96
  %2865 = vmatpush1.msra.mxu0 %v95
  %2866 = vmatprep.subr.mxu0 %v92
  %2867 = vmatpush1.msra.mxu0 %v91
  %2868 = vmatprep.subr.mxu0 %v88
  %2869 = vmatpush1.msra.mxu0 %v87
  %2870 = vmatprep.subr.mxu0 %v84
  %2871 = vmatpush1.msra.mxu0 %v83
  %2872 = vmatprep.subr.mxu0 0.0
  %2873 = vmatpush2.msra.mxu0 0.0
  %2874 = vmatprep.subr.mxu0 0.0
  %2875 = vmatpush2.msra.mxu0 0.0
  %2876 = vmatprep.subr.mxu0 0.0
  %2877 = vmatpush2.msra.mxu0 0.0
  %2878 = vmatprep.subr.mxu0 0.0
  %2879 = vmatpush2.msra.mxu0 0.0
  %2880 = vmatprep.subr.mxu0 0.0
  %2881 = vmatpush2.msra.mxu0 0.0
  %2882 = vmatprep.subr.mxu0 0.0
  %2883 = vmatpush2.msra.mxu0 0.0
  %2884 = vmatprep.subr.mxu0 0.0
  %2885 = vmatpush2.msra.mxu0 0.0
  %2886 = vmatprep.subr.mxu0 0.0
  %2887 = vmatpush2.msra.mxu0 0.0
  %2888 = vmatprep.subr.mxu0 0.0
  %2889 = vmatpush2.msra.mxu0 0.0
  %2890 = vmatprep.subr.mxu0 0.0
  %2891 = vmatpush2.msra.mxu0 0.0
  %2892 = vmatprep.subr.mxu0 0.0
  %2893 = vmatpush2.msra.mxu0 0.0
  %2894 = vmatprep.subr.mxu0 0.0
  %2895 = vmatpush2.msra.mxu0 0.0
  %2896 = vmatprep.subr.mxu0 0.0
  %2897 = vmatpush2.msra.mxu0 0.0
  %2898 = vmatprep.subr.mxu0 0.0
  %2899 = vmatpush2.msra.mxu0 0.0
  %2900 = vmatprep.subr.mxu0 0.0
  %2901 = vmatpush2.msra.mxu0 0.0
  %2902 = vmatprep.subr.mxu0 0.0
  %2903 = vmatpush2.msra.mxu0 0.0
  %2904 = vmatprep.mubr.f32.mxu0 0.0
  %2905 = vmatmul.mubr.f32.gmra.mxu0 %v2838
  %v2906 = vpop.f32.mrf.mxu0
  %v2907 = vadd.f32 0.0, %v2906
  %v2908 = vpop.f32.mrf.mxu0
  %v2909 = vadd.f32 0.0, %v2908
  %2910 = vdwg.mxu0
  %2911 = vmatprep.subr.mxu0 0.0
  %2912 = vmatpush1.msra.mxu0 0.0
  %2913 = vmatprep.subr.mxu0 0.0
  %2914 = vmatpush1.msra.mxu0 0.0
  %2915 = vmatprep.subr.mxu0 0.0
  %2916 = vmatpush1.msra.mxu0 0.0
  %2917 = vmatprep.subr.mxu0 0.0
  %2918 = vmatpush1.msra.mxu0 0.0
  %2919 = vmatprep.subr.mxu0 0.0
  %2920 = vmatpush1.msra.mxu0 0.0
  %2921 = vmatprep.subr.mxu0 0.0
  %2922 = vmatpush1.msra.mxu0 0.0
  %2923 = vmatprep.subr.mxu0 0.0
  %2924 = vmatpush1.msra.mxu0 0.0
  %2925 = vmatprep.subr.mxu0 0.0
  %2926 = vmatpush1.msra.mxu0 0.0
  %2927 = vmatprep.subr.mxu0 0.0
  %2928 = vmatpush1.msra.mxu0 0.0
  %2929 = vmatprep.subr.mxu0 0.0
  %2930 = vmatpush1.msra.mxu0 0.0
  %2931 = vmatprep.subr.mxu0 0.0
  %2932 = vmatpush1.msra.mxu0 0.0
  %2933 = vmatprep.subr.mxu0 0.0
  %2934 = vmatpush1.msra.mxu0 0.0
  %2935 = vmatprep.subr.mxu0 0.0
  %2936 = vmatpush1.msra.mxu0 %v97
  %2937 = vmatprep.subr.mxu0 0.0
  %2938 = vmatpush1.msra.mxu0 %v93
  %2939 = vmatprep.subr.mxu0 0.0
  %2940 = vmatpush1.msra.mxu0 %v89
  %2941 = vmatprep.subr.mxu0 0.0
  %2942 = vmatpush1.msra.mxu0 %v85
  %2943 = vmatprep.subr.mxu0 0.0
  %2944 = vmatpush2.msra.mxu0 0.0
  %2945 = vmatprep.subr.mxu0 0.0
  %2946 = vmatpush2.msra.mxu0 0.0
  %2947 = vmatprep.subr.mxu0 0.0
  %2948 = vmatpush2.msra.mxu0 0.0
  %2949 = vmatprep.subr.mxu0 0.0
  %2950 = vmatpush2.msra.mxu0 0.0
  %2951 = vmatprep.subr.mxu0 0.0
  %2952 = vmatpush2.msra.mxu0 0.0
  %2953 = vmatprep.subr.mxu0 0.0
  %2954 = vmatpush2.msra.mxu0 0.0
  %2955 = vmatprep.subr.mxu0 0.0
  %2956 = vmatpush2.msra.mxu0 0.0
  %2957 = vmatprep.subr.mxu0 0.0
  %2958 = vmatpush2.msra.mxu0 0.0
  %2959 = vmatprep.subr.mxu0 0.0
  %2960 = vmatpush2.msra.mxu0 0.0
  %2961 = vmatprep.subr.mxu0 0.0
  %2962 = vmatpush2.msra.mxu0 0.0
  %2963 = vmatprep.subr.mxu0 0.0
  %2964 = vmatpush2.msra.mxu0 0.0
  %2965 = vmatprep.subr.mxu0 0.0
  %2966 = vmatpush2.msra.mxu0 0.0
  %2967 = vmatprep.subr.mxu0 0.0
  %2968 = vmatpush2.msra.mxu0 0.0
  %2969 = vmatprep.subr.mxu0 0.0
  %2970 = vmatpush2.msra.mxu0 0.0
  %2971 = vmatprep.subr.mxu0 0.0
  %2972 = vmatpush2.msra.mxu0 0.0
  %2973 = vmatprep.subr.mxu0 0.0
  %2974 = vmatpush2.msra.mxu0 0.0
  %2975 = vmatprep.mubr.f32.mxu0 0.0
  %2976 = vmatmul.mubr.f32.gmra.mxu0 %v2838
  %v2977 = vpop.f32.mrf.mxu0
  %v2978 = vadd.f32 0.0, %v2977
  %v2979 = vpop.f32.mrf.mxu0
  %2980 = vdwg.mxu0
  %v2981 = vlaneseq
  %v2982 = vshrl.u32 %v2981, 7
  %v2983 = vsub.s32 0, %v2982
  %v2984 = vrot.slane %v2907, %v2983
  %v2985 = vlaneseq
  %v2986 = vshrl.u32 %v2985, 7
  %v2987 = vsub.s32 0, %v2986
  %v2988 = vrot.slane %v2909, %v2987
  %v2989 = vlaneseq
  %v2990 = vshrl.u32 %v2989, 7
  %v2991 = vsub.s32 0, %v2990
  %v2992 = vrot.slane %v2978, %v2991
  %v2993 = vsub.f32 %v2562, %v2984
  %v2994 = vsub.f32 %v2564, %v2988
  %v2995 = vsub.f32 %v2633, %v2992
  %v2996 = vlaneseq
  %v2997 = vshrl.u32 %v2996, 7
  %v2998 = vsub.s32 1, %v2997
  %v2999 = vrot.slane %v2907, %v2998
  %v3000 = vlaneseq
  %v3001 = vshrl.u32 %v3000, 7
  %v3002 = vsub.s32 1, %v3001
  %v3003 = vrot.slane %v2909, %v3002
  %v3004 = vlaneseq
  %v3005 = vshrl.u32 %v3004, 7
  %v3006 = vsub.s32 1, %v3005
  %v3007 = vrot.slane %v2978, %v3006
  %v3008 = vmul.f32 %v2993, %v2999
  %v3009 = vmul.f32 %v2994, %v3003
  %v3010 = vmul.f32 %v2995, %v3007
  %3011 = vset.pattern.permute.xlu0 7
  %3012 = vperm.xlu0 %3011, %v109
  %v3013 = vpop.permute.xlu0 %3012
  %v3015 = vmul.f32 %v3008, %v3013
  %v3016 = vmul.f32 %v3009, %v3013
  %v3017 = vmul.f32 %v3010, %v3013
  %3018 = vset.pattern.permute.xlu0 8
  %3019 = vperm.xlu0 %3018, %v109
  %v3020 = vpop.permute.xlu0 %3019
  %v3022 = vadd.f32 %v3015, %v3020
  %v3023 = vadd.f32 %v3016, %v3020
  %v3024 = vadd.f32 %v3017, %v3020
  %vm3025 = vcmp.ge.f32.partialorder %v3022, 0.0
  %vm3026 = vcmp.ge.f32.partialorder %v3023, 0.0
  %vm3027 = vcmp.ge.f32.partialorder %v3024, 0.0
  %v3028 = vmul.f32 %v3022, 0.25
  %v3029 = vmul.f32 %v3023, 0.25
  %v3030 = vmul.f32 %v3024, 0.25
  %v3031 = vsel %vm3025, %v3022, %v3028
  %v3032 = vsel %vm3026, %v3023, %v3029
  %v3033 = vsel %vm3027, %v3024, %v3030
  %v3034 = vadd.f32 %v3031, %v1326
  %v3035 = vadd.f32 %v3032, %v1327
  %v3036 = vadd.f32 %v3033, %v1328
  %3040 = vrot.lane.b32.xlu0 %v3034, 64
  %v3041 = vpop.permute.xlu0 %3040
  %3042 = vrot.lane.b32.xlu0 %v3035, 64
  %v3043 = vpop.permute.xlu0 %3042
  %3044 = vrot.lane.b32.xlu0 %v3036, 64
  %v3045 = vpop.permute.xlu0 %3044
  %v3046 = vsel %vm657, %v3041, %v3043
  %v3047 = vsel %vm657, %v3043, %v3045
  %v3051 = vsel %vm657, 0.0, %v3041
  %v3054 = vrot.slane %v3051, 4
  %v3055 = vrot.slane %v3046, 4
  %v3056 = vrot.slane %v3047, 4
  %v3057 = vrot.slane 0.0, 4
  %3058 = vrot.lane.b32.xlu0 %v3054, 32
  %v3059 = vpop.permute.xlu0 %3058
  %3060 = vrot.lane.b32.xlu0 %v3055, 32
  %v3061 = vpop.permute.xlu0 %3060
  %3062 = vrot.lane.b32.xlu0 %v3056, 32
  %v3063 = vpop.permute.xlu0 %3062
  %3064 = vrot.lane.b32.xlu0 %v3057, 32
  %v3065 = vpop.permute.xlu0 %3064
  %v3066 = vsel %vm326, %v3059, %v3061
  %v3067 = vsel %vm326, %v3061, %v3063
  %v3068 = vsel %vm326, %v3063, %v3065
  %3074 = vrot.lane.b32.xlu0 %v3051, 64
  %v3075 = vpop.permute.xlu0 %3074
  %3076 = vrot.lane.b32.xlu0 %v3046, 64
  %v3077 = vpop.permute.xlu0 %3076
  %3078 = vrot.lane.b32.xlu0 %v3047, 64
  %v3079 = vpop.permute.xlu0 %3078
  %3080 = vrot.lane.b32.xlu0 0.0, 64
  %v3081 = vpop.permute.xlu0 %3080
  %v3082 = vsel %vm657, %v3075, %v3077
  %v3083 = vsel %vm657, %v3077, %v3079
  %v3084 = vsel %vm657, %v3079, %v3081
  %3090 = vrot.lane.b32.xlu0 %v3057, 96
  %v3091 = vpop.permute.xlu0 %3090
  %3092 = vrot.lane.b32.xlu0 %v3054, 96
  %v3093 = vpop.permute.xlu0 %3092
  %3094 = vrot.lane.b32.xlu0 %v3055, 96
  %v3095 = vpop.permute.xlu0 %3094
  %3096 = vrot.lane.b32.xlu0 %v3056, 96
  %v3097 = vpop.permute.xlu0 %3096
  %v3098 = vsel %vm645, %v3091, %v3093
  %v3099 = vsel %vm645, %v3093, %v3095
  %v3100 = vsel %vm645, %v3095, %v3097
  %v3101 = vsel %vm645, %v3097, %v3091
  %v3107 = vsel %vm326, %v3065, %v3059
  %v3109 = vsel %vm657, %v3081, %v3075
  %v3110 = vsel %vm116, %v3051, %v3059
  %v3111 = vsel %vm116, %v3046, %v3066
  %v3112 = vsel %vm116, %v3047, %v3067
  %v3113 = vsel %vm116, 0.0, %v3068
  %v3114 = vsel %vm116, 0.0, %v3065
  %v3115 = vsel %vm116, %v3075, %v3098
  %v3116 = vsel %vm116, %v3082, %v3099
  %v3117 = vsel %vm116, %v3083, %v3100
  %v3118 = vsel %vm116, %v3084, %v3101
  %v3119 = vsel %vm116, %v3081, %v3091
  %v3120 = vsel %vm116, %v3051, %v3107
  %3121 = vset.pattern.permute.xlu0 9
  %3122 = vperm.xlu0 %3121, %v109
  %v3123 = vpop.permute.xlu0 %3122
  %3136 = vrot.lane.b32.xlu0 %v3110, 64
  %v3137 = vpop.permute.xlu0 %3136
  %3138 = vrot.lane.b32.xlu0 %v3111, 64
  %v3139 = vpop.permute.xlu0 %3138
  %3140 = vrot.lane.b32.xlu0 %v3112, 64
  %v3141 = vpop.permute.xlu0 %3140
  %3142 = vrot.lane.b32.xlu0 %v3113, 64
  %v3143 = vpop.permute.xlu0 %3142
  %3144 = vrot.lane.b32.xlu0 %v3114, 64
  %v3145 = vpop.permute.xlu0 %3144
  %3146 = vrot.lane.b32.xlu0 %v3115, 64
  %v3147 = vpop.permute.xlu0 %3146
  %3148 = vrot.lane.b32.xlu0 %v3116, 64
  %v3149 = vpop.permute.xlu0 %3148
  %3150 = vrot.lane.b32.xlu0 %v3117, 64
  %v3151 = vpop.permute.xlu0 %3150
  %3152 = vrot.lane.b32.xlu0 %v3118, 64
  %v3153 = vpop.permute.xlu0 %3152
  %3154 = vrot.lane.b32.xlu0 %v3119, 64
  %v3155 = vpop.permute.xlu0 %3154
  %3156 = vrot.lane.b32.xlu0 %v3120, 64
  %v3157 = vpop.permute.xlu0 %3156
  %3158 = vrot.lane.b32.xlu0 %v3081, 64
  %v3159 = vpop.permute.xlu0 %3158
  %3160 = vrot.lane.b32.xlu0 %v3109, 64
  %v3161 = vpop.permute.xlu0 %3160
  %3162 = vrot.lane.b32.xlu0 %v3082, 64
  %v3163 = vpop.permute.xlu0 %3162
  %3164 = vrot.lane.b32.xlu0 %v3083, 64
  %v3165 = vpop.permute.xlu0 %3164
  %3166 = vrot.lane.b32.xlu0 %v3079, 64
  %v3167 = vpop.permute.xlu0 %3166
  %v3168 = vsel %vm657, %v3137, %v3139
  %v3169 = vsel %vm657, %v3139, %v3141
  %v3170 = vsel %vm657, %v3141, %v3143
  %v3171 = vsel %vm657, %v3143, %v3145
  %v3172 = vsel %vm657, %v3147, %v3149
  %v3173 = vsel %vm657, %v3149, %v3151
  %v3174 = vsel %vm657, %v3151, %v3153
  %v3175 = vsel %vm657, %v3153, %v3155
  %v3176 = vsel %vm657, %v3145, %v3157
  %v3177 = vsel %vm657, %v3157, %v3139
  %v3178 = vsel %vm657, %v3159, %v3161
  %v3179 = vsel %vm657, %v3161, %v3163
  %v3180 = vsel %vm657, %v3163, %v3165
  %v3181 = vsel %vm657, %v3165, %v3167
  %v3193 = vsel %vm695, %v108, 0
  %v3195 = vsel %vm116, %v3178, 0
  %v3197 = vsel %vm116, %v3179, 0
  %v3199 = vsel %vm116, %v3180, 0
  %v3201 = vsel %vm116, %v3181, 0
  %3203 = vmatprep.subr.mxu0 0.0
  %3204 = vmatpush1.msra.mxu0 0.0
  %3205 = vmatprep.subr.mxu0 0.0
  %3206 = vmatpush1.msra.mxu0 0.0
  %3207 = vmatprep.subr.mxu0 0.0
  %3208 = vmatpush1.msra.mxu0 0.0
  %3209 = vmatprep.subr.mxu0 0.0
  %3210 = vmatpush1.msra.mxu0 0.0
  %3211 = vmatprep.subr.mxu0 0.0
  %3212 = vmatpush1.msra.mxu0 0.0
  %3213 = vmatprep.subr.mxu0 0.0
  %3214 = vmatpush1.msra.mxu0 0.0
  %3215 = vmatprep.subr.mxu0 0.0
  %3216 = vmatpush1.msra.mxu0 0.0
  %3217 = vmatprep.subr.mxu0 0.0
  %3218 = vmatpush1.msra.mxu0 0.0
  %3219 = vmatprep.subr.mxu0 0.0
  %3220 = vmatpush1.msra.mxu0 0.0
  %3221 = vmatprep.subr.mxu0 0.0
  %3222 = vmatpush1.msra.mxu0 0.0
  %3223 = vmatprep.subr.mxu0 0.0
  %3224 = vmatpush1.msra.mxu0 0.0
  %3225 = vmatprep.subr.mxu0 0.0
  %3226 = vmatpush1.msra.mxu0 0.0
  %3227 = vmatprep.subr.mxu0 %v3197
  %3228 = vmatpush1.msra.mxu0 %v3195
  %3229 = vmatprep.subr.mxu0 %v3177
  %3230 = vmatpush1.msra.mxu0 %v3176
  %3231 = vmatprep.subr.mxu0 %v3173
  %3232 = vmatpush1.msra.mxu0 %v3172
  %3233 = vmatprep.subr.mxu0 %v3169
  %3234 = vmatpush1.msra.mxu0 %v3168
  %3235 = vmatprep.subr.mxu0 0.0
  %3236 = vmatpush2.msra.mxu0 0.0
  %3237 = vmatprep.subr.mxu0 0.0
  %3238 = vmatpush2.msra.mxu0 0.0
  %3239 = vmatprep.subr.mxu0 0.0
  %3240 = vmatpush2.msra.mxu0 0.0
  %3241 = vmatprep.subr.mxu0 0.0
  %3242 = vmatpush2.msra.mxu0 0.0
  %3243 = vmatprep.subr.mxu0 0.0
  %3244 = vmatpush2.msra.mxu0 0.0
  %3245 = vmatprep.subr.mxu0 0.0
  %3246 = vmatpush2.msra.mxu0 0.0
  %3247 = vmatprep.subr.mxu0 0.0
  %3248 = vmatpush2.msra.mxu0 0.0
  %3249 = vmatprep.subr.mxu0 0.0
  %3250 = vmatpush2.msra.mxu0 0.0
  %3251 = vmatprep.subr.mxu0 0.0
  %3252 = vmatpush2.msra.mxu0 0.0
  %3253 = vmatprep.subr.mxu0 0.0
  %3254 = vmatpush2.msra.mxu0 0.0
  %3255 = vmatprep.subr.mxu0 0.0
  %3256 = vmatpush2.msra.mxu0 0.0
  %3257 = vmatprep.subr.mxu0 0.0
  %3258 = vmatpush2.msra.mxu0 0.0
  %3259 = vmatprep.subr.mxu0 0.0
  %3260 = vmatpush2.msra.mxu0 0.0
  %3261 = vmatprep.subr.mxu0 0.0
  %3262 = vmatpush2.msra.mxu0 0.0
  %3263 = vmatprep.subr.mxu0 0.0
  %3264 = vmatpush2.msra.mxu0 0.0
  %3265 = vmatprep.subr.mxu0 0.0
  %3266 = vmatpush2.msra.mxu0 0.0
  %3267 = vmatprep.mubr.f32.mxu0 0.0
  %3268 = vmatmul.mubr.f32.gmra.mxu0 %v3193
  %v3269 = vpop.f32.mrf.mxu0
  %v3270 = vadd.f32 %v3123, %v3269
  %v3271 = vpop.f32.mrf.mxu0
  %v3272 = vadd.f32 %v3123, %v3271
  %3273 = vdwg.mxu0
  %3274 = vmatprep.subr.mxu0 0.0
  %3275 = vmatpush1.msra.mxu0 0.0
  %3276 = vmatprep.subr.mxu0 0.0
  %3277 = vmatpush1.msra.mxu0 0.0
  %3278 = vmatprep.subr.mxu0 0.0
  %3279 = vmatpush1.msra.mxu0 0.0
  %3280 = vmatprep.subr.mxu0 0.0
  %3281 = vmatpush1.msra.mxu0 0.0
  %3282 = vmatprep.subr.mxu0 0.0
  %3283 = vmatpush1.msra.mxu0 0.0
  %3284 = vmatprep.subr.mxu0 0.0
  %3285 = vmatpush1.msra.mxu0 0.0
  %3286 = vmatprep.subr.mxu0 0.0
  %3287 = vmatpush1.msra.mxu0 0.0
  %3288 = vmatprep.subr.mxu0 0.0
  %3289 = vmatpush1.msra.mxu0 0.0
  %3290 = vmatprep.subr.mxu0 0.0
  %3291 = vmatpush1.msra.mxu0 0.0
  %3292 = vmatprep.subr.mxu0 0.0
  %3293 = vmatpush1.msra.mxu0 0.0
  %3294 = vmatprep.subr.mxu0 0.0
  %3295 = vmatpush1.msra.mxu0 0.0
  %3296 = vmatprep.subr.mxu0 0.0
  %3297 = vmatpush1.msra.mxu0 0.0
  %3298 = vmatprep.subr.mxu0 %v3201
  %3299 = vmatpush1.msra.mxu0 %v3199
  %3300 = vmatprep.subr.mxu0 %v3170
  %3301 = vmatpush1.msra.mxu0 %v3169
  %3302 = vmatprep.subr.mxu0 %v3175
  %3303 = vmatpush1.msra.mxu0 %v3174
  %3304 = vmatprep.subr.mxu0 %v3171
  %3305 = vmatpush1.msra.mxu0 %v3170
  %3306 = vmatprep.subr.mxu0 0.0
  %3307 = vmatpush2.msra.mxu0 0.0
  %3308 = vmatprep.subr.mxu0 0.0
  %3309 = vmatpush2.msra.mxu0 0.0
  %3310 = vmatprep.subr.mxu0 0.0
  %3311 = vmatpush2.msra.mxu0 0.0
  %3312 = vmatprep.subr.mxu0 0.0
  %3313 = vmatpush2.msra.mxu0 0.0
  %3314 = vmatprep.subr.mxu0 0.0
  %3315 = vmatpush2.msra.mxu0 0.0
  %3316 = vmatprep.subr.mxu0 0.0
  %3317 = vmatpush2.msra.mxu0 0.0
  %3318 = vmatprep.subr.mxu0 0.0
  %3319 = vmatpush2.msra.mxu0 0.0
  %3320 = vmatprep.subr.mxu0 0.0
  %3321 = vmatpush2.msra.mxu0 0.0
  %3322 = vmatprep.subr.mxu0 0.0
  %3323 = vmatpush2.msra.mxu0 0.0
  %3324 = vmatprep.subr.mxu0 0.0
  %3325 = vmatpush2.msra.mxu0 0.0
  %3326 = vmatprep.subr.mxu0 0.0
  %3327 = vmatpush2.msra.mxu0 0.0
  %3328 = vmatprep.subr.mxu0 0.0
  %3329 = vmatpush2.msra.mxu0 0.0
  %3330 = vmatprep.subr.mxu0 0.0
  %3331 = vmatpush2.msra.mxu0 0.0
  %3332 = vmatprep.subr.mxu0 0.0
  %3333 = vmatpush2.msra.mxu0 0.0
  %3334 = vmatprep.subr.mxu0 0.0
  %3335 = vmatpush2.msra.mxu0 0.0
  %3336 = vmatprep.subr.mxu0 0.0
  %3337 = vmatpush2.msra.mxu0 0.0
  %3338 = vmatprep.mubr.f32.mxu0 0.0
  %3339 = vmatmul.mubr.f32.gmra.mxu0 %v3193
  %v3340 = vpop.f32.mrf.mxu0
  %v3341 = vadd.f32 %v3123, %v3340
  %v3342 = vpop.f32.mrf.mxu0
  %v3343 = vadd.f32 %v3123, %v3342
  %3344 = vdwg.mxu0
  %v3345 = vadd.f32 %v3270, %v17
  %v3346 = vadd.f32 %v3272, %v112
  %v3347 = vadd.f32 %v3341, %v18
  %v3348 = vadd.f32 %v3343, %v113
  %v3353 = vcombine.low %v3345, %v3346
  %v3354 = vcombine.low %v3347, %v3348
  %3357 = vst [vmem:[%s4] sm:$0xff] %v3353
  %3358 = vst [vmem:[%s4 + $0x8] sm:$0xff] %v3354
  // Predicated region
  $region18: #{dual_path_forward.1} parent=0 // pred_check
    _
  $region19: #{dual_path_forward.1} parent=0 // pred_check_branch
    %3360 = sbr.rel (0) target = $region21
  $region20: #{dual_path_forward.1} parent=0 // pred_region
    _
  $region21: #{dual_path_forward.1} parent=0 // pred_fallthru
    _
  // Predicated region
  $region22: #{dual_path_forward.1} parent=0 // pred_check
    _
  $region23: #{dual_path_forward.1} parent=0 // pred_check_branch
    %3362 = sbr.rel (0) target = $region25
  $region24: #{dual_path_forward.1} parent=0 // pred_region
    _
  $region25: #{dual_path_forward.1} parent=0 // pred_fallthru
    _

</llo_original>
